<compile_context>
chip_gen: v6e
topology: v6e:2x2x1
jax: 0.10.0
libtpu: 0.0.40
codegen_flags: <defaults>
</compile_context>

<pallas_src>
import functools

import jax
import jax.numpy as jnp
from jax import lax
from jax.experimental import pallas as pl
from jax.experimental.pallas import tpu as pltpu

DIL = 4   # dilation == padding of the dilated 3x3 convs (keeps the halo coupled)
KS = 3    # dilated conv kernel size


def _bam_kernel(
    x_ref,                     # (BB, H, W*C)  lane-dense NHWC block
    cg_w1_ref, cg_b1_ref,      # (C, mid), (1, mid)        -- BN folded in
    cg_w2_ref, cg_b2_ref,      # (mid, C), (1, C)
    wr_big_ref, br_big_ref,    # (W*C, mid*W), (1, mid*W)  -- block-diag reduce conv, BN folded
    pool_ref,                  # (BB, BB*H)                -- per-batch mean-pool matrix
    tsum_ref, tsumt_ref,       # (W*C, C), (C, W*C)        -- channel-sum / channel-tile matrices
    e_ref,                     # (W, W*C)                  -- one-hot lane expansion of sp
    sg_wd1_ref, sg_od1_ref,    # SMEM (9*mid*mid,), (mid,) -- BN folded into weights/offsets
    sg_wd2_ref, sg_od2_ref,    # SMEM (9*mid*mid,), (mid,)
    sg_wf_ref,                 # SMEM (mid+1,): [w_0..w_{mid-1}, bias]
    out_ref,                   # (BB, H, W*C)
    pad_ref,                   # VMEM scratch (mid, H+2P, BB*(W+2P) + 2P)
):
    BB, H, WC = x_ref.shape
    W = e_ref.shape[0]
    mid = sg_od1_ref.shape[0]
    P = DIL
    S = W + 2 * P          # per-batch padded plane width (lanes)
    LOUT = BB * S          # lane-packed conv output width (all batches)

    x3 = x_ref[...]                      # (BB, H, WC)  lane-dense
    xf = x3.reshape(BB * H, WC)          # free relayout (H is a multiple of 8)

    # ---------------- Channel gate (all BB batches batched) ------------------
    # avg[b, c] = mean_{y,x} x[b, y, x, c]; both contractions on the MXU.
    rowsum = jnp.dot(pool_ref[...], xf, preferred_element_type=jnp.float32)    # (BB, WC), 1/(H*W) folded
    avg = jnp.dot(rowsum, tsum_ref[...], preferred_element_type=jnp.float32)   # (BB, C)
    h = jnp.dot(avg, cg_w1_ref[...], preferred_element_type=jnp.float32) + cg_b1_ref[...]
    h = jnp.maximum(h, 0.0)                                                    # folded BN + ReLU
    ch = jnp.dot(h, cg_w2_ref[...], preferred_element_type=jnp.float32) + cg_b2_ref[...]   # (BB, C)
    ch_t = jnp.dot(ch, tsumt_ref[...], preferred_element_type=jnp.float32)     # (BB, WC) lane-tiled

    # ---------------- Spatial gate -------------------------------------------
    # 1x1 reduce conv straight from the lane-dense layout via a block-diagonal
    # weight matrix (MXU); result lands as per-channel (H, W) planes packed
    # along lanes: rmat[b*H + y, m*W + x] = conv_reduce(b, m, y, x).
    rmat = jnp.dot(xf, wr_big_ref[...], preferred_element_type=jnp.float32) + br_big_ref[...]
    rmat = jnp.maximum(rmat, 0.0)        # (BB*H, mid*W), folded BN + ReLU

    # Conv scratch: per input channel, all BB padded batch planes packed along
    # lanes.  Halos must be zero; interiors are fully overwritten before every
    # use.  The buffer is a few KiB, so a full zero each step is cheap and
    # megacore-safe (each core re-zeros its own scratch).
    pad_ref[...] = jnp.zeros_like(pad_ref)
    for b in range(BB):
        for m in range(mid):
            pad_ref[m, P:P + H, b * S + P:b * S + P + W] = \
                rmat[b * H:(b + 1) * H, m * W:(m + 1) * W]

    def dil_conv_bn_relu(w_ref, off_ref):
        # mid = C // 16 is tiny here, so the dilated 3x3 conv is 9*mid*mid
        # broadcast-FMAs of SMEM scalar weights over lane-packed (H, BB*(W+2P))
        # planes: every FMA covers all BB batches at once.
        # NOTE: for production BAM sizes (mid >= 8) this should become an
        # im2col MXU dot (K = 9*mid) with weights kept in VMEM.
        acc = [jnp.zeros((H, LOUT), jnp.float32) for _ in range(mid)]
        for ci in range(mid):
            for ky in range(KS):
                for kx in range(KS):
                    tap = pad_ref[ci, ky * P:ky * P + H, kx * P:kx * P + LOUT]   # (H, LOUT)
                    base = ((ky * KS + kx) * mid + ci) * mid
                    for co in range(mid):
                        acc[co] = acc[co] + w_ref[base + co] * tap
        return [jnp.maximum(acc[co] + off_ref[co], 0.0) for co in range(mid)]

    d1 = dil_conv_bn_relu(sg_wd1_ref, sg_od1_ref)
    for b in range(BB):
        for m in range(mid):
            # Batch b's output plane sits at lanes [b*S, b*S+W); halo stays zero.
            pad_ref[m, P:P + H, b * S + P:b * S + P + W] = d1[m][:, b * S:b * S + W]
    d2 = dil_conv_bn_relu(sg_wd2_ref, sg_od2_ref)

    # Final 1x1 conv mid -> 1 (scalar weights on the VPU), still lane-packed.
    sp = sg_wf_ref[0] * d2[0]
    for m in range(1, mid):
        sp = sp + sg_wf_ref[m] * d2[m]
    sp = sp + sg_wf_ref[mid]             # (H, LOUT); batch b at lanes [b*S, b*S+W)

    # ---------------- Fuse: out = x * (1 + sigmoid(ch * sp)) -----------------
    # sp is expanded to (H, W*C) on the MXU with a one-hot matrix (no cross-lane
    # broadcast), and 1 + sigmoid(z) is folded into 1.5 + 0.5*tanh(0.5*z).
    for b in range(BB):
        sp_b = sp[:, b * S:b * S + W]                                           # (H, W)
        spw = jnp.dot(sp_b, e_ref[...], preferred_element_type=jnp.float32)     # (H, WC)
        z = spw * ch_t[b:b + 1, :]
        out_ref[b] = x3[b] * (1.5 + 0.5 * jnp.tanh(0.5 * z))


def _prepare(params, W):
    """Fold eval-mode BN / conv biases into the preceding weights and build the
    constant structural matrices that keep channel-space work on the MXU."""
    f32 = jnp.float32
    C, mid = params["cg_w1"].shape
    p = {}

    # Channel gate (BN folded into the first linear).
    p["cg_w1"] = (params["cg_w1"] * params["cg_s1"]).astype(f32)                       # (C, mid)
    p["cg_b1"] = (params["cg_b1"] * params["cg_s1"] + params["cg_o1"]).astype(f32)     # (1, mid)
    p["cg_w2"] = params["cg_w2"].astype(f32)                                           # (mid, C)
    p["cg_b2"] = params["cg_b2"].astype(f32)                                           # (1, C)

    # Spatial gate 1x1 reduce conv (BN folded), lifted to a block-diagonal
    # matrix operating on the lane-dense (.., W*C) layout:
    #   Wr_big[x*C + c, m*W + x'] = wr[c, m] * (x == x')
    wr = (params["sg_wr"] * params["sg_sr"]).astype(f32)                               # (C, mid)
    br = (params["sg_br"] * params["sg_sr"] + params["sg_or"]).astype(f32)             # (1, mid)
    eye_w = jnp.eye(W, dtype=f32)
    p["wr_big"] = jnp.einsum("xy,cm->xcmy", eye_w, wr).reshape(W * C, mid * W)
    p["br_big"] = jnp.repeat(br.reshape(-1), W)[None, :]                               # (1, mid*W)

    # Tsum[x*C+c, c'] = (c == c');  TsumT tiles channels back to (.., W*C);
    # E[x, x'*C + c] = (x == x') expands sp along lanes.
    p["tsum"] = jnp.tile(jnp.eye(C, dtype=f32), (W, 1))                                # (W*C, C)
    p["tsumt"] = p["tsum"].T                                                           # (C, W*C)
    p["e"] = jnp.kron(eye_w, jnp.ones((1, C), f32))                                    # (W, W*C)

    # Dilated convs: BN folded into weights/offsets, flattened for SMEM.
    for i in (1, 2):
        w = params[f"sg_wd{i}"] * params[f"sg_sd{i}"].reshape(1, 1, 1, -1)    # scale out-channel
        p[f"sg_wd{i}"] = w.reshape(-1).astype(f32)                            # (9*mid*mid,)
        off = params[f"sg_bd{i}"] * params[f"sg_sd{i}"] + params[f"sg_od{i}"]
        p[f"sg_od{i}"] = off.reshape(-1).astype(f32)                          # (mid,)
    p["sg_wf"] = jnp.concatenate(
        [params["sg_wf"].reshape(-1), params["sg_bf"].reshape(-1)]).astype(f32)  # (mid+1,)
    return p


def bam_forward(x_nchw, params):
    B, C, H, W = x_nchw.shape
    fp = _prepare(params, W)
    mid = fp["cg_w1"].shape[1]
    WC = W * C
    P = DIL
    S = W + 2 * P

    # Batch block size: large enough to amortize the ~0.35us per-grid-step cost
    # (target >= ~2 MiB moved per step when B allows), capped for VMEM
    # (double-buffered in+out must stay well under v7x's 64 MiB physical VMEM)
    # and for unroll size; must divide B.
    per_batch = H * WC * 4
    bb = min(B, 8)
    bb = min(bb, max(1, (2 * 1024 * 1024) // per_batch))
    bb = min(bb, max(1, (40 * 1024 * 1024) // (4 * per_batch)))
    bb = max(bb, 1)
    while B % bb:
        bb -= 1

    # Per-batch mean-pool matrix (1/(H*W) folded in): pool[b, b*H + y] = 1/(H*W)
    pool = jnp.kron(jnp.eye(bb, dtype=jnp.float32),
                    jnp.full((1, H), 1.0 / float(H * W), jnp.float32))       # (bb, bb*H)

    # Lane-dense NHWC presented as (B, H, W*C); W*C should be a multiple of 128
    # for unmasked full-lane stores (true here: 16*32 = 512).
    x = jnp.transpose(x_nchw, (0, 2, 3, 1)).reshape(B, H, WC).astype(jnp.float32)

    vmem = functools.partial(pl.BlockSpec, memory_space=pltpu.MemorySpace.VMEM)
    smem = functools.partial(pl.BlockSpec, memory_space=pltpu.MemorySpace.SMEM)

    in_specs = [
        pl.BlockSpec((bb, H, WC), lambda g: (g, 0, 0)),   # x: bb batches per grid step
        vmem(), vmem(), vmem(), vmem(),                   # channel-gate MLP
        vmem(), vmem(),                                   # wr_big, br_big
        vmem(),                                           # pool
        vmem(), vmem(), vmem(),                           # tsum, tsumt, e
        smem(), smem(), smem(), smem(), smem(),           # dilated-conv scalar params
    ]

    out = pl.pallas_call(
        _bam_kernel,
        grid=(B // bb,),
        in_specs=in_specs,
        out_specs=pl.BlockSpec((bb, H, WC), lambda g: (g, 0, 0)),
        out_shape=jax.ShapeDtypeStruct((B, H, WC), jnp.float32),
        scratch_shapes=[pltpu.VMEM((mid, H + 2 * P, bb * S + 2 * P), jnp.float32)],
        compiler_params=pltpu.CompilerParams(
            dimension_semantics=("parallel",),
            vmem_limit_bytes=48 * 1024 * 1024),
    )(x,
      fp["cg_w1"], fp["cg_b1"], fp["cg_w2"], fp["cg_b2"],
      fp["wr_big"], fp["br_big"], pool,
      fp["tsum"], fp["tsumt"], fp["e"],
      fp["sg_wd1"], fp["sg_od1"], fp["sg_wd2"], fp["sg_od2"], fp["sg_wf"])

    return jnp.transpose(out.reshape(B, H, W, C), (0, 3, 1, 2))


def init_params(key, C, reduction_ratio=16):
    """Deterministic synthetic parameters (matching BAM(gate_channel=C) shapes)."""
    mid = C // reduction_ratio
    keys = iter(jax.random.split(key, 40))

    def rn(shape, scale=0.2):
        return (scale * jax.random.normal(next(keys), shape)).astype(jnp.float32)

    def bn(n):
        # eval-mode BatchNorm folded into scale/offset
        gamma = 1.0 + 0.1 * jax.random.normal(next(keys), (1, n))
        beta = 0.1 * jax.random.normal(next(keys), (1, n))
        mean = 0.1 * jax.random.normal(next(keys), (1, n))
        var = 0.5 + 0.5 * jnp.abs(jax.random.normal(next(keys), (1, n)))
        scale = gamma / jnp.sqrt(var + 1e-5)
        return scale.astype(jnp.float32), (beta - mean * scale).astype(jnp.float32)

    p = {}
    # ChannelGate: Linear(C->mid), BN1d(mid), ReLU, Linear(mid->C)
    p["cg_w1"], p["cg_b1"] = rn((C, mid)), rn((1, mid))
    p["cg_s1"], p["cg_o1"] = bn(mid)
    p["cg_w2"], p["cg_b2"] = rn((mid, C)), rn((1, C))
    # SpatialGate: 1x1 reduce, BN, ReLU, 2x [3x3 dil=4, BN, ReLU], 1x1 -> 1
    p["sg_wr"], p["sg_br"] = rn((C, mid)), rn((1, mid))
    p["sg_sr"], p["sg_or"] = bn(mid)
    p["sg_wd1"], p["sg_bd1"] = rn((3, 3, mid, mid)), rn((1, mid))
    p["sg_sd1"], p["sg_od1"] = bn(mid)
    p["sg_wd2"], p["sg_bd2"] = rn((3, 3, mid, mid)), rn((1, mid))
    p["sg_sd2"], p["sg_od2"] = bn(mid)
    p["sg_wf"], p["sg_bf"] = rn((mid, 1)), rn((1, 1))
    return p


def bam_reference(x_nchw, params):
    """Pure-JAX (XLA) reference mirroring the PyTorch BAM forward (eval-mode BN)."""
    B, C, H, W = x_nchw.shape
    mid = params["cg_w1"].shape[1]

    # channel gate
    avg = jnp.mean(x_nchw, axis=(2, 3))                        # (B, C)
    h = avg @ params["cg_w1"] + params["cg_b1"]
    h = jnp.maximum(h * params["cg_s1"] + params["cg_o1"], 0.0)
    ch = (h @ params["cg_w2"] + params["cg_b2"])[:, :, None, None]  # (B, C, 1, 1)

    # spatial gate
    def conv(x, w, b, dil=1, pad=0):
        y = lax.conv_general_dilated(
            x, w, window_strides=(1, 1),
            padding=[(pad, pad), (pad, pad)],
            rhs_dilation=(dil, dil),
            dimension_numbers=("NCHW", "HWIO", "NCHW"))
        return y + b.reshape(1, -1, 1, 1)

    r = conv(x_nchw, params["sg_wr"].reshape(1, 1, C, mid), params["sg_br"])
    r = jnp.maximum(r * params["sg_sr"].reshape(1, mid, 1, 1)
                    + params["sg_or"].reshape(1, mid, 1, 1), 0.0)
    d = r
    for i in (1, 2):
        d = conv(d, params[f"sg_wd{i}"], params[f"sg_bd{i}"], dil=4, pad=4)
        d = jnp.maximum(d * params[f"sg_sd{i}"].reshape(1, mid, 1, 1)
                        + params[f"sg_od{i}"].reshape(1, mid, 1, 1), 0.0)
    sp = conv(d, params["sg_wf"].reshape(1, 1, mid, 1), params["sg_bf"])  # (B,1,H,W)

    att = 1.0 + jax.nn.sigmoid(ch * sp)
    return att * x_nchw


# TODO(synk): BatchNorm is reproduced in eval mode (folded running stats);
# training-mode batch-statistic updates are not modeled.

if __name__ == "__main__":
    B, C, H, W = 2, 32, 16, 16        # gate_channel=32 -> reduction gives mid=2
    key = jax.random.PRNGKey(0)
    kx, kp = jax.random.split(key)
    x = jax.random.normal(kx, (B, C, H, W), dtype=jnp.float32)
    params = init_params(kp, C)

    out = jax.block_until_ready(bam_forward(x, params))

    ref = bam_reference(x, params)
    err = float(jnp.max(jnp.abs(out - ref)))
    assert out.shape == (B, C, H, W)
    assert err < 2e-3, f"max abs error too large: {err}"
    print("KERNEL_OK")
</pallas_src>

<mosaic_0001>
module attributes {stable_mosaic.version = 11 : i64} {
  func.func @_bam_kernel(%arg0: i32, %arg1: memref<2x16x512xf32, #tpu.memory_space<vmem>>, %arg2: memref<32x2xf32, #tpu.memory_space<vmem>>, %arg3: memref<1x2xf32, #tpu.memory_space<vmem>>, %arg4: memref<2x32xf32, #tpu.memory_space<vmem>>, %arg5: memref<1x32xf32, #tpu.memory_space<vmem>>, %arg6: memref<512x32xf32, #tpu.memory_space<vmem>>, %arg7: memref<1x32xf32, #tpu.memory_space<vmem>>, %arg8: memref<2x32xf32, #tpu.memory_space<vmem>>, %arg9: memref<512x32xf32, #tpu.memory_space<vmem>>, %arg10: memref<32x512xf32, #tpu.memory_space<vmem>>, %arg11: memref<16x512xf32, #tpu.memory_space<vmem>>, %arg12: memref<36xf32, #tpu.memory_space<smem>>, %arg13: memref<2xf32, #tpu.memory_space<smem>>, %arg14: memref<36xf32, #tpu.memory_space<smem>>, %arg15: memref<2xf32, #tpu.memory_space<smem>>, %arg16: memref<3xf32, #tpu.memory_space<smem>>, %arg17: memref<2x16x512xf32, #tpu.memory_space<vmem>>, %arg18: memref<2x24x56xf32, #tpu.memory_space<vmem>>) attributes {dimension_semantics = [#tpu.dimension_semantics<parallel>], iteration_bounds = array<i64: 1>, scalar_prefetch = 0 : i64, scratch_operands = 1 : i64, tpu.core_type = #tpu.core_type<tc>, window_params = [{transform_indices = @transform_0, window_bounds = array<i64: 2, 16, 512>}, {pipeline_mode = #tpu.pipeline_mode<synchronous>, transform_indices = @transform_1, window_bounds = array<i64: 32, 2>}, {pipeline_mode = #tpu.pipeline_mode<synchronous>, transform_indices = @transform_2, window_bounds = array<i64: 1, 2>}, {pipeline_mode = #tpu.pipeline_mode<synchronous>, transform_indices = @transform_3, window_bounds = array<i64: 2, 32>}, {pipeline_mode = #tpu.pipeline_mode<synchronous>, transform_indices = @transform_4, window_bounds = array<i64: 1, 32>}, {pipeline_mode = #tpu.pipeline_mode<synchronous>, transform_indices = @transform_5, window_bounds = array<i64: 512, 32>}, {pipeline_mode = #tpu.pipeline_mode<synchronous>, transform_indices = @transform_6, window_bounds = array<i64: 1, 32>}, {pipeline_mode = #tpu.pipeline_mode<synchronous>, transform_indices = @transform_7, window_bounds = array<i64: 2, 32>}, {pipeline_mode = #tpu.pipeline_mode<synchronous>, transform_indices = @transform_8, window_bounds = array<i64: 512, 32>}, {pipeline_mode = #tpu.pipeline_mode<synchronous>, transform_indices = @transform_9, window_bounds = array<i64: 32, 512>}, {pipeline_mode = #tpu.pipeline_mode<synchronous>, transform_indices = @transform_10, window_bounds = array<i64: 16, 512>}, {transform_indices = @transform_11, window_bounds = array<i64: 36>}, {transform_indices = @transform_12, window_bounds = array<i64: 2>}, {transform_indices = @transform_13, window_bounds = array<i64: 36>}, {transform_indices = @transform_14, window_bounds = array<i64: 2>}, {transform_indices = @transform_15, window_bounds = array<i64: 3>}, {transform_indices = @transform_16, window_bounds = array<i64: 2, 16, 512>}]} {
    %c0 = arith.constant 0 : index
    %c0_0 = arith.constant 0 : index
    %c0_1 = arith.constant 0 : index
    %0 = vector.load %arg1[%c0, %c0_0, %c0_1] : memref<2x16x512xf32, #tpu.memory_space<vmem>>, vector<2x16x512xf32>
    %1 = vector.shape_cast %0 : vector<2x16x512xf32> to vector<32x512xf32>
    %c0_2 = arith.constant 0 : index
    %c0_3 = arith.constant 0 : index
    %2 = vector.load %arg8[%c0_2, %c0_3] : memref<2x32xf32, #tpu.memory_space<vmem>>, vector<2x32xf32>
    %cst = arith.constant dense<0.000000e+00> : vector<2x512xf32>
    %3 = tpu.matmul %2, %1, %cst {dimension_numbers = #tpu.dot_dimension_numbers<[1], [0], [0], [1], [0, 0, 1, 1], [], []>} : vector<2x32xf32>, vector<32x512xf32>, vector<2x512xf32> -> vector<2x512xf32>
    %c0_4 = arith.constant 0 : index
    %c0_5 = arith.constant 0 : index
    %4 = vector.load %arg9[%c0_4, %c0_5] : memref<512x32xf32, #tpu.memory_space<vmem>>, vector<512x32xf32>
    %cst_6 = arith.constant dense<0.000000e+00> : vector<2x32xf32>
    %5 = tpu.matmul %3, %4, %cst_6 {dimension_numbers = #tpu.dot_dimension_numbers<[1], [0], [0], [1], [0, 0, 1, 1], [], []>} : vector<2x512xf32>, vector<512x32xf32>, vector<2x32xf32> -> vector<2x32xf32>
    %c0_7 = arith.constant 0 : index
    %c0_8 = arith.constant 0 : index
    %6 = vector.load %arg2[%c0_7, %c0_8] : memref<32x2xf32, #tpu.memory_space<vmem>>, vector<32x2xf32>
    %cst_9 = arith.constant dense<0.000000e+00> : vector<2x2xf32>
    %7 = tpu.matmul %5, %6, %cst_9 {dimension_numbers = #tpu.dot_dimension_numbers<[1], [0], [0], [1], [0, 0, 1, 1], [], []>} : vector<2x32xf32>, vector<32x2xf32>, vector<2x2xf32> -> vector<2x2xf32>
    %c0_10 = arith.constant 0 : index
    %c0_11 = arith.constant 0 : index
    %8 = vector.load %arg3[%c0_10, %c0_11] : memref<1x2xf32, #tpu.memory_space<vmem>>, vector<1x2xf32>
    %9 = vector.broadcast %8 : vector<1x2xf32> to vector<2x2xf32>
    %10 = arith.addf %7, %9 : vector<2x2xf32>
    %cst_12 = arith.constant 0.000000e+00 : f32
    %11 = vector.broadcast %cst_12 : f32 to vector<2x2xf32>
    %12 = arith.maximumf %10, %11 : vector<2x2xf32>
    %c0_13 = arith.constant 0 : index
    %c0_14 = arith.constant 0 : index
    %13 = vector.load %arg4[%c0_13, %c0_14] : memref<2x32xf32, #tpu.memory_space<vmem>>, vector<2x32xf32>
    %cst_15 = arith.constant dense<0.000000e+00> : vector<2x32xf32>
    %14 = tpu.matmul %12, %13, %cst_15 {dimension_numbers = #tpu.dot_dimension_numbers<[1], [0], [0], [1], [0, 0, 1, 1], [], []>} : vector<2x2xf32>, vector<2x32xf32>, vector<2x32xf32> -> vector<2x32xf32>
    %c0_16 = arith.constant 0 : index
    %c0_17 = arith.constant 0 : index
    %15 = vector.load %arg5[%c0_16, %c0_17] : memref<1x32xf32, #tpu.memory_space<vmem>>, vector<1x32xf32>
    %16 = vector.broadcast %15 : vector<1x32xf32> to vector<2x32xf32>
    %17 = arith.addf %14, %16 : vector<2x32xf32>
    %c0_18 = arith.constant 0 : index
    %c0_19 = arith.constant 0 : index
    %18 = vector.load %arg10[%c0_18, %c0_19] : memref<32x512xf32, #tpu.memory_space<vmem>>, vector<32x512xf32>
    %cst_20 = arith.constant dense<0.000000e+00> : vector<2x512xf32>
    %19 = tpu.matmul %17, %18, %cst_20 {dimension_numbers = #tpu.dot_dimension_numbers<[1], [0], [0], [1], [0, 0, 1, 1], [], []>} : vector<2x32xf32>, vector<32x512xf32>, vector<2x512xf32> -> vector<2x512xf32>
    %c0_21 = arith.constant 0 : index
    %c0_22 = arith.constant 0 : index
    %20 = vector.load %arg6[%c0_21, %c0_22] : memref<512x32xf32, #tpu.memory_space<vmem>>, vector<512x32xf32>
    %cst_23 = arith.constant dense<0.000000e+00> : vector<32x32xf32>
    %21 = tpu.matmul %1, %20, %cst_23 {dimension_numbers = #tpu.dot_dimension_numbers<[1], [0], [0], [1], [0, 0, 1, 1], [], []>} : vector<32x512xf32>, vector<512x32xf32>, vector<32x32xf32> -> vector<32x32xf32>
    %c0_24 = arith.constant 0 : index
    %c0_25 = arith.constant 0 : index
    %22 = vector.load %arg7[%c0_24, %c0_25] : memref<1x32xf32, #tpu.memory_space<vmem>>, vector<1x32xf32>
    %23 = vector.broadcast %22 : vector<1x32xf32> to vector<32x32xf32>
    %24 = arith.addf %21, %23 : vector<32x32xf32>
    %cst_26 = arith.constant 0.000000e+00 : f32
    %25 = vector.broadcast %cst_26 : f32 to vector<32x32xf32>
    %26 = arith.maximumf %24, %25 : vector<32x32xf32>
    %cst_27 = arith.constant 0.000000e+00 : f32
    %27 = vector.broadcast %cst_27 : f32 to vector<2x24x56xf32>
    %c0_28 = arith.constant 0 : index
    %c0_29 = arith.constant 0 : index
    %c0_30 = arith.constant 0 : index
    %28 = vector.load %arg18[%c0_28, %c0_29, %c0_30] : memref<2x24x56xf32, #tpu.memory_space<vmem>>, vector<2x24x56xf32>
    tpu.vector_store %arg18[%c0_28, %c0_29, %c0_30], %27 {strides = array<i32>} : memref<2x24x56xf32, #tpu.memory_space<vmem>>, vector<2x24x56xf32>,
    %29 = vector.extract_strided_slice %26 {offsets = [0, 0], sizes = [16, 16], strides = [1, 1]} : vector<32x32xf32> to vector<16x16xf32>
    %c0_31 = arith.constant 0 : index
    %c4 = arith.constant 4 : index
    %c4_32 = arith.constant 4 : index
    %30 = vector.load %arg18[%c0_31, %c4, %c4_32] : memref<2x24x56xf32, #tpu.memory_space<vmem>>, vector<1x16x16xf32>
    %31 = vector.shape_cast %30 : vector<1x16x16xf32> to vector<16x16xf32>
    %32 = vector.shape_cast %29 : vector<16x16xf32> to vector<1x16x16xf32>
    tpu.vector_store %arg18[%c0_31, %c4, %c4_32], %32 {strides = array<i32>} : memref<2x24x56xf32, #tpu.memory_space<vmem>>, vector<1x16x16xf32>,
    %33 = vector.extract_strided_slice %26 {offsets = [0, 16], sizes = [16, 16], strides = [1, 1]} : vector<32x32xf32> to vector<16x16xf32>
    %c1 = arith.constant 1 : index
    %c4_33 = arith.constant 4 : index
    %c4_34 = arith.constant 4 : index
    %34 = vector.load %arg18[%c1, %c4_33, %c4_34] : memref<2x24x56xf32, #tpu.memory_space<vmem>>, vector<1x16x16xf32>
    %35 = vector.shape_cast %34 : vector<1x16x16xf32> to vector<16x16xf32>
    %36 = vector.shape_cast %33 : vector<16x16xf32> to vector<1x16x16xf32>
    tpu.vector_store %arg18[%c1, %c4_33, %c4_34], %36 {strides = array<i32>} : memref<2x24x56xf32, #tpu.memory_space<vmem>>, vector<1x16x16xf32>,
    %37 = vector.extract_strided_slice %26 {offsets = [16, 0], sizes = [16, 16], strides = [1, 1]} : vector<32x32xf32> to vector<16x16xf32>
    %c0_35 = arith.constant 0 : index
    %c4_36 = arith.constant 4 : index
    %c28 = arith.constant 28 : index
    %38 = vector.load %arg18[%c0_35, %c4_36, %c28] : memref<2x24x56xf32, #tpu.memory_space<vmem>>, vector<1x16x16xf32>
    %39 = vector.shape_cast %38 : vector<1x16x16xf32> to vector<16x16xf32>
    %40 = vector.shape_cast %37 : vector<16x16xf32> to vector<1x16x16xf32>
    tpu.vector_store %arg18[%c0_35, %c4_36, %c28], %40 {strides = array<i32>} : memref<2x24x56xf32, #tpu.memory_space<vmem>>, vector<1x16x16xf32>,
    %41 = vector.extract_strided_slice %26 {offsets = [16, 16], sizes = [16, 16], strides = [1, 1]} : vector<32x32xf32> to vector<16x16xf32>
    %c1_37 = arith.constant 1 : index
    %c4_38 = arith.constant 4 : index
    %c28_39 = arith.constant 28 : index
    %42 = vector.load %arg18[%c1_37, %c4_38, %c28_39] : memref<2x24x56xf32, #tpu.memory_space<vmem>>, vector<1x16x16xf32>
    %43 = vector.shape_cast %42 : vector<1x16x16xf32> to vector<16x16xf32>
    %44 = vector.shape_cast %41 : vector<16x16xf32> to vector<1x16x16xf32>
    tpu.vector_store %arg18[%c1_37, %c4_38, %c28_39], %44 {strides = array<i32>} : memref<2x24x56xf32, #tpu.memory_space<vmem>>, vector<1x16x16xf32>,
    %cst_40 = arith.constant 0.000000e+00 : f32
    %45 = vector.broadcast %cst_40 : f32 to vector<16x48xf32>
    %cst_41 = arith.constant 0.000000e+00 : f32
    %46 = vector.broadcast %cst_41 : f32 to vector<16x48xf32>
    %c0_42 = arith.constant 0 : index
    %c0_43 = arith.constant 0 : index
    %c0_44 = arith.constant 0 : index
    %47 = vector.load %arg18[%c0_42, %c0_43, %c0_44] : memref<2x24x56xf32, #tpu.memory_space<vmem>>, vector<1x16x48xf32>
    %48 = vector.shape_cast %47 : vector<1x16x48xf32> to vector<16x48xf32>
    %c0_45 = arith.constant 0 : index
    %49 = memref.load %arg12[%c0_45] : memref<36xf32, #tpu.memory_space<smem>>
    %50 = vector.broadcast %49 : f32 to vector<16x48xf32>
    %51 = arith.mulf %50, %48 : vector<16x48xf32>
    %52 = arith.addf %45, %51 : vector<16x48xf32>
    %c1_46 = arith.constant 1 : index
    %53 = memref.load %arg12[%c1_46] : memref<36xf32, #tpu.memory_space<smem>>
    %54 = vector.broadcast %53 : f32 to vector<16x48xf32>
    %55 = arith.mulf %54, %48 : vector<16x48xf32>
    %56 = arith.addf %46, %55 : vector<16x48xf32>
    %c0_47 = arith.constant 0 : index
    %c0_48 = arith.constant 0 : index
    %c4_49 = arith.constant 4 : index
    %57 = vector.load %arg18[%c0_47, %c0_48, %c4_49] : memref<2x24x56xf32, #tpu.memory_space<vmem>>, vector<1x16x48xf32>
    %58 = vector.shape_cast %57 : vector<1x16x48xf32> to vector<16x48xf32>
    %c4_50 = arith.constant 4 : index
    %59 = memref.load %arg12[%c4_50] : memref<36xf32, #tpu.memory_space<smem>>
    %60 = vector.broadcast %59 : f32 to vector<16x48xf32>
    %61 = arith.mulf %60, %58 : vector<16x48xf32>
    %62 = arith.addf %52, %61 : vector<16x48xf32>
    %c5 = arith.constant 5 : index
    %63 = memref.load %arg12[%c5] : memref<36xf32, #tpu.memory_space<smem>>
    %64 = vector.broadcast %63 : f32 to vector<16x48xf32>
    %65 = arith.mulf %64, %58 : vector<16x48xf32>
    %66 = arith.addf %56, %65 : vector<16x48xf32>
    %c0_51 = arith.constant 0 : index
    %c0_52 = arith.constant 0 : index
    %c8 = arith.constant 8 : index
    %67 = vector.load %arg18[%c0_51, %c0_52, %c8] : memref<2x24x56xf32, #tpu.memory_space<vmem>>, vector<1x16x48xf32>
    %68 = vector.shape_cast %67 : vector<1x16x48xf32> to vector<16x48xf32>
    %c8_53 = arith.constant 8 : index
    %69 = memref.load %arg12[%c8_53] : memref<36xf32, #tpu.memory_space<smem>>
    %70 = vector.broadcast %69 : f32 to vector<16x48xf32>
    %71 = arith.mulf %70, %68 : vector<16x48xf32>
    %72 = arith.addf %62, %71 : vector<16x48xf32>
    %c9 = arith.constant 9 : index
    %73 = memref.load %arg12[%c9] : memref<36xf32, #tpu.memory_space<smem>>
    %74 = vector.broadcast %73 : f32 to vector<16x48xf32>
    %75 = arith.mulf %74, %68 : vector<16x48xf32>
    %76 = arith.addf %66, %75 : vector<16x48xf32>
    %c0_54 = arith.constant 0 : index
    %c4_55 = arith.constant 4 : index
    %c0_56 = arith.constant 0 : index
    %77 = vector.load %arg18[%c0_54, %c4_55, %c0_56] : memref<2x24x56xf32, #tpu.memory_space<vmem>>, vector<1x16x48xf32>
    %78 = vector.shape_cast %77 : vector<1x16x48xf32> to vector<16x48xf32>
    %c12 = arith.constant 12 : index
    %79 = memref.load %arg12[%c12] : memref<36xf32, #tpu.memory_space<smem>>
    %80 = vector.broadcast %79 : f32 to vector<16x48xf32>
    %81 = arith.mulf %80, %78 : vector<16x48xf32>
    %82 = arith.addf %72, %81 : vector<16x48xf32>
    %c13 = arith.constant 13 : index
    %83 = memref.load %arg12[%c13] : memref<36xf32, #tpu.memory_space<smem>>
    %84 = vector.broadcast %83 : f32 to vector<16x48xf32>
    %85 = arith.mulf %84, %78 : vector<16x48xf32>
    %86 = arith.addf %76, %85 : vector<16x48xf32>
    %c0_57 = arith.constant 0 : index
    %c4_58 = arith.constant 4 : index
    %c4_59 = arith.constant 4 : index
    %87 = vector.load %arg18[%c0_57, %c4_58, %c4_59] : memref<2x24x56xf32, #tpu.memory_space<vmem>>, vector<1x16x48xf32>
    %88 = vector.shape_cast %87 : vector<1x16x48xf32> to vector<16x48xf32>
    %c16 = arith.constant 16 : index
    %89 = memref.load %arg12[%c16] : memref<36xf32, #tpu.memory_space<smem>>
    %90 = vector.broadcast %89 : f32 to vector<16x48xf32>
    %91 = arith.mulf %90, %88 : vector<16x48xf32>
    %92 = arith.addf %82, %91 : vector<16x48xf32>
    %c17 = arith.constant 17 : index
    %93 = memref.load %arg12[%c17] : memref<36xf32, #tpu.memory_space<smem>>
    %94 = vector.broadcast %93 : f32 to vector<16x48xf32>
    %95 = arith.mulf %94, %88 : vector<16x48xf32>
    %96 = arith.addf %86, %95 : vector<16x48xf32>
    %c0_60 = arith.constant 0 : index
    %c4_61 = arith.constant 4 : index
    %c8_62 = arith.constant 8 : index
    %97 = vector.load %arg18[%c0_60, %c4_61, %c8_62] : memref<2x24x56xf32, #tpu.memory_space<vmem>>, vector<1x16x48xf32>
    %98 = vector.shape_cast %97 : vector<1x16x48xf32> to vector<16x48xf32>
    %c20 = arith.constant 20 : index
    %99 = memref.load %arg12[%c20] : memref<36xf32, #tpu.memory_space<smem>>
    %100 = vector.broadcast %99 : f32 to vector<16x48xf32>
    %101 = arith.mulf %100, %98 : vector<16x48xf32>
    %102 = arith.addf %92, %101 : vector<16x48xf32>
    %c21 = arith.constant 21 : index
    %103 = memref.load %arg12[%c21] : memref<36xf32, #tpu.memory_space<smem>>
    %104 = vector.broadcast %103 : f32 to vector<16x48xf32>
    %105 = arith.mulf %104, %98 : vector<16x48xf32>
    %106 = arith.addf %96, %105 : vector<16x48xf32>
    %c0_63 = arith.constant 0 : index
    %c8_64 = arith.constant 8 : index
    %c0_65 = arith.constant 0 : index
    %107 = vector.load %arg18[%c0_63, %c8_64, %c0_65] : memref<2x24x56xf32, #tpu.memory_space<vmem>>, vector<1x16x48xf32>
    %108 = vector.shape_cast %107 : vector<1x16x48xf32> to vector<16x48xf32>
    %c24 = arith.constant 24 : index
    %109 = memref.load %arg12[%c24] : memref<36xf32, #tpu.memory_space<smem>>
    %110 = vector.broadcast %109 : f32 to vector<16x48xf32>
    %111 = arith.mulf %110, %108 : vector<16x48xf32>
    %112 = arith.addf %102, %111 : vector<16x48xf32>
    %c25 = arith.constant 25 : index
    %113 = memref.load %arg12[%c25] : memref<36xf32, #tpu.memory_space<smem>>
    %114 = vector.broadcast %113 : f32 to vector<16x48xf32>
    %115 = arith.mulf %114, %108 : vector<16x48xf32>
    %116 = arith.addf %106, %115 : vector<16x48xf32>
    %c0_66 = arith.constant 0 : index
    %c8_67 = arith.constant 8 : index
    %c4_68 = arith.constant 4 : index
    %117 = vector.load %arg18[%c0_66, %c8_67, %c4_68] : memref<2x24x56xf32, #tpu.memory_space<vmem>>, vector<1x16x48xf32>
    %118 = vector.shape_cast %117 : vector<1x16x48xf32> to vector<16x48xf32>
    %c28_69 = arith.constant 28 : index
    %119 = memref.load %arg12[%c28_69] : memref<36xf32, #tpu.memory_space<smem>>
    %120 = vector.broadcast %119 : f32 to vector<16x48xf32>
    %121 = arith.mulf %120, %118 : vector<16x48xf32>
    %122 = arith.addf %112, %121 : vector<16x48xf32>
    %c29 = arith.constant 29 : index
    %123 = memref.load %arg12[%c29] : memref<36xf32, #tpu.memory_space<smem>>
    %124 = vector.broadcast %123 : f32 to vector<16x48xf32>
    %125 = arith.mulf %124, %118 : vector<16x48xf32>
    %126 = arith.addf %116, %125 : vector<16x48xf32>
    %c0_70 = arith.constant 0 : index
    %c8_71 = arith.constant 8 : index
    %c8_72 = arith.constant 8 : index
    %127 = vector.load %arg18[%c0_70, %c8_71, %c8_72] : memref<2x24x56xf32, #tpu.memory_space<vmem>>, vector<1x16x48xf32>
    %128 = vector.shape_cast %127 : vector<1x16x48xf32> to vector<16x48xf32>
    %c32 = arith.constant 32 : index
    %129 = memref.load %arg12[%c32] : memref<36xf32, #tpu.memory_space<smem>>
    %130 = vector.broadcast %129 : f32 to vector<16x48xf32>
    %131 = arith.mulf %130, %128 : vector<16x48xf32>
    %132 = arith.addf %122, %131 : vector<16x48xf32>
    %c33 = arith.constant 33 : index
    %133 = memref.load %arg12[%c33] : memref<36xf32, #tpu.memory_space<smem>>
    %134 = vector.broadcast %133 : f32 to vector<16x48xf32>
    %135 = arith.mulf %134, %128 : vector<16x48xf32>
    %136 = arith.addf %126, %135 : vector<16x48xf32>
    %c1_73 = arith.constant 1 : index
    %c0_74 = arith.constant 0 : index
    %c0_75 = arith.constant 0 : index
    %137 = vector.load %arg18[%c1_73, %c0_74, %c0_75] : memref<2x24x56xf32, #tpu.memory_space<vmem>>, vector<1x16x48xf32>
    %138 = vector.shape_cast %137 : vector<1x16x48xf32> to vector<16x48xf32>
    %c2 = arith.constant 2 : index
    %139 = memref.load %arg12[%c2] : memref<36xf32, #tpu.memory_space<smem>>
    %140 = vector.broadcast %139 : f32 to vector<16x48xf32>
    %141 = arith.mulf %140, %138 : vector<16x48xf32>
    %142 = arith.addf %132, %141 : vector<16x48xf32>
    %c3 = arith.constant 3 : index
    %143 = memref.load %arg12[%c3] : memref<36xf32, #tpu.memory_space<smem>>
    %144 = vector.broadcast %143 : f32 to vector<16x48xf32>
    %145 = arith.mulf %144, %138 : vector<16x48xf32>
    %146 = arith.addf %136, %145 : vector<16x48xf32>
    %c1_76 = arith.constant 1 : index
    %c0_77 = arith.constant 0 : index
    %c4_78 = arith.constant 4 : index
    %147 = vector.load %arg18[%c1_76, %c0_77, %c4_78] : memref<2x24x56xf32, #tpu.memory_space<vmem>>, vector<1x16x48xf32>
    %148 = vector.shape_cast %147 : vector<1x16x48xf32> to vector<16x48xf32>
    %c6 = arith.constant 6 : index
    %149 = memref.load %arg12[%c6] : memref<36xf32, #tpu.memory_space<smem>>
    %150 = vector.broadcast %149 : f32 to vector<16x48xf32>
    %151 = arith.mulf %150, %148 : vector<16x48xf32>
    %152 = arith.addf %142, %151 : vector<16x48xf32>
    %c7 = arith.constant 7 : index
    %153 = memref.load %arg12[%c7] : memref<36xf32, #tpu.memory_space<smem>>
    %154 = vector.broadcast %153 : f32 to vector<16x48xf32>
    %155 = arith.mulf %154, %148 : vector<16x48xf32>
    %156 = arith.addf %146, %155 : vector<16x48xf32>
    %c1_79 = arith.constant 1 : index
    %c0_80 = arith.constant 0 : index
    %c8_81 = arith.constant 8 : index
    %157 = vector.load %arg18[%c1_79, %c0_80, %c8_81] : memref<2x24x56xf32, #tpu.memory_space<vmem>>, vector<1x16x48xf32>
    %158 = vector.shape_cast %157 : vector<1x16x48xf32> to vector<16x48xf32>
    %c10 = arith.constant 10 : index
    %159 = memref.load %arg12[%c10] : memref<36xf32, #tpu.memory_space<smem>>
    %160 = vector.broadcast %159 : f32 to vector<16x48xf32>
    %161 = arith.mulf %160, %158 : vector<16x48xf32>
    %162 = arith.addf %152, %161 : vector<16x48xf32>
    %c11 = arith.constant 11 : index
    %163 = memref.load %arg12[%c11] : memref<36xf32, #tpu.memory_space<smem>>
    %164 = vector.broadcast %163 : f32 to vector<16x48xf32>
    %165 = arith.mulf %164, %158 : vector<16x48xf32>
    %166 = arith.addf %156, %165 : vector<16x48xf32>
    %c1_82 = arith.constant 1 : index
    %c4_83 = arith.constant 4 : index
    %c0_84 = arith.constant 0 : index
    %167 = vector.load %arg18[%c1_82, %c4_83, %c0_84] : memref<2x24x56xf32, #tpu.memory_space<vmem>>, vector<1x16x48xf32>
    %168 = vector.shape_cast %167 : vector<1x16x48xf32> to vector<16x48xf32>
    %c14 = arith.constant 14 : index
    %169 = memref.load %arg12[%c14] : memref<36xf32, #tpu.memory_space<smem>>
    %170 = vector.broadcast %169 : f32 to vector<16x48xf32>
    %171 = arith.mulf %170, %168 : vector<16x48xf32>
    %172 = arith.addf %162, %171 : vector<16x48xf32>
    %c15 = arith.constant 15 : index
    %173 = memref.load %arg12[%c15] : memref<36xf32, #tpu.memory_space<smem>>
    %174 = vector.broadcast %173 : f32 to vector<16x48xf32>
    %175 = arith.mulf %174, %168 : vector<16x48xf32>
    %176 = arith.addf %166, %175 : vector<16x48xf32>
    %c1_85 = arith.constant 1 : index
    %c4_86 = arith.constant 4 : index
    %c4_87 = arith.constant 4 : index
    %177 = vector.load %arg18[%c1_85, %c4_86, %c4_87] : memref<2x24x56xf32, #tpu.memory_space<vmem>>, vector<1x16x48xf32>
    %178 = vector.shape_cast %177 : vector<1x16x48xf32> to vector<16x48xf32>
    %c18 = arith.constant 18 : index
    %179 = memref.load %arg12[%c18] : memref<36xf32, #tpu.memory_space<smem>>
    %180 = vector.broadcast %179 : f32 to vector<16x48xf32>
    %181 = arith.mulf %180, %178 : vector<16x48xf32>
    %182 = arith.addf %172, %181 : vector<16x48xf32>
    %c19 = arith.constant 19 : index
    %183 = memref.load %arg12[%c19] : memref<36xf32, #tpu.memory_space<smem>>
    %184 = vector.broadcast %183 : f32 to vector<16x48xf32>
    %185 = arith.mulf %184, %178 : vector<16x48xf32>
    %186 = arith.addf %176, %185 : vector<16x48xf32>
    %c1_88 = arith.constant 1 : index
    %c4_89 = arith.constant 4 : index
    %c8_90 = arith.constant 8 : index
    %187 = vector.load %arg18[%c1_88, %c4_89, %c8_90] : memref<2x24x56xf32, #tpu.memory_space<vmem>>, vector<1x16x48xf32>
    %188 = vector.shape_cast %187 : vector<1x16x48xf32> to vector<16x48xf32>
    %c22 = arith.constant 22 : index
    %189 = memref.load %arg12[%c22] : memref<36xf32, #tpu.memory_space<smem>>
    %190 = vector.broadcast %189 : f32 to vector<16x48xf32>
    %191 = arith.mulf %190, %188 : vector<16x48xf32>
    %192 = arith.addf %182, %191 : vector<16x48xf32>
    %c23 = arith.constant 23 : index
    %193 = memref.load %arg12[%c23] : memref<36xf32, #tpu.memory_space<smem>>
    %194 = vector.broadcast %193 : f32 to vector<16x48xf32>
    %195 = arith.mulf %194, %188 : vector<16x48xf32>
    %196 = arith.addf %186, %195 : vector<16x48xf32>
    %c1_91 = arith.constant 1 : index
    %c8_92 = arith.constant 8 : index
    %c0_93 = arith.constant 0 : index
    %197 = vector.load %arg18[%c1_91, %c8_92, %c0_93] : memref<2x24x56xf32, #tpu.memory_space<vmem>>, vector<1x16x48xf32>
    %198 = vector.shape_cast %197 : vector<1x16x48xf32> to vector<16x48xf32>
    %c26 = arith.constant 26 : index
    %199 = memref.load %arg12[%c26] : memref<36xf32, #tpu.memory_space<smem>>
    %200 = vector.broadcast %199 : f32 to vector<16x48xf32>
    %201 = arith.mulf %200, %198 : vector<16x48xf32>
    %202 = arith.addf %192, %201 : vector<16x48xf32>
    %c27 = arith.constant 27 : index
    %203 = memref.load %arg12[%c27] : memref<36xf32, #tpu.memory_space<smem>>
    %204 = vector.broadcast %203 : f32 to vector<16x48xf32>
    %205 = arith.mulf %204, %198 : vector<16x48xf32>
    %206 = arith.addf %196, %205 : vector<16x48xf32>
    %c1_94 = arith.constant 1 : index
    %c8_95 = arith.constant 8 : index
    %c4_96 = arith.constant 4 : index
    %207 = vector.load %arg18[%c1_94, %c8_95, %c4_96] : memref<2x24x56xf32, #tpu.memory_space<vmem>>, vector<1x16x48xf32>
    %208 = vector.shape_cast %207 : vector<1x16x48xf32> to vector<16x48xf32>
    %c30 = arith.constant 30 : index
    %209 = memref.load %arg12[%c30] : memref<36xf32, #tpu.memory_space<smem>>
    %210 = vector.broadcast %209 : f32 to vector<16x48xf32>
    %211 = arith.mulf %210, %208 : vector<16x48xf32>
    %212 = arith.addf %202, %211 : vector<16x48xf32>
    %c31 = arith.constant 31 : index
    %213 = memref.load %arg12[%c31] : memref<36xf32, #tpu.memory_space<smem>>
    %214 = vector.broadcast %213 : f32 to vector<16x48xf32>
    %215 = arith.mulf %214, %208 : vector<16x48xf32>
    %216 = arith.addf %206, %215 : vector<16x48xf32>
    %c1_97 = arith.constant 1 : index
    %c8_98 = arith.constant 8 : index
    %c8_99 = arith.constant 8 : index
    %217 = vector.load %arg18[%c1_97, %c8_98, %c8_99] : memref<2x24x56xf32, #tpu.memory_space<vmem>>, vector<1x16x48xf32>
    %218 = vector.shape_cast %217 : vector<1x16x48xf32> to vector<16x48xf32>
    %c34 = arith.constant 34 : index
    %219 = memref.load %arg12[%c34] : memref<36xf32, #tpu.memory_space<smem>>
    %220 = vector.broadcast %219 : f32 to vector<16x48xf32>
    %221 = arith.mulf %220, %218 : vector<16x48xf32>
    %222 = arith.addf %212, %221 : vector<16x48xf32>
    %c35 = arith.constant 35 : index
    %223 = memref.load %arg12[%c35] : memref<36xf32, #tpu.memory_space<smem>>
    %224 = vector.broadcast %223 : f32 to vector<16x48xf32>
    %225 = arith.mulf %224, %218 : vector<16x48xf32>
    %226 = arith.addf %216, %225 : vector<16x48xf32>
    %c0_100 = arith.constant 0 : index
    %227 = memref.load %arg13[%c0_100] : memref<2xf32, #tpu.memory_space<smem>>
    %228 = vector.broadcast %227 : f32 to vector<16x48xf32>
    %229 = arith.addf %222, %228 : vector<16x48xf32>
    %cst_101 = arith.constant 0.000000e+00 : f32
    %230 = vector.broadcast %cst_101 : f32 to vector<16x48xf32>
    %231 = arith.maximumf %229, %230 : vector<16x48xf32>
    %c1_102 = arith.constant 1 : index
    %232 = memref.load %arg13[%c1_102] : memref<2xf32, #tpu.memory_space<smem>>
    %233 = vector.broadcast %232 : f32 to vector<16x48xf32>
    %234 = arith.addf %226, %233 : vector<16x48xf32>
    %cst_103 = arith.constant 0.000000e+00 : f32
    %235 = vector.broadcast %cst_103 : f32 to vector<16x48xf32>
    %236 = arith.maximumf %234, %235 : vector<16x48xf32>
    %237 = vector.extract_strided_slice %231 {offsets = [0, 0], sizes = [16, 16], strides = [1, 1]} : vector<16x48xf32> to vector<16x16xf32>
    %c0_104 = arith.constant 0 : index
    %c4_105 = arith.constant 4 : index
    %c4_106 = arith.constant 4 : index
    %238 = vector.load %arg18[%c0_104, %c4_105, %c4_106] : memref<2x24x56xf32, #tpu.memory_space<vmem>>, vector<1x16x16xf32>
    %239 = vector.shape_cast %238 : vector<1x16x16xf32> to vector<16x16xf32>
    %240 = vector.shape_cast %237 : vector<16x16xf32> to vector<1x16x16xf32>
    tpu.vector_store %arg18[%c0_104, %c4_105, %c4_106], %240 {strides = array<i32>} : memref<2x24x56xf32, #tpu.memory_space<vmem>>, vector<1x16x16xf32>,
    %241 = vector.extract_strided_slice %236 {offsets = [0, 0], sizes = [16, 16], strides = [1, 1]} : vector<16x48xf32> to vector<16x16xf32>
    %c1_107 = arith.constant 1 : index
    %c4_108 = arith.constant 4 : index
    %c4_109 = arith.constant 4 : index
    %242 = vector.load %arg18[%c1_107, %c4_108, %c4_109] : memref<2x24x56xf32, #tpu.memory_space<vmem>>, vector<1x16x16xf32>
    %243 = vector.shape_cast %242 : vector<1x16x16xf32> to vector<16x16xf32>
    %244 = vector.shape_cast %241 : vector<16x16xf32> to vector<1x16x16xf32>
    tpu.vector_store %arg18[%c1_107, %c4_108, %c4_109], %244 {strides = array<i32>} : memref<2x24x56xf32, #tpu.memory_space<vmem>>, vector<1x16x16xf32>,
    %245 = vector.extract_strided_slice %231 {offsets = [0, 24], sizes = [16, 16], strides = [1, 1]} : vector<16x48xf32> to vector<16x16xf32>
    %c0_110 = arith.constant 0 : index
    %c4_111 = arith.constant 4 : index
    %c28_112 = arith.constant 28 : index
    %246 = vector.load %arg18[%c0_110, %c4_111, %c28_112] : memref<2x24x56xf32, #tpu.memory_space<vmem>>, vector<1x16x16xf32>
    %247 = vector.shape_cast %246 : vector<1x16x16xf32> to vector<16x16xf32>
    %248 = vector.shape_cast %245 : vector<16x16xf32> to vector<1x16x16xf32>
    tpu.vector_store %arg18[%c0_110, %c4_111, %c28_112], %248 {strides = array<i32>} : memref<2x24x56xf32, #tpu.memory_space<vmem>>, vector<1x16x16xf32>,
    %249 = vector.extract_strided_slice %236 {offsets = [0, 24], sizes = [16, 16], strides = [1, 1]} : vector<16x48xf32> to vector<16x16xf32>
    %c1_113 = arith.constant 1 : index
    %c4_114 = arith.constant 4 : index
    %c28_115 = arith.constant 28 : index
    %250 = vector.load %arg18[%c1_113, %c4_114, %c28_115] : memref<2x24x56xf32, #tpu.memory_space<vmem>>, vector<1x16x16xf32>
    %251 = vector.shape_cast %250 : vector<1x16x16xf32> to vector<16x16xf32>
    %252 = vector.shape_cast %249 : vector<16x16xf32> to vector<1x16x16xf32>
    tpu.vector_store %arg18[%c1_113, %c4_114, %c28_115], %252 {strides = array<i32>} : memref<2x24x56xf32, #tpu.memory_space<vmem>>, vector<1x16x16xf32>,
    %cst_116 = arith.constant 0.000000e+00 : f32
    %253 = vector.broadcast %cst_116 : f32 to vector<16x48xf32>
    %cst_117 = arith.constant 0.000000e+00 : f32
    %254 = vector.broadcast %cst_117 : f32 to vector<16x48xf32>
    %c0_118 = arith.constant 0 : index
    %c0_119 = arith.constant 0 : index
    %c0_120 = arith.constant 0 : index
    %255 = vector.load %arg18[%c0_118, %c0_119, %c0_120] : memref<2x24x56xf32, #tpu.memory_space<vmem>>, vector<1x16x48xf32>
    %256 = vector.shape_cast %255 : vector<1x16x48xf32> to vector<16x48xf32>
    %c0_121 = arith.constant 0 : index
    %257 = memref.load %arg14[%c0_121] : memref<36xf32, #tpu.memory_space<smem>>
    %258 = vector.broadcast %257 : f32 to vector<16x48xf32>
    %259 = arith.mulf %258, %256 : vector<16x48xf32>
    %260 = arith.addf %253, %259 : vector<16x48xf32>
    %c1_122 = arith.constant 1 : index
    %261 = memref.load %arg14[%c1_122] : memref<36xf32, #tpu.memory_space<smem>>
    %262 = vector.broadcast %261 : f32 to vector<16x48xf32>
    %263 = arith.mulf %262, %256 : vector<16x48xf32>
    %264 = arith.addf %254, %263 : vector<16x48xf32>
    %c0_123 = arith.constant 0 : index
    %c0_124 = arith.constant 0 : index
    %c4_125 = arith.constant 4 : index
    %265 = vector.load %arg18[%c0_123, %c0_124, %c4_125] : memref<2x24x56xf32, #tpu.memory_space<vmem>>, vector<1x16x48xf32>
    %266 = vector.shape_cast %265 : vector<1x16x48xf32> to vector<16x48xf32>
    %c4_126 = arith.constant 4 : index
    %267 = memref.load %arg14[%c4_126] : memref<36xf32, #tpu.memory_space<smem>>
    %268 = vector.broadcast %267 : f32 to vector<16x48xf32>
    %269 = arith.mulf %268, %266 : vector<16x48xf32>
    %270 = arith.addf %260, %269 : vector<16x48xf32>
    %c5_127 = arith.constant 5 : index
    %271 = memref.load %arg14[%c5_127] : memref<36xf32, #tpu.memory_space<smem>>
    %272 = vector.broadcast %271 : f32 to vector<16x48xf32>
    %273 = arith.mulf %272, %266 : vector<16x48xf32>
    %274 = arith.addf %264, %273 : vector<16x48xf32>
    %c0_128 = arith.constant 0 : index
    %c0_129 = arith.constant 0 : index
    %c8_130 = arith.constant 8 : index
    %275 = vector.load %arg18[%c0_128, %c0_129, %c8_130] : memref<2x24x56xf32, #tpu.memory_space<vmem>>, vector<1x16x48xf32>
    %276 = vector.shape_cast %275 : vector<1x16x48xf32> to vector<16x48xf32>
    %c8_131 = arith.constant 8 : index
    %277 = memref.load %arg14[%c8_131] : memref<36xf32, #tpu.memory_space<smem>>
    %278 = vector.broadcast %277 : f32 to vector<16x48xf32>
    %279 = arith.mulf %278, %276 : vector<16x48xf32>
    %280 = arith.addf %270, %279 : vector<16x48xf32>
    %c9_132 = arith.constant 9 : index
    %281 = memref.load %arg14[%c9_132] : memref<36xf32, #tpu.memory_space<smem>>
    %282 = vector.broadcast %281 : f32 to vector<16x48xf32>
    %283 = arith.mulf %282, %276 : vector<16x48xf32>
    %284 = arith.addf %274, %283 : vector<16x48xf32>
    %c0_133 = arith.constant 0 : index
    %c4_134 = arith.constant 4 : index
    %c0_135 = arith.constant 0 : index
    %285 = vector.load %arg18[%c0_133, %c4_134, %c0_135] : memref<2x24x56xf32, #tpu.memory_space<vmem>>, vector<1x16x48xf32>
    %286 = vector.shape_cast %285 : vector<1x16x48xf32> to vector<16x48xf32>
    %c12_136 = arith.constant 12 : index
    %287 = memref.load %arg14[%c12_136] : memref<36xf32, #tpu.memory_space<smem>>
    %288 = vector.broadcast %287 : f32 to vector<16x48xf32>
    %289 = arith.mulf %288, %286 : vector<16x48xf32>
    %290 = arith.addf %280, %289 : vector<16x48xf32>
    %c13_137 = arith.constant 13 : index
    %291 = memref.load %arg14[%c13_137] : memref<36xf32, #tpu.memory_space<smem>>
    %292 = vector.broadcast %291 : f32 to vector<16x48xf32>
    %293 = arith.mulf %292, %286 : vector<16x48xf32>
    %294 = arith.addf %284, %293 : vector<16x48xf32>
    %c0_138 = arith.constant 0 : index
    %c4_139 = arith.constant 4 : index
    %c4_140 = arith.constant 4 : index
    %295 = vector.load %arg18[%c0_138, %c4_139, %c4_140] : memref<2x24x56xf32, #tpu.memory_space<vmem>>, vector<1x16x48xf32>
    %296 = vector.shape_cast %295 : vector<1x16x48xf32> to vector<16x48xf32>
    %c16_141 = arith.constant 16 : index
    %297 = memref.load %arg14[%c16_141] : memref<36xf32, #tpu.memory_space<smem>>
    %298 = vector.broadcast %297 : f32 to vector<16x48xf32>
    %299 = arith.mulf %298, %296 : vector<16x48xf32>
    %300 = arith.addf %290, %299 : vector<16x48xf32>
    %c17_142 = arith.constant 17 : index
    %301 = memref.load %arg14[%c17_142] : memref<36xf32, #tpu.memory_space<smem>>
    %302 = vector.broadcast %301 : f32 to vector<16x48xf32>
    %303 = arith.mulf %302, %296 : vector<16x48xf32>
    %304 = arith.addf %294, %303 : vector<16x48xf32>
    %c0_143 = arith.constant 0 : index
    %c4_144 = arith.constant 4 : index
    %c8_145 = arith.constant 8 : index
    %305 = vector.load %arg18[%c0_143, %c4_144, %c8_145] : memref<2x24x56xf32, #tpu.memory_space<vmem>>, vector<1x16x48xf32>
    %306 = vector.shape_cast %305 : vector<1x16x48xf32> to vector<16x48xf32>
    %c20_146 = arith.constant 20 : index
    %307 = memref.load %arg14[%c20_146] : memref<36xf32, #tpu.memory_space<smem>>
    %308 = vector.broadcast %307 : f32 to vector<16x48xf32>
    %309 = arith.mulf %308, %306 : vector<16x48xf32>
    %310 = arith.addf %300, %309 : vector<16x48xf32>
    %c21_147 = arith.constant 21 : index
    %311 = memref.load %arg14[%c21_147] : memref<36xf32, #tpu.memory_space<smem>>
    %312 = vector.broadcast %311 : f32 to vector<16x48xf32>
    %313 = arith.mulf %312, %306 : vector<16x48xf32>
    %314 = arith.addf %304, %313 : vector<16x48xf32>
    %c0_148 = arith.constant 0 : index
    %c8_149 = arith.constant 8 : index
    %c0_150 = arith.constant 0 : index
    %315 = vector.load %arg18[%c0_148, %c8_149, %c0_150] : memref<2x24x56xf32, #tpu.memory_space<vmem>>, vector<1x16x48xf32>
    %316 = vector.shape_cast %315 : vector<1x16x48xf32> to vector<16x48xf32>
    %c24_151 = arith.constant 24 : index
    %317 = memref.load %arg14[%c24_151] : memref<36xf32, #tpu.memory_space<smem>>
    %318 = vector.broadcast %317 : f32 to vector<16x48xf32>
    %319 = arith.mulf %318, %316 : vector<16x48xf32>
    %320 = arith.addf %310, %319 : vector<16x48xf32>
    %c25_152 = arith.constant 25 : index
    %321 = memref.load %arg14[%c25_152] : memref<36xf32, #tpu.memory_space<smem>>
    %322 = vector.broadcast %321 : f32 to vector<16x48xf32>
    %323 = arith.mulf %322, %316 : vector<16x48xf32>
    %324 = arith.addf %314, %323 : vector<16x48xf32>
    %c0_153 = arith.constant 0 : index
    %c8_154 = arith.constant 8 : index
    %c4_155 = arith.constant 4 : index
    %325 = vector.load %arg18[%c0_153, %c8_154, %c4_155] : memref<2x24x56xf32, #tpu.memory_space<vmem>>, vector<1x16x48xf32>
    %326 = vector.shape_cast %325 : vector<1x16x48xf32> to vector<16x48xf32>
    %c28_156 = arith.constant 28 : index
    %327 = memref.load %arg14[%c28_156] : memref<36xf32, #tpu.memory_space<smem>>
    %328 = vector.broadcast %327 : f32 to vector<16x48xf32>
    %329 = arith.mulf %328, %326 : vector<16x48xf32>
    %330 = arith.addf %320, %329 : vector<16x48xf32>
    %c29_157 = arith.constant 29 : index
    %331 = memref.load %arg14[%c29_157] : memref<36xf32, #tpu.memory_space<smem>>
    %332 = vector.broadcast %331 : f32 to vector<16x48xf32>
    %333 = arith.mulf %332, %326 : vector<16x48xf32>
    %334 = arith.addf %324, %333 : vector<16x48xf32>
    %c0_158 = arith.constant 0 : index
    %c8_159 = arith.constant 8 : index
    %c8_160 = arith.constant 8 : index
    %335 = vector.load %arg18[%c0_158, %c8_159, %c8_160] : memref<2x24x56xf32, #tpu.memory_space<vmem>>, vector<1x16x48xf32>
    %336 = vector.shape_cast %335 : vector<1x16x48xf32> to vector<16x48xf32>
    %c32_161 = arith.constant 32 : index
    %337 = memref.load %arg14[%c32_161] : memref<36xf32, #tpu.memory_space<smem>>
    %338 = vector.broadcast %337 : f32 to vector<16x48xf32>
    %339 = arith.mulf %338, %336 : vector<16x48xf32>
    %340 = arith.addf %330, %339 : vector<16x48xf32>
    %c33_162 = arith.constant 33 : index
    %341 = memref.load %arg14[%c33_162] : memref<36xf32, #tpu.memory_space<smem>>
    %342 = vector.broadcast %341 : f32 to vector<16x48xf32>
    %343 = arith.mulf %342, %336 : vector<16x48xf32>
    %344 = arith.addf %334, %343 : vector<16x48xf32>
    %c1_163 = arith.constant 1 : index
    %c0_164 = arith.constant 0 : index
    %c0_165 = arith.constant 0 : index
    %345 = vector.load %arg18[%c1_163, %c0_164, %c0_165] : memref<2x24x56xf32, #tpu.memory_space<vmem>>, vector<1x16x48xf32>
    %346 = vector.shape_cast %345 : vector<1x16x48xf32> to vector<16x48xf32>
    %c2_166 = arith.constant 2 : index
    %347 = memref.load %arg14[%c2_166] : memref<36xf32, #tpu.memory_space<smem>>
    %348 = vector.broadcast %347 : f32 to vector<16x48xf32>
    %349 = arith.mulf %348, %346 : vector<16x48xf32>
    %350 = arith.addf %340, %349 : vector<16x48xf32>
    %c3_167 = arith.constant 3 : index
    %351 = memref.load %arg14[%c3_167] : memref<36xf32, #tpu.memory_space<smem>>
    %352 = vector.broadcast %351 : f32 to vector<16x48xf32>
    %353 = arith.mulf %352, %346 : vector<16x48xf32>
    %354 = arith.addf %344, %353 : vector<16x48xf32>
    %c1_168 = arith.constant 1 : index
    %c0_169 = arith.constant 0 : index
    %c4_170 = arith.constant 4 : index
    %355 = vector.load %arg18[%c1_168, %c0_169, %c4_170] : memref<2x24x56xf32, #tpu.memory_space<vmem>>, vector<1x16x48xf32>
    %356 = vector.shape_cast %355 : vector<1x16x48xf32> to vector<16x48xf32>
    %c6_171 = arith.constant 6 : index
    %357 = memref.load %arg14[%c6_171] : memref<36xf32, #tpu.memory_space<smem>>
    %358 = vector.broadcast %357 : f32 to vector<16x48xf32>
    %359 = arith.mulf %358, %356 : vector<16x48xf32>
    %360 = arith.addf %350, %359 : vector<16x48xf32>
    %c7_172 = arith.constant 7 : index
    %361 = memref.load %arg14[%c7_172] : memref<36xf32, #tpu.memory_space<smem>>
    %362 = vector.broadcast %361 : f32 to vector<16x48xf32>
    %363 = arith.mulf %362, %356 : vector<16x48xf32>
    %364 = arith.addf %354, %363 : vector<16x48xf32>
    %c1_173 = arith.constant 1 : index
    %c0_174 = arith.constant 0 : index
    %c8_175 = arith.constant 8 : index
    %365 = vector.load %arg18[%c1_173, %c0_174, %c8_175] : memref<2x24x56xf32, #tpu.memory_space<vmem>>, vector<1x16x48xf32>
    %366 = vector.shape_cast %365 : vector<1x16x48xf32> to vector<16x48xf32>
    %c10_176 = arith.constant 10 : index
    %367 = memref.load %arg14[%c10_176] : memref<36xf32, #tpu.memory_space<smem>>
    %368 = vector.broadcast %367 : f32 to vector<16x48xf32>
    %369 = arith.mulf %368, %366 : vector<16x48xf32>
    %370 = arith.addf %360, %369 : vector<16x48xf32>
    %c11_177 = arith.constant 11 : index
    %371 = memref.load %arg14[%c11_177] : memref<36xf32, #tpu.memory_space<smem>>
    %372 = vector.broadcast %371 : f32 to vector<16x48xf32>
    %373 = arith.mulf %372, %366 : vector<16x48xf32>
    %374 = arith.addf %364, %373 : vector<16x48xf32>
    %c1_178 = arith.constant 1 : index
    %c4_179 = arith.constant 4 : index
    %c0_180 = arith.constant 0 : index
    %375 = vector.load %arg18[%c1_178, %c4_179, %c0_180] : memref<2x24x56xf32, #tpu.memory_space<vmem>>, vector<1x16x48xf32>
    %376 = vector.shape_cast %375 : vector<1x16x48xf32> to vector<16x48xf32>
    %c14_181 = arith.constant 14 : index
    %377 = memref.load %arg14[%c14_181] : memref<36xf32, #tpu.memory_space<smem>>
    %378 = vector.broadcast %377 : f32 to vector<16x48xf32>
    %379 = arith.mulf %378, %376 : vector<16x48xf32>
    %380 = arith.addf %370, %379 : vector<16x48xf32>
    %c15_182 = arith.constant 15 : index
    %381 = memref.load %arg14[%c15_182] : memref<36xf32, #tpu.memory_space<smem>>
    %382 = vector.broadcast %381 : f32 to vector<16x48xf32>
    %383 = arith.mulf %382, %376 : vector<16x48xf32>
    %384 = arith.addf %374, %383 : vector<16x48xf32>
    %c1_183 = arith.constant 1 : index
    %c4_184 = arith.constant 4 : index
    %c4_185 = arith.constant 4 : index
    %385 = vector.load %arg18[%c1_183, %c4_184, %c4_185] : memref<2x24x56xf32, #tpu.memory_space<vmem>>, vector<1x16x48xf32>
    %386 = vector.shape_cast %385 : vector<1x16x48xf32> to vector<16x48xf32>
    %c18_186 = arith.constant 18 : index
    %387 = memref.load %arg14[%c18_186] : memref<36xf32, #tpu.memory_space<smem>>
    %388 = vector.broadcast %387 : f32 to vector<16x48xf32>
    %389 = arith.mulf %388, %386 : vector<16x48xf32>
    %390 = arith.addf %380, %389 : vector<16x48xf32>
    %c19_187 = arith.constant 19 : index
    %391 = memref.load %arg14[%c19_187] : memref<36xf32, #tpu.memory_space<smem>>
    %392 = vector.broadcast %391 : f32 to vector<16x48xf32>
    %393 = arith.mulf %392, %386 : vector<16x48xf32>
    %394 = arith.addf %384, %393 : vector<16x48xf32>
    %c1_188 = arith.constant 1 : index
    %c4_189 = arith.constant 4 : index
    %c8_190 = arith.constant 8 : index
    %395 = vector.load %arg18[%c1_188, %c4_189, %c8_190] : memref<2x24x56xf32, #tpu.memory_space<vmem>>, vector<1x16x48xf32>
    %396 = vector.shape_cast %395 : vector<1x16x48xf32> to vector<16x48xf32>
    %c22_191 = arith.constant 22 : index
    %397 = memref.load %arg14[%c22_191] : memref<36xf32, #tpu.memory_space<smem>>
    %398 = vector.broadcast %397 : f32 to vector<16x48xf32>
    %399 = arith.mulf %398, %396 : vector<16x48xf32>
    %400 = arith.addf %390, %399 : vector<16x48xf32>
    %c23_192 = arith.constant 23 : index
    %401 = memref.load %arg14[%c23_192] : memref<36xf32, #tpu.memory_space<smem>>
    %402 = vector.broadcast %401 : f32 to vector<16x48xf32>
    %403 = arith.mulf %402, %396 : vector<16x48xf32>
    %404 = arith.addf %394, %403 : vector<16x48xf32>
    %c1_193 = arith.constant 1 : index
    %c8_194 = arith.constant 8 : index
    %c0_195 = arith.constant 0 : index
    %405 = vector.load %arg18[%c1_193, %c8_194, %c0_195] : memref<2x24x56xf32, #tpu.memory_space<vmem>>, vector<1x16x48xf32>
    %406 = vector.shape_cast %405 : vector<1x16x48xf32> to vector<16x48xf32>
    %c26_196 = arith.constant 26 : index
    %407 = memref.load %arg14[%c26_196] : memref<36xf32, #tpu.memory_space<smem>>
    %408 = vector.broadcast %407 : f32 to vector<16x48xf32>
    %409 = arith.mulf %408, %406 : vector<16x48xf32>
    %410 = arith.addf %400, %409 : vector<16x48xf32>
    %c27_197 = arith.constant 27 : index
    %411 = memref.load %arg14[%c27_197] : memref<36xf32, #tpu.memory_space<smem>>
    %412 = vector.broadcast %411 : f32 to vector<16x48xf32>
    %413 = arith.mulf %412, %406 : vector<16x48xf32>
    %414 = arith.addf %404, %413 : vector<16x48xf32>
    %c1_198 = arith.constant 1 : index
    %c8_199 = arith.constant 8 : index
    %c4_200 = arith.constant 4 : index
    %415 = vector.load %arg18[%c1_198, %c8_199, %c4_200] : memref<2x24x56xf32, #tpu.memory_space<vmem>>, vector<1x16x48xf32>
    %416 = vector.shape_cast %415 : vector<1x16x48xf32> to vector<16x48xf32>
    %c30_201 = arith.constant 30 : index
    %417 = memref.load %arg14[%c30_201] : memref<36xf32, #tpu.memory_space<smem>>
    %418 = vector.broadcast %417 : f32 to vector<16x48xf32>
    %419 = arith.mulf %418, %416 : vector<16x48xf32>
    %420 = arith.addf %410, %419 : vector<16x48xf32>
    %c31_202 = arith.constant 31 : index
    %421 = memref.load %arg14[%c31_202] : memref<36xf32, #tpu.memory_space<smem>>
    %422 = vector.broadcast %421 : f32 to vector<16x48xf32>
    %423 = arith.mulf %422, %416 : vector<16x48xf32>
    %424 = arith.addf %414, %423 : vector<16x48xf32>
    %c1_203 = arith.constant 1 : index
    %c8_204 = arith.constant 8 : index
    %c8_205 = arith.constant 8 : index
    %425 = vector.load %arg18[%c1_203, %c8_204, %c8_205] : memref<2x24x56xf32, #tpu.memory_space<vmem>>, vector<1x16x48xf32>
    %426 = vector.shape_cast %425 : vector<1x16x48xf32> to vector<16x48xf32>
    %c34_206 = arith.constant 34 : index
    %427 = memref.load %arg14[%c34_206] : memref<36xf32, #tpu.memory_space<smem>>
    %428 = vector.broadcast %427 : f32 to vector<16x48xf32>
    %429 = arith.mulf %428, %426 : vector<16x48xf32>
    %430 = arith.addf %420, %429 : vector<16x48xf32>
    %c35_207 = arith.constant 35 : index
    %431 = memref.load %arg14[%c35_207] : memref<36xf32, #tpu.memory_space<smem>>
    %432 = vector.broadcast %431 : f32 to vector<16x48xf32>
    %433 = arith.mulf %432, %426 : vector<16x48xf32>
    %434 = arith.addf %424, %433 : vector<16x48xf32>
    %c0_208 = arith.constant 0 : index
    %435 = memref.load %arg15[%c0_208] : memref<2xf32, #tpu.memory_space<smem>>
    %436 = vector.broadcast %435 : f32 to vector<16x48xf32>
    %437 = arith.addf %430, %436 : vector<16x48xf32>
    %cst_209 = arith.constant 0.000000e+00 : f32
    %438 = vector.broadcast %cst_209 : f32 to vector<16x48xf32>
    %439 = arith.maximumf %437, %438 : vector<16x48xf32>
    %c1_210 = arith.constant 1 : index
    %440 = memref.load %arg15[%c1_210] : memref<2xf32, #tpu.memory_space<smem>>
    %441 = vector.broadcast %440 : f32 to vector<16x48xf32>
    %442 = arith.addf %434, %441 : vector<16x48xf32>
    %cst_211 = arith.constant 0.000000e+00 : f32
    %443 = vector.broadcast %cst_211 : f32 to vector<16x48xf32>
    %444 = arith.maximumf %442, %443 : vector<16x48xf32>
    %c0_212 = arith.constant 0 : index
    %445 = memref.load %arg16[%c0_212] : memref<3xf32, #tpu.memory_space<smem>>
    %446 = vector.broadcast %445 : f32 to vector<16x48xf32>
    %447 = arith.mulf %446, %439 : vector<16x48xf32>
    %c1_213 = arith.constant 1 : index
    %448 = memref.load %arg16[%c1_213] : memref<3xf32, #tpu.memory_space<smem>>
    %449 = vector.broadcast %448 : f32 to vector<16x48xf32>
    %450 = arith.mulf %449, %444 : vector<16x48xf32>
    %451 = arith.addf %447, %450 : vector<16x48xf32>
    %c2_214 = arith.constant 2 : index
    %452 = memref.load %arg16[%c2_214] : memref<3xf32, #tpu.memory_space<smem>>
    %453 = vector.broadcast %452 : f32 to vector<16x48xf32>
    %454 = arith.addf %451, %453 : vector<16x48xf32>
    %455 = vector.extract_strided_slice %454 {offsets = [0, 0], sizes = [16, 16], strides = [1, 1]} : vector<16x48xf32> to vector<16x16xf32>
    %c0_215 = arith.constant 0 : index
    %c0_216 = arith.constant 0 : index
    %456 = vector.load %arg11[%c0_215, %c0_216] : memref<16x512xf32, #tpu.memory_space<vmem>>, vector<16x512xf32>
    %cst_217 = arith.constant dense<0.000000e+00> : vector<16x512xf32>
    %457 = tpu.matmul %455, %456, %cst_217 {dimension_numbers = #tpu.dot_dimension_numbers<[1], [0], [0], [1], [0, 0, 1, 1], [], []>} : vector<16x16xf32>, vector<16x512xf32>, vector<16x512xf32> -> vector<16x512xf32>
    %458 = vector.extract_strided_slice %19 {offsets = [0, 0], sizes = [1, 512], strides = [1, 1]} : vector<2x512xf32> to vector<1x512xf32>
    %459 = vector.broadcast %458 : vector<1x512xf32> to vector<16x512xf32>
    %460 = arith.mulf %457, %459 : vector<16x512xf32>
    %461 = vector.extract_strided_slice %0 {offsets = [0, 0, 0], sizes = [1, 16, 512], strides = [1, 1, 1]} : vector<2x16x512xf32> to vector<1x16x512xf32>
    %462 = vector.shape_cast %461 : vector<1x16x512xf32> to vector<16x512xf32>
    %cst_218 = arith.constant 5.000000e-01 : f32
    %463 = vector.broadcast %cst_218 : f32 to vector<16x512xf32>
    %464 = arith.mulf %463, %460 : vector<16x512xf32>
    %465 = math.tanh %464 : vector<16x512xf32>
    %cst_219 = arith.constant 5.000000e-01 : f32
    %466 = vector.broadcast %cst_219 : f32 to vector<16x512xf32>
    %467 = arith.mulf %466, %465 : vector<16x512xf32>
    %cst_220 = arith.constant 1.500000e+00 : f32
    %468 = vector.broadcast %cst_220 : f32 to vector<16x512xf32>
    %469 = arith.addf %468, %467 : vector<16x512xf32>
    %470 = arith.mulf %462, %469 : vector<16x512xf32>
    %c0_221 = arith.constant 0 : index
    %c0_222 = arith.constant 0 : index
    %c0_223 = arith.constant 0 : index
    %471 = vector.load %arg17[%c0_221, %c0_222, %c0_223] : memref<2x16x512xf32, #tpu.memory_space<vmem>>, vector<1x16x512xf32>
    %472 = vector.shape_cast %471 : vector<1x16x512xf32> to vector<16x512xf32>
    %473 = vector.shape_cast %470 : vector<16x512xf32> to vector<1x16x512xf32>
    tpu.vector_store %arg17[%c0_221, %c0_222, %c0_223], %473 {strides = array<i32>} : memref<2x16x512xf32, #tpu.memory_space<vmem>>, vector<1x16x512xf32>,
    %474 = vector.extract_strided_slice %454 {offsets = [0, 24], sizes = [16, 16], strides = [1, 1]} : vector<16x48xf32> to vector<16x16xf32>
    %c0_224 = arith.constant 0 : index
    %c0_225 = arith.constant 0 : index
    %475 = vector.load %arg11[%c0_224, %c0_225] : memref<16x512xf32, #tpu.memory_space<vmem>>, vector<16x512xf32>
    %cst_226 = arith.constant dense<0.000000e+00> : vector<16x512xf32>
    %476 = tpu.matmul %474, %475, %cst_226 {dimension_numbers = #tpu.dot_dimension_numbers<[1], [0], [0], [1], [0, 0, 1, 1], [], []>} : vector<16x16xf32>, vector<16x512xf32>, vector<16x512xf32> -> vector<16x512xf32>
    %477 = vector.extract_strided_slice %19 {offsets = [1, 0], sizes = [1, 512], strides = [1, 1]} : vector<2x512xf32> to vector<1x512xf32>
    %478 = vector.broadcast %477 : vector<1x512xf32> to vector<16x512xf32>
    %479 = arith.mulf %476, %478 : vector<16x512xf32>
    %480 = vector.extract_strided_slice %0 {offsets = [1, 0, 0], sizes = [1, 16, 512], strides = [1, 1, 1]} : vector<2x16x512xf32> to vector<1x16x512xf32>
    %481 = vector.shape_cast %480 : vector<1x16x512xf32> to vector<16x512xf32>
    %cst_227 = arith.constant 5.000000e-01 : f32
    %482 = vector.broadcast %cst_227 : f32 to vector<16x512xf32>
    %483 = arith.mulf %482, %479 : vector<16x512xf32>
    %484 = math.tanh %483 : vector<16x512xf32>
    %cst_228 = arith.constant 5.000000e-01 : f32
    %485 = vector.broadcast %cst_228 : f32 to vector<16x512xf32>
    %486 = arith.mulf %485, %484 : vector<16x512xf32>
    %cst_229 = arith.constant 1.500000e+00 : f32
    %487 = vector.broadcast %cst_229 : f32 to vector<16x512xf32>
    %488 = arith.addf %487, %486 : vector<16x512xf32>
    %489 = arith.mulf %481, %488 : vector<16x512xf32>
    %c1_230 = arith.constant 1 : index
    %c0_231 = arith.constant 0 : index
    %c0_232 = arith.constant 0 : index
    %490 = vector.load %arg17[%c1_230, %c0_231, %c0_232] : memref<2x16x512xf32, #tpu.memory_space<vmem>>, vector<1x16x512xf32>
    %491 = vector.shape_cast %490 : vector<1x16x512xf32> to vector<16x512xf32>
    %492 = vector.shape_cast %489 : vector<16x512xf32> to vector<1x16x512xf32>
    tpu.vector_store %arg17[%c1_230, %c0_231, %c0_232], %492 {strides = array<i32>} : memref<2x16x512xf32, #tpu.memory_space<vmem>>, vector<1x16x512xf32>,
    return
  }
  func.func @transform_0(%arg0: i32) -> (i32, i32, i32) {
    %c0_i32 = arith.constant 0 : i32
    %c0_i32_0 = arith.constant 0 : i32
    %c0_i32_1 = arith.constant 0 : i32
    return %arg0, %c0_i32, %c0_i32_0 : i32, i32, i32
  }
  func.func @transform_1(%arg0: i32) -> (i32, i32) {
    %c0_i32 = arith.constant 0 : i32
    %c0_i32_0 = arith.constant 0 : i32
    %c0_i32_1 = arith.constant 0 : i32
    return %c0_i32, %c0_i32_0 : i32, i32
  }
  func.func @transform_2(%arg0: i32) -> (i32, i32) {
    %c0_i32 = arith.constant 0 : i32
    %c0_i32_0 = arith.constant 0 : i32
    %c0_i32_1 = arith.constant 0 : i32
    return %c0_i32, %c0_i32_0 : i32, i32
  }
  func.func @transform_3(%arg0: i32) -> (i32, i32) {
    %c0_i32 = arith.constant 0 : i32
    %c0_i32_0 = arith.constant 0 : i32
    %c0_i32_1 = arith.constant 0 : i32
    return %c0_i32, %c0_i32_0 : i32, i32
  }
  func.func @transform_4(%arg0: i32) -> (i32, i32) {
    %c0_i32 = arith.constant 0 : i32
    %c0_i32_0 = arith.constant 0 : i32
    %c0_i32_1 = arith.constant 0 : i32
    return %c0_i32, %c0_i32_0 : i32, i32
  }
  func.func @transform_5(%arg0: i32) -> (i32, i32) {
    %c0_i32 = arith.constant 0 : i32
    %c0_i32_0 = arith.constant 0 : i32
    %c0_i32_1 = arith.constant 0 : i32
    return %c0_i32, %c0_i32_0 : i32, i32
  }
  func.func @transform_6(%arg0: i32) -> (i32, i32) {
    %c0_i32 = arith.constant 0 : i32
    %c0_i32_0 = arith.constant 0 : i32
    %c0_i32_1 = arith.constant 0 : i32
    return %c0_i32, %c0_i32_0 : i32, i32
  }
  func.func @transform_7(%arg0: i32) -> (i32, i32) {
    %c0_i32 = arith.constant 0 : i32
    %c0_i32_0 = arith.constant 0 : i32
    %c0_i32_1 = arith.constant 0 : i32
    return %c0_i32, %c0_i32_0 : i32, i32
  }
  func.func @transform_8(%arg0: i32) -> (i32, i32) {
    %c0_i32 = arith.constant 0 : i32
    %c0_i32_0 = arith.constant 0 : i32
    %c0_i32_1 = arith.constant 0 : i32
    return %c0_i32, %c0_i32_0 : i32, i32
  }
  func.func @transform_9(%arg0: i32) -> (i32, i32) {
    %c0_i32 = arith.constant 0 : i32
    %c0_i32_0 = arith.constant 0 : i32
    %c0_i32_1 = arith.constant 0 : i32
    return %c0_i32, %c0_i32_0 : i32, i32
  }
  func.func @transform_10(%arg0: i32) -> (i32, i32) {
    %c0_i32 = arith.constant 0 : i32
    %c0_i32_0 = arith.constant 0 : i32
    %c0_i32_1 = arith.constant 0 : i32
    return %c0_i32, %c0_i32_0 : i32, i32
  }
  func.func @transform_11(%arg0: i32) -> i32 {
    %c0_i32 = arith.constant 0 : i32
    %c0_i32_0 = arith.constant 0 : i32
    return %c0_i32 : i32
  }
  func.func @transform_12(%arg0: i32) -> i32 {
    %c0_i32 = arith.constant 0 : i32
    %c0_i32_0 = arith.constant 0 : i32
    return %c0_i32 : i32
  }
  func.func @transform_13(%arg0: i32) -> i32 {
    %c0_i32 = arith.constant 0 : i32
    %c0_i32_0 = arith.constant 0 : i32
    return %c0_i32 : i32
  }
  func.func @transform_14(%arg0: i32) -> i32 {
    %c0_i32 = arith.constant 0 : i32
    %c0_i32_0 = arith.constant 0 : i32
    return %c0_i32 : i32
  }
  func.func @transform_15(%arg0: i32) -> i32 {
    %c0_i32 = arith.constant 0 : i32
    %c0_i32_0 = arith.constant 0 : i32
    return %c0_i32 : i32
  }
  func.func @transform_16(%arg0: i32) -> (i32, i32, i32) {
    %c0_i32 = arith.constant 0 : i32
    %c0_i32_0 = arith.constant 0 : i32
    %c0_i32_1 = arith.constant 0 : i32
    return %arg0, %c0_i32, %c0_i32_0 : i32, i32, i32
  }
}

</mosaic_0001>

<llo_original>
// kernel: tpu_custom_call.1
$region0: #{tpu_custom_call.1}
  #allocation0 [shape = 'u32[]', space=smem, size = 0x4, offset = 0x4, fixed_abs, tag = 'smem constant byte address 0x4 - core index']
  #allocation1 [shape = 'u32[144,128]{1,0:T(1,128)}', space=vmem, size = 0x12000, scoped, tag = 'internal scratch']
  #allocation2 [shape = 'f32[2,24,56]{2,1,0:T(8,128)}', space=vmem, size = 0x6000, scoped, tag = 'scratch operand']
  %s0 = inlined_call_operand.vmem [shape: f32[2,16,512], index: 0, kind: input, shape index: {}]
  %s1 = inlined_call_operand.vmem [shape: f32[32,2], index: 1, kind: input, shape index: {}]
  %s2 = inlined_call_operand.vmem [shape: f32[1,2], index: 2, kind: input, shape index: {}]
  %s3 = inlined_call_operand.vmem [shape: f32[2,32], index: 3, kind: input, shape index: {}]
  %s4 = inlined_call_operand.vmem [shape: f32[1,32], index: 4, kind: input, shape index: {}]
  %s5 = inlined_call_operand.vmem [shape: f32[512,32], index: 5, kind: input, shape index: {}]
  %s6 = inlined_call_operand.vmem [shape: f32[1,32], index: 6, kind: input, shape index: {}]
  %s7 = inlined_call_operand.vmem [shape: f32[2,32], index: 7, kind: input, shape index: {}]
  %s8 = inlined_call_operand.vmem [shape: f32[512,32], index: 8, kind: input, shape index: {}]
  %s9 = inlined_call_operand.vmem [shape: f32[32,512], index: 9, kind: input, shape index: {}]
  %s10 = inlined_call_operand.vmem [shape: f32[16,512], index: 10, kind: input, shape index: {}]
  %s11 = inlined_call_operand.vmem [shape: f32[36], index: 11, kind: input, shape index: {}]
  %s12 = inlined_call_operand.vmem [shape: f32[2], index: 12, kind: input, shape index: {}]
  %s13 = inlined_call_operand.vmem [shape: f32[36], index: 13, kind: input, shape index: {}]
  %s14 = inlined_call_operand.vmem [shape: f32[2], index: 14, kind: input, shape index: {}]
  %s15 = inlined_call_operand.vmem [shape: f32[3], index: 15, kind: input, shape index: {}]
  %s16 = inlined_call_operand.hbm [shape: f32[2,16,512], index: 16, kind: output, shape index: {}]
  %s17 = sld [smem:[#allocation0]]
  $region94: #{tpu_custom_call.1} parent=0
    _
  %s19 = ssub.s32 1, %s17
  %s20 = scalar_select 0, %s19, %s17
  $region1: #{tpu_custom_call.1} parent=0
    #allocation3 [shape = 'u8[512]{0}', space=smem, size = 0x200, scoped, tag = 'input window, operand 11, single buffered']
    #allocation4 [shape = 's32[1]{0}', space=sflag, size = 0x4, scoped, tag = 'scoped memory for tpu_custom_call.1']
    #allocation5 [shape = 's32[1]{0}', space=sflag, size = 0x4, scoped, tag = 'scoped memory for tpu_custom_call.1']
    #allocation6 [shape = 'u8[512]{0}', space=smem, size = 0x200, scoped, tag = 'input window, operand 12, single buffered']
    #allocation7 [shape = 's32[1]{0}', space=sflag, size = 0x4, scoped, tag = 'scoped memory for tpu_custom_call.1']
    #allocation8 [shape = 'u8[512]{0}', space=smem, size = 0x200, scoped, tag = 'input window, operand 13, single buffered']
    #allocation9 [shape = 'u8[512]{0}', space=smem, size = 0x200, scoped, tag = 'input window, operand 14, single buffered']
    #allocation10 [shape = 's32[1]{0}', space=sflag, size = 0x4, scoped, tag = 'scoped memory for tpu_custom_call.1']
    #allocation11 [shape = 'u8[512]{0}', space=smem, size = 0x200, scoped, tag = 'input window, operand 15, single buffered']
    #allocation12 [shape = 'u8[65536]{0}', space=vmem, size = 0x10000, scoped, tag = 'output window, operand 0, single buffered']
    %21 = vsyncpa [#allocation5], 0
    %22 = vsyncpa [#allocation7], 0
    %23 = vsyncpa [#allocation10], 0
    %24 = vsyncpa [#allocation4], 0
    // Predicated region
    $region2: #{tpu_custom_call.1} parent=1 // pred_check
      _
    $region3: #{tpu_custom_call.1} parent=1 // pred_check_branch
      %26 = sbr.rel (0) target = $region5
    $region4: #{tpu_custom_call.1} parent=1 // pred_region
      _
    $region5: #{tpu_custom_call.1} parent=1 // pred_fallthru
      _
    // Predicated region
    $region6: #{tpu_custom_call.1} parent=1 // pred_check
      _
    $region7: #{tpu_custom_call.1} parent=1 // pred_check_branch
      %28 = sbr.rel (0) target = $region9
    $region8: #{tpu_custom_call.1} parent=1 // pred_region
      _
    $region9: #{tpu_custom_call.1} parent=1 // pred_fallthru
      _
    // Predicated region
    $region10: #{tpu_custom_call.1} parent=1 // pred_check
      _
    $region11: #{tpu_custom_call.1} parent=1 // pred_check_branch
      %30 = sbr.rel (0) target = $region13
    $region12: #{tpu_custom_call.1} parent=1 // pred_region
      _
    $region13: #{tpu_custom_call.1} parent=1 // pred_fallthru
      _
    // Predicated region
    $region14: #{tpu_custom_call.1} parent=1 // pred_check
      _
    $region15: #{tpu_custom_call.1} parent=1 // pred_check_branch
      %32 = sbr.rel (0) target = $region17
    $region16: #{tpu_custom_call.1} parent=1 // pred_region
      _
    $region17: #{tpu_custom_call.1} parent=1 // pred_fallthru
      _
    // Predicated region
    $region18: #{tpu_custom_call.1} parent=1 // pred_check
      _
    $region19: #{tpu_custom_call.1} parent=1 // pred_check_branch
      %34 = sbr.rel (0) target = $region21
    $region20: #{tpu_custom_call.1} parent=1 // pred_region
      _
    $region21: #{tpu_custom_call.1} parent=1 // pred_fallthru
      _
    // Predicated region
    $region22: #{tpu_custom_call.1} parent=1 // pred_check
      _
    $region23: #{tpu_custom_call.1} parent=1 // pred_check_branch
      %36 = sbr.rel (0) target = $region25
    $region24: #{tpu_custom_call.1} parent=1 // pred_region
      _
    $region25: #{tpu_custom_call.1} parent=1 // pred_fallthru
      _
    // Predicated region
    $region26: #{tpu_custom_call.1} parent=1 // pred_check
      _
    $region27: #{tpu_custom_call.1} parent=1 // pred_check_branch
      %38 = sbr.rel (0) target = $region29
    $region28: #{tpu_custom_call.1} parent=1 // pred_region
      _
    $region29: #{tpu_custom_call.1} parent=1 // pred_fallthru
      _
    // Predicated region
    $region30: #{tpu_custom_call.1} parent=1 // pred_check
      _
    $region31: #{tpu_custom_call.1} parent=1 // pred_check_branch
      %40 = sbr.rel (0) target = $region33
    $region32: #{tpu_custom_call.1} parent=1 // pred_region
      _
    $region33: #{tpu_custom_call.1} parent=1 // pred_fallthru
      _
    // Predicated region
    $region34: #{tpu_custom_call.1} parent=1 // pred_check
      _
    $region35: #{tpu_custom_call.1} parent=1 // pred_check_branch
      %42 = sbr.rel (0) target = $region37
    $region36: #{tpu_custom_call.1} parent=1 // pred_region
      _
    $region37: #{tpu_custom_call.1} parent=1 // pred_fallthru
      _
    // Predicated region
    $region38: #{tpu_custom_call.1} parent=1 // pred_check
      _
    $region39: #{tpu_custom_call.1} parent=1 // pred_check_branch
      %44 = sbr.rel (0) target = $region41
    $region40: #{tpu_custom_call.1} parent=1 // pred_region
      _
    $region41: #{tpu_custom_call.1} parent=1 // pred_fallthru
      _
    // Predicated region
    $region42: #{tpu_custom_call.1} parent=1 // pred_check
      _
    $region43: #{tpu_custom_call.1} parent=1 // pred_check_branch
      %46 = sbr.rel (0) target = $region45
    $region44: #{tpu_custom_call.1} parent=1 // pred_region
      _
    $region45: #{tpu_custom_call.1} parent=1 // pred_fallthru
      _
    // Predicated region
    $region46: #{tpu_custom_call.1} parent=1 // pred_check
      _
    $region47: #{tpu_custom_call.1} parent=1 // pred_check_branch
      %48 = sbr.rel (0) target = $region49
    $region48: #{tpu_custom_call.1} parent=1 // pred_region
      %s50 = ssub.s32 16, 16
      %51 = vsyncadd [#allocation5], %s50
      %s53 = sshll.u32 %s11, 4
      %s54 = int_to_ptr.vmem [resolvable:$true] %s53
      %56 = dma.vmem_to_smem %s54, 16, [#allocation3], [#allocation5]
    $region49: #{tpu_custom_call.1} parent=1 // pred_fallthru
      _
    // Predicated region
    $region50: #{tpu_custom_call.1} parent=1 // pred_check
      _
    $region51: #{tpu_custom_call.1} parent=1 // pred_check_branch
      %58 = sbr.rel (0) target = $region53
    $region52: #{tpu_custom_call.1} parent=1 // pred_region
      %s60 = ssub.s32 16, 16
      %61 = vsyncadd [#allocation7], %s60
      %s63 = sshll.u32 %s12, 4
      %s64 = int_to_ptr.vmem [resolvable:$true] %s63
      %66 = dma.vmem_to_smem %s64, 16, [#allocation6], [#allocation7]
    $region53: #{tpu_custom_call.1} parent=1 // pred_fallthru
      _
    // Predicated region
    $region54: #{tpu_custom_call.1} parent=1 // pred_check
      _
    $region55: #{tpu_custom_call.1} parent=1 // pred_check_branch
      %68 = sbr.rel (0) target = $region57
    $region56: #{tpu_custom_call.1} parent=1 // pred_region
      %s70 = ssub.s32 16, 16
      %71 = vsyncadd [#allocation7], %s70
      %s73 = sshll.u32 %s13, 4
      %s74 = int_to_ptr.vmem [resolvable:$true] %s73
      %76 = dma.vmem_to_smem %s74, 16, [#allocation8], [#allocation7]
    $region57: #{tpu_custom_call.1} parent=1 // pred_fallthru
      _
    // Predicated region
    $region58: #{tpu_custom_call.1} parent=1 // pred_check
      _
    $region59: #{tpu_custom_call.1} parent=1 // pred_check_branch
      %78 = sbr.rel (0) target = $region61
    $region60: #{tpu_custom_call.1} parent=1 // pred_region
      %s80 = ssub.s32 16, 16
      %81 = vsyncadd [#allocation10], %s80
      %s83 = sshll.u32 %s14, 4
      %s84 = int_to_ptr.vmem [resolvable:$true] %s83
      %86 = dma.vmem_to_smem %s84, 16, [#allocation9], [#allocation10]
    $region61: #{tpu_custom_call.1} parent=1 // pred_fallthru
      _
    // Predicated region
    $region62: #{tpu_custom_call.1} parent=1 // pred_check
      _
    $region63: #{tpu_custom_call.1} parent=1 // pred_check_branch
      %88 = sbr.rel (0) target = $region65
    $region64: #{tpu_custom_call.1} parent=1 // pred_region
      %s90 = ssub.s32 16, 16
      %91 = vsyncadd [#allocation10], %s90
      %s93 = sshll.u32 %s15, 4
      %s94 = int_to_ptr.vmem [resolvable:$true] %s93
      %96 = dma.vmem_to_smem %s94, 16, [#allocation11], [#allocation10]
    $region65: #{tpu_custom_call.1} parent=1 // pred_fallthru
      _
    // Predicated region
    $region66: #{tpu_custom_call.1} parent=1 // pred_check
      _
    $region67: #{tpu_custom_call.1} parent=1 // pred_check_branch
      %98 = sbr.rel (0) target = $region69
    $region68: #{tpu_custom_call.1} parent=1 // pred_region
      %99 = dma.done [#allocation5], 16
    $region69: #{tpu_custom_call.1} parent=1 // pred_fallthru
      _
    // Predicated region
    $region70: #{tpu_custom_call.1} parent=1 // pred_check
      _
    $region71: #{tpu_custom_call.1} parent=1 // pred_check_branch
      %101 = sbr.rel (0) target = $region73
    $region72: #{tpu_custom_call.1} parent=1 // pred_region
      %102 = dma.done [#allocation7], 16
    $region73: #{tpu_custom_call.1} parent=1 // pred_fallthru
      _
    // Predicated region
    $region74: #{tpu_custom_call.1} parent=1 // pred_check
      _
    $region75: #{tpu_custom_call.1} parent=1 // pred_check_branch
      %104 = sbr.rel (0) target = $region77
    $region76: #{tpu_custom_call.1} parent=1 // pred_region
      %105 = dma.done [#allocation7], 16
    $region77: #{tpu_custom_call.1} parent=1 // pred_fallthru
      _
    // Predicated region
    $region78: #{tpu_custom_call.1} parent=1 // pred_check
      _
    $region79: #{tpu_custom_call.1} parent=1 // pred_check_branch
      %107 = sbr.rel (0) target = $region81
    $region80: #{tpu_custom_call.1} parent=1 // pred_region
      %108 = dma.done [#allocation10], 16
    $region81: #{tpu_custom_call.1} parent=1 // pred_fallthru
      _
    // Predicated region
    $region82: #{tpu_custom_call.1} parent=1 // pred_check
      _
    $region83: #{tpu_custom_call.1} parent=1 // pred_check_branch
      %110 = sbr.rel (0) target = $region85
    $region84: #{tpu_custom_call.1} parent=1 // pred_region
      %111 = dma.done [#allocation10], 16
    $region85: #{tpu_custom_call.1} parent=1 // pred_fallthru
      _
    %112 = sfence
    %v113 = vld [vmem:[%s0] sm:$0xff]
    %v114 = vld [vmem:[%s0 + $0x8] sm:$0xff]
    %v115 = vld [vmem:[%s0 + $0x10] sm:$0xff]
    %v116 = vld [vmem:[%s0 + $0x18] sm:$0xff]
    %v117 = vld [vmem:[%s0 + $0x20] sm:$0xff]
    %v118 = vld [vmem:[%s0 + $0x28] sm:$0xff]
    %v119 = vld [vmem:[%s0 + $0x30] sm:$0xff]
    %v120 = vld [vmem:[%s0 + $0x38] sm:$0xff]
    %v121 = vld [vmem:[%s0 + $0x40] sm:$0xff]
    %v122 = vld [vmem:[%s0 + $0x48] sm:$0xff]
    %v123 = vld [vmem:[%s0 + $0x50] sm:$0xff]
    %v124 = vld [vmem:[%s0 + $0x58] sm:$0xff]
    %v125 = vld [vmem:[%s0 + $0x60] sm:$0xff]
    %v126 = vld [vmem:[%s0 + $0x68] sm:$0xff]
    %v127 = vld [vmem:[%s0 + $0x70] sm:$0xff]
    %v128 = vld [vmem:[%s0 + $0x78] sm:$0xff]
    %v129 = vld [vmem:[%s7] sm:$0x3]
    %vm130 = vcmask 261120
    %v132 = vsel %vm130, %v129, 0
    %134 = vmatprep.subr.mxu0 0.0
    %135 = vmatpush1.msra.mxu0 0.0
    %136 = vmatprep.subr.mxu0 0.0
    %137 = vmatpush1.msra.mxu0 0.0
    %138 = vmatprep.subr.mxu0 0.0
    %139 = vmatpush1.msra.mxu0 0.0
    %140 = vmatprep.subr.mxu0 0.0
    %141 = vmatpush1.msra.mxu0 0.0
    %142 = vmatprep.subr.mxu0 0.0
    %143 = vmatpush1.msra.mxu0 0.0
    %144 = vmatprep.subr.mxu0 0.0
    %145 = vmatpush1.msra.mxu0 0.0
    %146 = vmatprep.subr.mxu0 0.0
    %147 = vmatpush1.msra.mxu0 0.0
    %148 = vmatprep.subr.mxu0 0.0
    %149 = vmatpush1.msra.mxu0 0.0
    %150 = vmatprep.subr.mxu0 0.0
    %151 = vmatpush1.msra.mxu0 0.0
    %152 = vmatprep.subr.mxu0 0.0
    %153 = vmatpush1.msra.mxu0 0.0
    %154 = vmatprep.subr.mxu0 0.0
    %155 = vmatpush1.msra.mxu0 0.0
    %156 = vmatprep.subr.mxu0 0.0
    %157 = vmatpush1.msra.mxu0 0.0
    %158 = vmatprep.subr.mxu0 %v126
    %159 = vmatpush1.msra.mxu0 %v125
    %160 = vmatprep.subr.mxu0 %v122
    %161 = vmatpush1.msra.mxu0 %v121
    %162 = vmatprep.subr.mxu0 %v118
    %163 = vmatpush1.msra.mxu0 %v117
    %164 = vmatprep.subr.mxu0 %v114
    %165 = vmatpush1.msra.mxu0 %v113
    %166 = vmatprep.subr.mxu0 0.0
    %167 = vmatpush2.msra.mxu0 0.0
    %168 = vmatprep.subr.mxu0 0.0
    %169 = vmatpush2.msra.mxu0 0.0
    %170 = vmatprep.subr.mxu0 0.0
    %171 = vmatpush2.msra.mxu0 0.0
    %172 = vmatprep.subr.mxu0 0.0
    %173 = vmatpush2.msra.mxu0 0.0
    %174 = vmatprep.subr.mxu0 0.0
    %175 = vmatpush2.msra.mxu0 0.0
    %176 = vmatprep.subr.mxu0 0.0
    %177 = vmatpush2.msra.mxu0 0.0
    %178 = vmatprep.subr.mxu0 0.0
    %179 = vmatpush2.msra.mxu0 0.0
    %180 = vmatprep.subr.mxu0 0.0
    %181 = vmatpush2.msra.mxu0 0.0
    %182 = vmatprep.subr.mxu0 0.0
    %183 = vmatpush2.msra.mxu0 0.0
    %184 = vmatprep.subr.mxu0 0.0
    %185 = vmatpush2.msra.mxu0 0.0
    %186 = vmatprep.subr.mxu0 0.0
    %187 = vmatpush2.msra.mxu0 0.0
    %188 = vmatprep.subr.mxu0 0.0
    %189 = vmatpush2.msra.mxu0 0.0
    %190 = vmatprep.subr.mxu0 0.0
    %191 = vmatpush2.msra.mxu0 0.0
    %192 = vmatprep.subr.mxu0 0.0
    %193 = vmatpush2.msra.mxu0 0.0
    %194 = vmatprep.subr.mxu0 0.0
    %195 = vmatpush2.msra.mxu0 0.0
    %196 = vmatprep.subr.mxu0 0.0
    %197 = vmatpush2.msra.mxu0 0.0
    %198 = vmatprep.mubr.f32.mxu0 0.0
    %199 = vmatmul.mubr.f32.gmra.mxu0 %v132
    %v200 = vpop.f32.mrf.mxu0
    %v201 = vadd.f32 0.0, %v200
    %v202 = vpop.f32.mrf.mxu0
    %v203 = vadd.f32 0.0, %v202
    %204 = vdwg.mxu0
    %205 = vmatprep.subr.mxu0 0.0
    %206 = vmatpush1.msra.mxu0 0.0
    %207 = vmatprep.subr.mxu0 0.0
    %208 = vmatpush1.msra.mxu0 0.0
    %209 = vmatprep.subr.mxu0 0.0
    %210 = vmatpush1.msra.mxu0 0.0
    %211 = vmatprep.subr.mxu0 0.0
    %212 = vmatpush1.msra.mxu0 0.0
    %213 = vmatprep.subr.mxu0 0.0
    %214 = vmatpush1.msra.mxu0 0.0
    %215 = vmatprep.subr.mxu0 0.0
    %216 = vmatpush1.msra.mxu0 0.0
    %217 = vmatprep.subr.mxu0 0.0
    %218 = vmatpush1.msra.mxu0 0.0
    %219 = vmatprep.subr.mxu0 0.0
    %220 = vmatpush1.msra.mxu0 0.0
    %221 = vmatprep.subr.mxu0 0.0
    %222 = vmatpush1.msra.mxu0 0.0
    %223 = vmatprep.subr.mxu0 0.0
    %224 = vmatpush1.msra.mxu0 0.0
    %225 = vmatprep.subr.mxu0 0.0
    %226 = vmatpush1.msra.mxu0 0.0
    %227 = vmatprep.subr.mxu0 0.0
    %228 = vmatpush1.msra.mxu0 0.0
    %229 = vmatprep.subr.mxu0 %v128
    %230 = vmatpush1.msra.mxu0 %v127
    %231 = vmatprep.subr.mxu0 %v124
    %232 = vmatpush1.msra.mxu0 %v123
    %233 = vmatprep.subr.mxu0 %v120
    %234 = vmatpush1.msra.mxu0 %v119
    %235 = vmatprep.subr.mxu0 %v116
    %236 = vmatpush1.msra.mxu0 %v115
    %237 = vmatprep.subr.mxu0 0.0
    %238 = vmatpush2.msra.mxu0 0.0
    %239 = vmatprep.subr.mxu0 0.0
    %240 = vmatpush2.msra.mxu0 0.0
    %241 = vmatprep.subr.mxu0 0.0
    %242 = vmatpush2.msra.mxu0 0.0
    %243 = vmatprep.subr.mxu0 0.0
    %244 = vmatpush2.msra.mxu0 0.0
    %245 = vmatprep.subr.mxu0 0.0
    %246 = vmatpush2.msra.mxu0 0.0
    %247 = vmatprep.subr.mxu0 0.0
    %248 = vmatpush2.msra.mxu0 0.0
    %249 = vmatprep.subr.mxu0 0.0
    %250 = vmatpush2.msra.mxu0 0.0
    %251 = vmatprep.subr.mxu0 0.0
    %252 = vmatpush2.msra.mxu0 0.0
    %253 = vmatprep.subr.mxu0 0.0
    %254 = vmatpush2.msra.mxu0 0.0
    %255 = vmatprep.subr.mxu0 0.0
    %256 = vmatpush2.msra.mxu0 0.0
    %257 = vmatprep.subr.mxu0 0.0
    %258 = vmatpush2.msra.mxu0 0.0
    %259 = vmatprep.subr.mxu0 0.0
    %260 = vmatpush2.msra.mxu0 0.0
    %261 = vmatprep.subr.mxu0 0.0
    %262 = vmatpush2.msra.mxu0 0.0
    %263 = vmatprep.subr.mxu0 0.0
    %264 = vmatpush2.msra.mxu0 0.0
    %265 = vmatprep.subr.mxu0 0.0
    %266 = vmatpush2.msra.mxu0 0.0
    %267 = vmatprep.subr.mxu0 0.0
    %268 = vmatpush2.msra.mxu0 0.0
    %269 = vmatprep.mubr.f32.mxu0 0.0
    %270 = vmatmul.mubr.f32.gmra.mxu0 %v132
    %v271 = vpop.f32.mrf.mxu0
    %v272 = vadd.f32 0.0, %v271
    %v273 = vpop.f32.mrf.mxu0
    %v274 = vadd.f32 0.0, %v273
    %275 = vdwg.mxu0
    %v276 = vld [vmem:[%s8] sm:$0xff]
    %v277 = vld [vmem:[%s8 + $0x8] sm:$0xff]
    %v278 = vld [vmem:[%s8 + $0x10] sm:$0xff]
    %v279 = vld [vmem:[%s8 + $0x18] sm:$0xff]
    %v280 = vld [vmem:[%s8 + $0x20] sm:$0xff]
    %v281 = vld [vmem:[%s8 + $0x28] sm:$0xff]
    %v282 = vld [vmem:[%s8 + $0x30] sm:$0xff]
    %v283 = vld [vmem:[%s8 + $0x38] sm:$0xff]
    %v284 = vld [vmem:[%s8 + $0x40] sm:$0xff]
    %v285 = vld [vmem:[%s8 + $0x48] sm:$0xff]
    %v286 = vld [vmem:[%s8 + $0x50] sm:$0xff]
    %v287 = vld [vmem:[%s8 + $0x58] sm:$0xff]
    %v288 = vld [vmem:[%s8 + $0x60] sm:$0xff]
    %v289 = vld [vmem:[%s8 + $0x68] sm:$0xff]
    %v290 = vld [vmem:[%s8 + $0x70] sm:$0xff]
    %v291 = vld [vmem:[%s8 + $0x78] sm:$0xff]
    %v292 = vld [vmem:[%s8 + $0x80] sm:$0xff]
    %v293 = vld [vmem:[%s8 + $0x88] sm:$0xff]
    %v294 = vld [vmem:[%s8 + $0x90] sm:$0xff]
    %v295 = vld [vmem:[%s8 + $0x98] sm:$0xff]
    %v296 = vld [vmem:[%s8 + $0xa0] sm:$0xff]
    %v297 = vld [vmem:[%s8 + $0xa8] sm:$0xff]
    %v298 = vld [vmem:[%s8 + $0xb0] sm:$0xff]
    %v299 = vld [vmem:[%s8 + $0xb8] sm:$0xff]
    %v300 = vld [vmem:[%s8 + $0xc0] sm:$0xff]
    %v301 = vld [vmem:[%s8 + $0xc8] sm:$0xff]
    %v302 = vld [vmem:[%s8 + $0xd0] sm:$0xff]
    %v303 = vld [vmem:[%s8 + $0xd8] sm:$0xff]
    %v304 = vld [vmem:[%s8 + $0xe0] sm:$0xff]
    %v305 = vld [vmem:[%s8 + $0xe8] sm:$0xff]
    %v306 = vld [vmem:[%s8 + $0xf0] sm:$0xff]
    %v307 = vld [vmem:[%s8 + $0xf8] sm:$0xff]
    %v308 = vld [vmem:[%s8 + $0x100] sm:$0xff]
    %v309 = vld [vmem:[%s8 + $0x108] sm:$0xff]
    %v310 = vld [vmem:[%s8 + $0x110] sm:$0xff]
    %v311 = vld [vmem:[%s8 + $0x118] sm:$0xff]
    %v312 = vld [vmem:[%s8 + $0x120] sm:$0xff]
    %v313 = vld [vmem:[%s8 + $0x128] sm:$0xff]
    %v314 = vld [vmem:[%s8 + $0x130] sm:$0xff]
    %v315 = vld [vmem:[%s8 + $0x138] sm:$0xff]
    %v316 = vld [vmem:[%s8 + $0x140] sm:$0xff]
    %v317 = vld [vmem:[%s8 + $0x148] sm:$0xff]
    %v318 = vld [vmem:[%s8 + $0x150] sm:$0xff]
    %v319 = vld [vmem:[%s8 + $0x158] sm:$0xff]
    %v320 = vld [vmem:[%s8 + $0x160] sm:$0xff]
    %v321 = vld [vmem:[%s8 + $0x168] sm:$0xff]
    %v322 = vld [vmem:[%s8 + $0x170] sm:$0xff]
    %v323 = vld [vmem:[%s8 + $0x178] sm:$0xff]
    %v324 = vld [vmem:[%s8 + $0x180] sm:$0xff]
    %v325 = vld [vmem:[%s8 + $0x188] sm:$0xff]
    %v326 = vld [vmem:[%s8 + $0x190] sm:$0xff]
    %v327 = vld [vmem:[%s8 + $0x198] sm:$0xff]
    %v328 = vld [vmem:[%s8 + $0x1a0] sm:$0xff]
    %v329 = vld [vmem:[%s8 + $0x1a8] sm:$0xff]
    %v330 = vld [vmem:[%s8 + $0x1b0] sm:$0xff]
    %v331 = vld [vmem:[%s8 + $0x1b8] sm:$0xff]
    %v332 = vld [vmem:[%s8 + $0x1c0] sm:$0xff]
    %v333 = vld [vmem:[%s8 + $0x1c8] sm:$0xff]
    %v334 = vld [vmem:[%s8 + $0x1d0] sm:$0xff]
    %v335 = vld [vmem:[%s8 + $0x1d8] sm:$0xff]
    %v336 = vld [vmem:[%s8 + $0x1e0] sm:$0xff]
    %v337 = vld [vmem:[%s8 + $0x1e8] sm:$0xff]
    %v338 = vld [vmem:[%s8 + $0x1f0] sm:$0xff]
    %v339 = vld [vmem:[%s8 + $0x1f8] sm:$0xff]
    %340 = vmatprep.subr.mxu0 0.0
    %341 = vmatpush1.msra.mxu0 %v291
    %342 = vmatprep.subr.mxu0 0.0
    %343 = vmatpush1.msra.mxu0 %v290
    %344 = vmatprep.subr.mxu0 0.0
    %345 = vmatpush1.msra.mxu0 %v289
    %346 = vmatprep.subr.mxu0 0.0
    %347 = vmatpush1.msra.mxu0 %v288
    %348 = vmatprep.subr.mxu0 0.0
    %349 = vmatpush1.msra.mxu0 %v287
    %350 = vmatprep.subr.mxu0 0.0
    %351 = vmatpush1.msra.mxu0 %v286
    %352 = vmatprep.subr.mxu0 0.0
    %353 = vmatpush1.msra.mxu0 %v285
    %354 = vmatprep.subr.mxu0 0.0
    %355 = vmatpush1.msra.mxu0 %v284
    %356 = vmatprep.subr.mxu0 0.0
    %357 = vmatpush1.msra.mxu0 %v283
    %358 = vmatprep.subr.mxu0 0.0
    %359 = vmatpush1.msra.mxu0 %v282
    %360 = vmatprep.subr.mxu0 0.0
    %361 = vmatpush1.msra.mxu0 %v281
    %362 = vmatprep.subr.mxu0 0.0
    %363 = vmatpush1.msra.mxu0 %v280
    %364 = vmatprep.subr.mxu0 0.0
    %365 = vmatpush1.msra.mxu0 %v279
    %366 = vmatprep.subr.mxu0 0.0
    %367 = vmatpush1.msra.mxu0 %v278
    %368 = vmatprep.subr.mxu0 0.0
    %369 = vmatpush1.msra.mxu0 %v277
    %370 = vmatprep.subr.mxu0 0.0
    %371 = vmatpush1.msra.mxu0 %v276
    %372 = vmatprep.subr.mxu0 0.0
    %373 = vmatpush2.msra.mxu0 %v307
    %374 = vmatprep.subr.mxu0 0.0
    %375 = vmatpush2.msra.mxu0 %v306
    %376 = vmatprep.subr.mxu0 0.0
    %377 = vmatpush2.msra.mxu0 %v305
    %378 = vmatprep.subr.mxu0 0.0
    %379 = vmatpush2.msra.mxu0 %v304
    %380 = vmatprep.subr.mxu0 0.0
    %381 = vmatpush2.msra.mxu0 %v303
    %382 = vmatprep.subr.mxu0 0.0
    %383 = vmatpush2.msra.mxu0 %v302
    %384 = vmatprep.subr.mxu0 0.0
    %385 = vmatpush2.msra.mxu0 %v301
    %386 = vmatprep.subr.mxu0 0.0
    %387 = vmatpush2.msra.mxu0 %v300
    %388 = vmatprep.subr.mxu0 0.0
    %389 = vmatpush2.msra.mxu0 %v299
    %390 = vmatprep.subr.mxu0 0.0
    %391 = vmatpush2.msra.mxu0 %v298
    %392 = vmatprep.subr.mxu0 0.0
    %393 = vmatpush2.msra.mxu0 %v297
    %394 = vmatprep.subr.mxu0 0.0
    %395 = vmatpush2.msra.mxu0 %v296
    %396 = vmatprep.subr.mxu0 0.0
    %397 = vmatpush2.msra.mxu0 %v295
    %398 = vmatprep.subr.mxu0 0.0
    %399 = vmatpush2.msra.mxu0 %v294
    %400 = vmatprep.subr.mxu0 0.0
    %401 = vmatpush2.msra.mxu0 %v293
    %402 = vmatprep.subr.mxu0 0.0
    %403 = vmatpush2.msra.mxu0 %v292
    %404 = vmatprep.mubr.f32.mxu0 %v203
    %405 = vmatmul.mubr.f32.gmra.mxu0 %v201
    %v406 = vpop.f32.mrf.mxu0
    %v407 = vadd.f32 0.0, %v406
    %v408 = vpop.f32.mrf.mxu0
    %409 = vdwg.mxu0
    %410 = vmatprep.subr.mxu0 0.0
    %411 = vmatpush1.msra.mxu0 %v323
    %412 = vmatprep.subr.mxu0 0.0
    %413 = vmatpush1.msra.mxu0 %v322
    %414 = vmatprep.subr.mxu0 0.0
    %415 = vmatpush1.msra.mxu0 %v321
    %416 = vmatprep.subr.mxu0 0.0
    %417 = vmatpush1.msra.mxu0 %v320
    %418 = vmatprep.subr.mxu0 0.0
    %419 = vmatpush1.msra.mxu0 %v319
    %420 = vmatprep.subr.mxu0 0.0
    %421 = vmatpush1.msra.mxu0 %v318
    %422 = vmatprep.subr.mxu0 0.0
    %423 = vmatpush1.msra.mxu0 %v317
    %424 = vmatprep.subr.mxu0 0.0
    %425 = vmatpush1.msra.mxu0 %v316
    %426 = vmatprep.subr.mxu0 0.0
    %427 = vmatpush1.msra.mxu0 %v315
    %428 = vmatprep.subr.mxu0 0.0
    %429 = vmatpush1.msra.mxu0 %v314
    %430 = vmatprep.subr.mxu0 0.0
    %431 = vmatpush1.msra.mxu0 %v313
    %432 = vmatprep.subr.mxu0 0.0
    %433 = vmatpush1.msra.mxu0 %v312
    %434 = vmatprep.subr.mxu0 0.0
    %435 = vmatpush1.msra.mxu0 %v311
    %436 = vmatprep.subr.mxu0 0.0
    %437 = vmatpush1.msra.mxu0 %v310
    %438 = vmatprep.subr.mxu0 0.0
    %439 = vmatpush1.msra.mxu0 %v309
    %440 = vmatprep.subr.mxu0 0.0
    %441 = vmatpush1.msra.mxu0 %v308
    %442 = vmatprep.subr.mxu0 0.0
    %443 = vmatpush2.msra.mxu0 %v339
    %444 = vmatprep.subr.mxu0 0.0
    %445 = vmatpush2.msra.mxu0 %v338
    %446 = vmatprep.subr.mxu0 0.0
    %447 = vmatpush2.msra.mxu0 %v337
    %448 = vmatprep.subr.mxu0 0.0
    %449 = vmatpush2.msra.mxu0 %v336
    %450 = vmatprep.subr.mxu0 0.0
    %451 = vmatpush2.msra.mxu0 %v335
    %452 = vmatprep.subr.mxu0 0.0
    %453 = vmatpush2.msra.mxu0 %v334
    %454 = vmatprep.subr.mxu0 0.0
    %455 = vmatpush2.msra.mxu0 %v333
    %456 = vmatprep.subr.mxu0 0.0
    %457 = vmatpush2.msra.mxu0 %v332
    %458 = vmatprep.subr.mxu0 0.0
    %459 = vmatpush2.msra.mxu0 %v331
    %460 = vmatprep.subr.mxu0 0.0
    %461 = vmatpush2.msra.mxu0 %v330
    %462 = vmatprep.subr.mxu0 0.0
    %463 = vmatpush2.msra.mxu0 %v329
    %464 = vmatprep.subr.mxu0 0.0
    %465 = vmatpush2.msra.mxu0 %v328
    %466 = vmatprep.subr.mxu0 0.0
    %467 = vmatpush2.msra.mxu0 %v327
    %468 = vmatprep.subr.mxu0 0.0
    %469 = vmatpush2.msra.mxu0 %v326
    %470 = vmatprep.subr.mxu0 0.0
    %471 = vmatpush2.msra.mxu0 %v325
    %472 = vmatprep.subr.mxu0 0.0
    %473 = vmatpush2.msra.mxu0 %v324
    %474 = vmatprep.mubr.f32.mxu0 %v274
    %475 = vmatmul.mubr.f32.gmra.mxu0 %v272
    %v476 = vpop.f32.mrf.mxu0
    %v477 = vadd.f32 %v407, %v476
    %v478 = vpop.f32.mrf.mxu0
    %479 = vdwg.mxu0
    %v480 = vld [vmem:[%s1] sm:$0xff]
    %v481 = vld [vmem:[%s1 + $0x8] sm:$0xff]
    %v482 = vld [vmem:[%s1 + $0x10] sm:$0xff]
    %v483 = vld [vmem:[%s1 + $0x18] sm:$0xff]
    %v484 = vld [vmem:[%s2] sm:$0x1]
    %v486 = vlaneseq
    %v487 = vshrl.u32 %v486, 7
    %v488 = vsub.s32 0, %v487
    %v489 = vrot.slane %v484, %v488
    %v492 = vsel %vm130, %v477, 0
    %494 = vmatprep.subr.mxu0 0.0
    %495 = vmatpush1.msra.mxu0 0.0
    %496 = vmatprep.subr.mxu0 0.0
    %497 = vmatpush1.msra.mxu0 0.0
    %498 = vmatprep.subr.mxu0 0.0
    %499 = vmatpush1.msra.mxu0 0.0
    %500 = vmatprep.subr.mxu0 0.0
    %501 = vmatpush1.msra.mxu0 0.0
    %502 = vmatprep.subr.mxu0 0.0
    %503 = vmatpush1.msra.mxu0 0.0
    %504 = vmatprep.subr.mxu0 0.0
    %505 = vmatpush1.msra.mxu0 0.0
    %506 = vmatprep.subr.mxu0 0.0
    %507 = vmatpush1.msra.mxu0 0.0
    %508 = vmatprep.subr.mxu0 0.0
    %509 = vmatpush1.msra.mxu0 0.0
    %510 = vmatprep.subr.mxu0 0.0
    %511 = vmatpush1.msra.mxu0 0.0
    %512 = vmatprep.subr.mxu0 0.0
    %513 = vmatpush1.msra.mxu0 0.0
    %514 = vmatprep.subr.mxu0 0.0
    %515 = vmatpush1.msra.mxu0 0.0
    %516 = vmatprep.subr.mxu0 0.0
    %517 = vmatpush1.msra.mxu0 0.0
    %518 = vmatprep.subr.mxu0 0.0
    %519 = vmatpush1.msra.mxu0 %v483
    %520 = vmatprep.subr.mxu0 0.0
    %521 = vmatpush1.msra.mxu0 %v482
    %522 = vmatprep.subr.mxu0 0.0
    %523 = vmatpush1.msra.mxu0 %v481
    %524 = vmatprep.subr.mxu0 0.0
    %525 = vmatpush1.msra.mxu0 %v480
    %526 = vmatprep.subr.mxu0 0.0
    %527 = vmatpush2.msra.mxu0 0.0
    %528 = vmatprep.subr.mxu0 0.0
    %529 = vmatpush2.msra.mxu0 0.0
    %530 = vmatprep.subr.mxu0 0.0
    %531 = vmatpush2.msra.mxu0 0.0
    %532 = vmatprep.subr.mxu0 0.0
    %533 = vmatpush2.msra.mxu0 0.0
    %534 = vmatprep.subr.mxu0 0.0
    %535 = vmatpush2.msra.mxu0 0.0
    %536 = vmatprep.subr.mxu0 0.0
    %537 = vmatpush2.msra.mxu0 0.0
    %538 = vmatprep.subr.mxu0 0.0
    %539 = vmatpush2.msra.mxu0 0.0
    %540 = vmatprep.subr.mxu0 0.0
    %541 = vmatpush2.msra.mxu0 0.0
    %542 = vmatprep.subr.mxu0 0.0
    %543 = vmatpush2.msra.mxu0 0.0
    %544 = vmatprep.subr.mxu0 0.0
    %545 = vmatpush2.msra.mxu0 0.0
    %546 = vmatprep.subr.mxu0 0.0
    %547 = vmatpush2.msra.mxu0 0.0
    %548 = vmatprep.subr.mxu0 0.0
    %549 = vmatpush2.msra.mxu0 0.0
    %550 = vmatprep.subr.mxu0 0.0
    %551 = vmatpush2.msra.mxu0 0.0
    %552 = vmatprep.subr.mxu0 0.0
    %553 = vmatpush2.msra.mxu0 0.0
    %554 = vmatprep.subr.mxu0 0.0
    %555 = vmatpush2.msra.mxu0 0.0
    %556 = vmatprep.subr.mxu0 0.0
    %557 = vmatpush2.msra.mxu0 0.0
    %558 = vmatprep.mubr.f32.mxu0 0.0
    %559 = vmatmul.mubr.f32.gmra.mxu0 %v492
    %v560 = vpop.f32.mrf.mxu0
    %v561 = vadd.f32 %v489, %v560
    %v562 = vpop.f32.mrf.mxu0
    %563 = vdwg.mxu0
    %v564 = vmax.f32 %v561, 0.0
    %v565 = vld [vmem:[%s3] sm:$0x3]
    %v566 = vld [vmem:[%s4] sm:$0x1]
    %v568 = vlaneseq
    %v569 = vshrl.u32 %v568, 7
    %v570 = vsub.s32 0, %v569
    %v571 = vrot.slane %v566, %v570
    %vm573 = vcmask 15360
    %v575 = vsel %vm573, %v564, 0
    %vm577 = vcmask 1041408
    %v579 = vsel %vm577, %v565, 0
    %581 = vmatprep.subr.mxu0 0.0
    %582 = vmatpush1.msra.mxu0 0.0
    %583 = vmatprep.subr.mxu0 0.0
    %584 = vmatpush1.msra.mxu0 0.0
    %585 = vmatprep.subr.mxu0 0.0
    %586 = vmatpush1.msra.mxu0 0.0
    %587 = vmatprep.subr.mxu0 0.0
    %588 = vmatpush1.msra.mxu0 0.0
    %589 = vmatprep.subr.mxu0 0.0
    %590 = vmatpush1.msra.mxu0 0.0
    %591 = vmatprep.subr.mxu0 0.0
    %592 = vmatpush1.msra.mxu0 0.0
    %593 = vmatprep.subr.mxu0 0.0
    %594 = vmatpush1.msra.mxu0 0.0
    %595 = vmatprep.subr.mxu0 0.0
    %596 = vmatpush1.msra.mxu0 0.0
    %597 = vmatprep.subr.mxu0 0.0
    %598 = vmatpush1.msra.mxu0 0.0
    %599 = vmatprep.subr.mxu0 0.0
    %600 = vmatpush1.msra.mxu0 0.0
    %601 = vmatprep.subr.mxu0 0.0
    %602 = vmatpush1.msra.mxu0 0.0
    %603 = vmatprep.subr.mxu0 0.0
    %604 = vmatpush1.msra.mxu0 0.0
    %605 = vmatprep.subr.mxu0 0.0
    %606 = vmatpush1.msra.mxu0 0.0
    %607 = vmatprep.subr.mxu0 0.0
    %608 = vmatpush1.msra.mxu0 0.0
    %609 = vmatprep.subr.mxu0 0.0
    %610 = vmatpush1.msra.mxu0 0.0
    %611 = vmatprep.subr.mxu0 0.0
    %612 = vmatpush1.msra.mxu0 %v579
    %613 = vmatprep.subr.mxu0 0.0
    %614 = vmatpush2.msra.mxu0 0.0
    %615 = vmatprep.subr.mxu0 0.0
    %616 = vmatpush2.msra.mxu0 0.0
    %617 = vmatprep.subr.mxu0 0.0
    %618 = vmatpush2.msra.mxu0 0.0
    %619 = vmatprep.subr.mxu0 0.0
    %620 = vmatpush2.msra.mxu0 0.0
    %621 = vmatprep.subr.mxu0 0.0
    %622 = vmatpush2.msra.mxu0 0.0
    %623 = vmatprep.subr.mxu0 0.0
    %624 = vmatpush2.msra.mxu0 0.0
    %625 = vmatprep.subr.mxu0 0.0
    %626 = vmatpush2.msra.mxu0 0.0
    %627 = vmatprep.subr.mxu0 0.0
    %628 = vmatpush2.msra.mxu0 0.0
    %629 = vmatprep.subr.mxu0 0.0
    %630 = vmatpush2.msra.mxu0 0.0
    %631 = vmatprep.subr.mxu0 0.0
    %632 = vmatpush2.msra.mxu0 0.0
    %633 = vmatprep.subr.mxu0 0.0
    %634 = vmatpush2.msra.mxu0 0.0
    %635 = vmatprep.subr.mxu0 0.0
    %636 = vmatpush2.msra.mxu0 0.0
    %637 = vmatprep.subr.mxu0 0.0
    %638 = vmatpush2.msra.mxu0 0.0
    %639 = vmatprep.subr.mxu0 0.0
    %640 = vmatpush2.msra.mxu0 0.0
    %641 = vmatprep.subr.mxu0 0.0
    %642 = vmatpush2.msra.mxu0 0.0
    %643 = vmatprep.subr.mxu0 0.0
    %644 = vmatpush2.msra.mxu0 0.0
    %645 = vmatprep.mubr.f32.mxu0 0.0
    %646 = vmatmul.mubr.f32.gmra.mxu0 %v575
    %v647 = vpop.f32.mrf.mxu0
    %v648 = vadd.f32 %v571, %v647
    %v649 = vpop.f32.mrf.mxu0
    %650 = vdwg.mxu0
    %v651 = vld [vmem:[%s9] sm:$0xff]
    %v652 = vld [vmem:[%s9 + $0x8] sm:$0xff]
    %v653 = vld [vmem:[%s9 + $0x10] sm:$0xff]
    %v654 = vld [vmem:[%s9 + $0x18] sm:$0xff]
    %v655 = vld [vmem:[%s9 + $0x20] sm:$0xff]
    %v656 = vld [vmem:[%s9 + $0x28] sm:$0xff]
    %v657 = vld [vmem:[%s9 + $0x30] sm:$0xff]
    %v658 = vld [vmem:[%s9 + $0x38] sm:$0xff]
    %v659 = vld [vmem:[%s9 + $0x40] sm:$0xff]
    %v660 = vld [vmem:[%s9 + $0x48] sm:$0xff]
    %v661 = vld [vmem:[%s9 + $0x50] sm:$0xff]
    %v662 = vld [vmem:[%s9 + $0x58] sm:$0xff]
    %v663 = vld [vmem:[%s9 + $0x60] sm:$0xff]
    %v664 = vld [vmem:[%s9 + $0x68] sm:$0xff]
    %v665 = vld [vmem:[%s9 + $0x70] sm:$0xff]
    %v666 = vld [vmem:[%s9 + $0x78] sm:$0xff]
    %v668 = vsel %vm130, %v648, 0
    %670 = vmatprep.subr.mxu0 0.0
    %671 = vmatpush1.msra.mxu0 0.0
    %672 = vmatprep.subr.mxu0 0.0
    %673 = vmatpush1.msra.mxu0 0.0
    %674 = vmatprep.subr.mxu0 0.0
    %675 = vmatpush1.msra.mxu0 0.0
    %676 = vmatprep.subr.mxu0 0.0
    %677 = vmatpush1.msra.mxu0 0.0
    %678 = vmatprep.subr.mxu0 0.0
    %679 = vmatpush1.msra.mxu0 0.0
    %680 = vmatprep.subr.mxu0 0.0
    %681 = vmatpush1.msra.mxu0 0.0
    %682 = vmatprep.subr.mxu0 0.0
    %683 = vmatpush1.msra.mxu0 0.0
    %684 = vmatprep.subr.mxu0 0.0
    %685 = vmatpush1.msra.mxu0 0.0
    %686 = vmatprep.subr.mxu0 0.0
    %687 = vmatpush1.msra.mxu0 0.0
    %688 = vmatprep.subr.mxu0 0.0
    %689 = vmatpush1.msra.mxu0 0.0
    %690 = vmatprep.subr.mxu0 0.0
    %691 = vmatpush1.msra.mxu0 0.0
    %692 = vmatprep.subr.mxu0 0.0
    %693 = vmatpush1.msra.mxu0 0.0
    %694 = vmatprep.subr.mxu0 %v664
    %695 = vmatpush1.msra.mxu0 %v663
    %696 = vmatprep.subr.mxu0 %v660
    %697 = vmatpush1.msra.mxu0 %v659
    %698 = vmatprep.subr.mxu0 %v656
    %699 = vmatpush1.msra.mxu0 %v655
    %700 = vmatprep.subr.mxu0 %v652
    %701 = vmatpush1.msra.mxu0 %v651
    %702 = vmatprep.subr.mxu0 0.0
    %703 = vmatpush2.msra.mxu0 0.0
    %704 = vmatprep.subr.mxu0 0.0
    %705 = vmatpush2.msra.mxu0 0.0
    %706 = vmatprep.subr.mxu0 0.0
    %707 = vmatpush2.msra.mxu0 0.0
    %708 = vmatprep.subr.mxu0 0.0
    %709 = vmatpush2.msra.mxu0 0.0
    %710 = vmatprep.subr.mxu0 0.0
    %711 = vmatpush2.msra.mxu0 0.0
    %712 = vmatprep.subr.mxu0 0.0
    %713 = vmatpush2.msra.mxu0 0.0
    %714 = vmatprep.subr.mxu0 0.0
    %715 = vmatpush2.msra.mxu0 0.0
    %716 = vmatprep.subr.mxu0 0.0
    %717 = vmatpush2.msra.mxu0 0.0
    %718 = vmatprep.subr.mxu0 0.0
    %719 = vmatpush2.msra.mxu0 0.0
    %720 = vmatprep.subr.mxu0 0.0
    %721 = vmatpush2.msra.mxu0 0.0
    %722 = vmatprep.subr.mxu0 0.0
    %723 = vmatpush2.msra.mxu0 0.0
    %724 = vmatprep.subr.mxu0 0.0
    %725 = vmatpush2.msra.mxu0 0.0
    %726 = vmatprep.subr.mxu0 0.0
    %727 = vmatpush2.msra.mxu0 0.0
    %728 = vmatprep.subr.mxu0 0.0
    %729 = vmatpush2.msra.mxu0 0.0
    %730 = vmatprep.subr.mxu0 0.0
    %731 = vmatpush2.msra.mxu0 0.0
    %732 = vmatprep.subr.mxu0 0.0
    %733 = vmatpush2.msra.mxu0 0.0
    %734 = vmatprep.mubr.f32.mxu0 0.0
    %735 = vmatmul.mubr.f32.gmra.mxu0 %v668
    %v736 = vpop.f32.mrf.mxu0
    %v737 = vadd.f32 0.0, %v736
    %v738 = vpop.f32.mrf.mxu0
    %v739 = vadd.f32 0.0, %v738
    %740 = vdwg.mxu0
    %741 = vmatprep.subr.mxu0 0.0
    %742 = vmatpush1.msra.mxu0 0.0
    %743 = vmatprep.subr.mxu0 0.0
    %744 = vmatpush1.msra.mxu0 0.0
    %745 = vmatprep.subr.mxu0 0.0
    %746 = vmatpush1.msra.mxu0 0.0
    %747 = vmatprep.subr.mxu0 0.0
    %748 = vmatpush1.msra.mxu0 0.0
    %749 = vmatprep.subr.mxu0 0.0
    %750 = vmatpush1.msra.mxu0 0.0
    %751 = vmatprep.subr.mxu0 0.0
    %752 = vmatpush1.msra.mxu0 0.0
    %753 = vmatprep.subr.mxu0 0.0
    %754 = vmatpush1.msra.mxu0 0.0
    %755 = vmatprep.subr.mxu0 0.0
    %756 = vmatpush1.msra.mxu0 0.0
    %757 = vmatprep.subr.mxu0 0.0
    %758 = vmatpush1.msra.mxu0 0.0
    %759 = vmatprep.subr.mxu0 0.0
    %760 = vmatpush1.msra.mxu0 0.0
    %761 = vmatprep.subr.mxu0 0.0
    %762 = vmatpush1.msra.mxu0 0.0
    %763 = vmatprep.subr.mxu0 0.0
    %764 = vmatpush1.msra.mxu0 0.0
    %765 = vmatprep.subr.mxu0 %v666
    %766 = vmatpush1.msra.mxu0 %v665
    %767 = vmatprep.subr.mxu0 %v662
    %768 = vmatpush1.msra.mxu0 %v661
    %769 = vmatprep.subr.mxu0 %v658
    %770 = vmatpush1.msra.mxu0 %v657
    %771 = vmatprep.subr.mxu0 %v654
    %772 = vmatpush1.msra.mxu0 %v653
    %773 = vmatprep.subr.mxu0 0.0
    %774 = vmatpush2.msra.mxu0 0.0
    %775 = vmatprep.subr.mxu0 0.0
    %776 = vmatpush2.msra.mxu0 0.0
    %777 = vmatprep.subr.mxu0 0.0
    %778 = vmatpush2.msra.mxu0 0.0
    %779 = vmatprep.subr.mxu0 0.0
    %780 = vmatpush2.msra.mxu0 0.0
    %781 = vmatprep.subr.mxu0 0.0
    %782 = vmatpush2.msra.mxu0 0.0
    %783 = vmatprep.subr.mxu0 0.0
    %784 = vmatpush2.msra.mxu0 0.0
    %785 = vmatprep.subr.mxu0 0.0
    %786 = vmatpush2.msra.mxu0 0.0
    %787 = vmatprep.subr.mxu0 0.0
    %788 = vmatpush2.msra.mxu0 0.0
    %789 = vmatprep.subr.mxu0 0.0
    %790 = vmatpush2.msra.mxu0 0.0
    %791 = vmatprep.subr.mxu0 0.0
    %792 = vmatpush2.msra.mxu0 0.0
    %793 = vmatprep.subr.mxu0 0.0
    %794 = vmatpush2.msra.mxu0 0.0
    %795 = vmatprep.subr.mxu0 0.0
    %796 = vmatpush2.msra.mxu0 0.0
    %797 = vmatprep.subr.mxu0 0.0
    %798 = vmatpush2.msra.mxu0 0.0
    %799 = vmatprep.subr.mxu0 0.0
    %800 = vmatpush2.msra.mxu0 0.0
    %801 = vmatprep.subr.mxu0 0.0
    %802 = vmatpush2.msra.mxu0 0.0
    %803 = vmatprep.subr.mxu0 0.0
    %804 = vmatpush2.msra.mxu0 0.0
    %805 = vmatprep.mubr.f32.mxu0 0.0
    %806 = vmatmul.mubr.f32.gmra.mxu0 %v668
    %v807 = vpop.f32.mrf.mxu0
    %v808 = vadd.f32 0.0, %v807
    %v809 = vpop.f32.mrf.mxu0
    %v810 = vadd.f32 0.0, %v809
    %811 = vdwg.mxu0
    %v812 = vld [vmem:[%s5] sm:$0xff]
    %v813 = vld [vmem:[%s5 + $0x8] sm:$0xff]
    %v814 = vld [vmem:[%s5 + $0x10] sm:$0xff]
    %v815 = vld [vmem:[%s5 + $0x18] sm:$0xff]
    %v816 = vld [vmem:[%s5 + $0x20] sm:$0xff]
    %v817 = vld [vmem:[%s5 + $0x28] sm:$0xff]
    %v818 = vld [vmem:[%s5 + $0x30] sm:$0xff]
    %v819 = vld [vmem:[%s5 + $0x38] sm:$0xff]
    %v820 = vld [vmem:[%s5 + $0x40] sm:$0xff]
    %v821 = vld [vmem:[%s5 + $0x48] sm:$0xff]
    %v822 = vld [vmem:[%s5 + $0x50] sm:$0xff]
    %v823 = vld [vmem:[%s5 + $0x58] sm:$0xff]
    %v824 = vld [vmem:[%s5 + $0x60] sm:$0xff]
    %v825 = vld [vmem:[%s5 + $0x68] sm:$0xff]
    %v826 = vld [vmem:[%s5 + $0x70] sm:$0xff]
    %v827 = vld [vmem:[%s5 + $0x78] sm:$0xff]
    %v828 = vld [vmem:[%s5 + $0x80] sm:$0xff]
    %v829 = vld [vmem:[%s5 + $0x88] sm:$0xff]
    %v830 = vld [vmem:[%s5 + $0x90] sm:$0xff]
    %v831 = vld [vmem:[%s5 + $0x98] sm:$0xff]
    %v832 = vld [vmem:[%s5 + $0xa0] sm:$0xff]
    %v833 = vld [vmem:[%s5 + $0xa8] sm:$0xff]
    %v834 = vld [vmem:[%s5 + $0xb0] sm:$0xff]
    %v835 = vld [vmem:[%s5 + $0xb8] sm:$0xff]
    %v836 = vld [vmem:[%s5 + $0xc0] sm:$0xff]
    %v837 = vld [vmem:[%s5 + $0xc8] sm:$0xff]
    %v838 = vld [vmem:[%s5 + $0xd0] sm:$0xff]
    %v839 = vld [vmem:[%s5 + $0xd8] sm:$0xff]
    %v840 = vld [vmem:[%s5 + $0xe0] sm:$0xff]
    %v841 = vld [vmem:[%s5 + $0xe8] sm:$0xff]
    %v842 = vld [vmem:[%s5 + $0xf0] sm:$0xff]
    %v843 = vld [vmem:[%s5 + $0xf8] sm:$0xff]
    %v844 = vld [vmem:[%s5 + $0x100] sm:$0xff]
    %v845 = vld [vmem:[%s5 + $0x108] sm:$0xff]
    %v846 = vld [vmem:[%s5 + $0x110] sm:$0xff]
    %v847 = vld [vmem:[%s5 + $0x118] sm:$0xff]
    %v848 = vld [vmem:[%s5 + $0x120] sm:$0xff]
    %v849 = vld [vmem:[%s5 + $0x128] sm:$0xff]
    %v850 = vld [vmem:[%s5 + $0x130] sm:$0xff]
    %v851 = vld [vmem:[%s5 + $0x138] sm:$0xff]
    %v852 = vld [vmem:[%s5 + $0x140] sm:$0xff]
    %v853 = vld [vmem:[%s5 + $0x148] sm:$0xff]
    %v854 = vld [vmem:[%s5 + $0x150] sm:$0xff]
    %v855 = vld [vmem:[%s5 + $0x158] sm:$0xff]
    %v856 = vld [vmem:[%s5 + $0x160] sm:$0xff]
    %v857 = vld [vmem:[%s5 + $0x168] sm:$0xff]
    %v858 = vld [vmem:[%s5 + $0x170] sm:$0xff]
    %v859 = vld [vmem:[%s5 + $0x178] sm:$0xff]
    %v860 = vld [vmem:[%s5 + $0x180] sm:$0xff]
    %v861 = vld [vmem:[%s5 + $0x188] sm:$0xff]
    %v862 = vld [vmem:[%s5 + $0x190] sm:$0xff]
    %v863 = vld [vmem:[%s5 + $0x198] sm:$0xff]
    %v864 = vld [vmem:[%s5 + $0x1a0] sm:$0xff]
    %v865 = vld [vmem:[%s5 + $0x1a8] sm:$0xff]
    %v866 = vld [vmem:[%s5 + $0x1b0] sm:$0xff]
    %v867 = vld [vmem:[%s5 + $0x1b8] sm:$0xff]
    %v868 = vld [vmem:[%s5 + $0x1c0] sm:$0xff]
    %v869 = vld [vmem:[%s5 + $0x1c8] sm:$0xff]
    %v870 = vld [vmem:[%s5 + $0x1d0] sm:$0xff]
    %v871 = vld [vmem:[%s5 + $0x1d8] sm:$0xff]
    %v872 = vld [vmem:[%s5 + $0x1e0] sm:$0xff]
    %v873 = vld [vmem:[%s5 + $0x1e8] sm:$0xff]
    %v874 = vld [vmem:[%s5 + $0x1f0] sm:$0xff]
    %v875 = vld [vmem:[%s5 + $0x1f8] sm:$0xff]
    %v876 = vld [vmem:[%s6] sm:$0x1]
    %v878 = vlaneseq
    %v879 = vshrl.u32 %v878, 7
    %v880 = vsub.s32 0, %v879
    %v881 = vrot.slane %v876, %v880
    %883 = vmatprep.subr.mxu0 0.0
    %884 = vmatpush1.msra.mxu0 %v827
    %885 = vmatprep.subr.mxu0 0.0
    %886 = vmatpush1.msra.mxu0 %v826
    %887 = vmatprep.subr.mxu0 0.0
    %888 = vmatpush1.msra.mxu0 %v825
    %889 = vmatprep.subr.mxu0 0.0
    %890 = vmatpush1.msra.mxu0 %v824
    %891 = vmatprep.subr.mxu0 0.0
    %892 = vmatpush1.msra.mxu0 %v823
    %893 = vmatprep.subr.mxu0 0.0
    %894 = vmatpush1.msra.mxu0 %v822
    %895 = vmatprep.subr.mxu0 0.0
    %896 = vmatpush1.msra.mxu0 %v821
    %897 = vmatprep.subr.mxu0 0.0
    %898 = vmatpush1.msra.mxu0 %v820
    %899 = vmatprep.subr.mxu0 0.0
    %900 = vmatpush1.msra.mxu0 %v819
    %901 = vmatprep.subr.mxu0 0.0
    %902 = vmatpush1.msra.mxu0 %v818
    %903 = vmatprep.subr.mxu0 0.0
    %904 = vmatpush1.msra.mxu0 %v817
    %905 = vmatprep.subr.mxu0 0.0
    %906 = vmatpush1.msra.mxu0 %v816
    %907 = vmatprep.subr.mxu0 0.0
    %908 = vmatpush1.msra.mxu0 %v815
    %909 = vmatprep.subr.mxu0 0.0
    %910 = vmatpush1.msra.mxu0 %v814
    %911 = vmatprep.subr.mxu0 0.0
    %912 = vmatpush1.msra.mxu0 %v813
    %913 = vmatprep.subr.mxu0 0.0
    %914 = vmatpush1.msra.mxu0 %v812
    %915 = vmatprep.subr.mxu0 0.0
    %916 = vmatpush2.msra.mxu0 %v843
    %917 = vmatprep.subr.mxu0 0.0
    %918 = vmatpush2.msra.mxu0 %v842
    %919 = vmatprep.subr.mxu0 0.0
    %920 = vmatpush2.msra.mxu0 %v841
    %921 = vmatprep.subr.mxu0 0.0
    %922 = vmatpush2.msra.mxu0 %v840
    %923 = vmatprep.subr.mxu0 0.0
    %924 = vmatpush2.msra.mxu0 %v839
    %925 = vmatprep.subr.mxu0 0.0
    %926 = vmatpush2.msra.mxu0 %v838
    %927 = vmatprep.subr.mxu0 0.0
    %928 = vmatpush2.msra.mxu0 %v837
    %929 = vmatprep.subr.mxu0 0.0
    %930 = vmatpush2.msra.mxu0 %v836
    %931 = vmatprep.subr.mxu0 0.0
    %932 = vmatpush2.msra.mxu0 %v835
    %933 = vmatprep.subr.mxu0 0.0
    %934 = vmatpush2.msra.mxu0 %v834
    %935 = vmatprep.subr.mxu0 0.0
    %936 = vmatpush2.msra.mxu0 %v833
    %937 = vmatprep.subr.mxu0 0.0
    %938 = vmatpush2.msra.mxu0 %v832
    %939 = vmatprep.subr.mxu0 0.0
    %940 = vmatpush2.msra.mxu0 %v831
    %941 = vmatprep.subr.mxu0 0.0
    %942 = vmatpush2.msra.mxu0 %v830
    %943 = vmatprep.subr.mxu0 0.0
    %944 = vmatpush2.msra.mxu0 %v829
    %945 = vmatprep.subr.mxu0 0.0
    %946 = vmatpush2.msra.mxu0 %v828
    %947 = vmatprep.mubr.f32.mxu0 %v114
    %948 = vmatmul.mubr.f32.gmra.mxu0 %v113
    %v949 = vpop.f32.mrf.mxu0
    %v950 = vadd.f32 %v881, %v949
    %v951 = vpop.f32.mrf.mxu0
    %952 = vmatprep.mubr.f32.mxu0 %v118
    %953 = vmatmul.mubr.f32.gmra.mxu0 %v117
    %v954 = vpop.f32.mrf.mxu0
    %v955 = vadd.f32 %v881, %v954
    %v956 = vpop.f32.mrf.mxu0
    %957 = vmatprep.mubr.f32.mxu0 %v122
    %958 = vmatmul.mubr.f32.gmra.mxu0 %v121
    %v959 = vpop.f32.mrf.mxu0
    %v960 = vadd.f32 %v881, %v959
    %v961 = vpop.f32.mrf.mxu0
    %962 = vmatprep.mubr.f32.mxu0 %v126
    %963 = vmatmul.mubr.f32.gmra.mxu0 %v125
    %v964 = vpop.f32.mrf.mxu0
    %v965 = vadd.f32 %v881, %v964
    %v966 = vpop.f32.mrf.mxu0
    %967 = vdwg.mxu0
    %968 = vmatprep.subr.mxu0 0.0
    %969 = vmatpush1.msra.mxu0 %v859
    %970 = vmatprep.subr.mxu0 0.0
    %971 = vmatpush1.msra.mxu0 %v858
    %972 = vmatprep.subr.mxu0 0.0
    %973 = vmatpush1.msra.mxu0 %v857
    %974 = vmatprep.subr.mxu0 0.0
    %975 = vmatpush1.msra.mxu0 %v856
    %976 = vmatprep.subr.mxu0 0.0
    %977 = vmatpush1.msra.mxu0 %v855
    %978 = vmatprep.subr.mxu0 0.0
    %979 = vmatpush1.msra.mxu0 %v854
    %980 = vmatprep.subr.mxu0 0.0
    %981 = vmatpush1.msra.mxu0 %v853
    %982 = vmatprep.subr.mxu0 0.0
    %983 = vmatpush1.msra.mxu0 %v852
    %984 = vmatprep.subr.mxu0 0.0
    %985 = vmatpush1.msra.mxu0 %v851
    %986 = vmatprep.subr.mxu0 0.0
    %987 = vmatpush1.msra.mxu0 %v850
    %988 = vmatprep.subr.mxu0 0.0
    %989 = vmatpush1.msra.mxu0 %v849
    %990 = vmatprep.subr.mxu0 0.0
    %991 = vmatpush1.msra.mxu0 %v848
    %992 = vmatprep.subr.mxu0 0.0
    %993 = vmatpush1.msra.mxu0 %v847
    %994 = vmatprep.subr.mxu0 0.0
    %995 = vmatpush1.msra.mxu0 %v846
    %996 = vmatprep.subr.mxu0 0.0
    %997 = vmatpush1.msra.mxu0 %v845
    %998 = vmatprep.subr.mxu0 0.0
    %999 = vmatpush1.msra.mxu0 %v844
    %1000 = vmatprep.subr.mxu0 0.0
    %1001 = vmatpush2.msra.mxu0 %v875
    %1002 = vmatprep.subr.mxu0 0.0
    %1003 = vmatpush2.msra.mxu0 %v874
    %1004 = vmatprep.subr.mxu0 0.0
    %1005 = vmatpush2.msra.mxu0 %v873
    %1006 = vmatprep.subr.mxu0 0.0
    %1007 = vmatpush2.msra.mxu0 %v872
    %1008 = vmatprep.subr.mxu0 0.0
    %1009 = vmatpush2.msra.mxu0 %v871
    %1010 = vmatprep.subr.mxu0 0.0
    %1011 = vmatpush2.msra.mxu0 %v870
    %1012 = vmatprep.subr.mxu0 0.0
    %1013 = vmatpush2.msra.mxu0 %v869
    %1014 = vmatprep.subr.mxu0 0.0
    %1015 = vmatpush2.msra.mxu0 %v868
    %1016 = vmatprep.subr.mxu0 0.0
    %1017 = vmatpush2.msra.mxu0 %v867
    %1018 = vmatprep.subr.mxu0 0.0
    %1019 = vmatpush2.msra.mxu0 %v866
    %1020 = vmatprep.subr.mxu0 0.0
    %1021 = vmatpush2.msra.mxu0 %v865
    %1022 = vmatprep.subr.mxu0 0.0
    %1023 = vmatpush2.msra.mxu0 %v864
    %1024 = vmatprep.subr.mxu0 0.0
    %1025 = vmatpush2.msra.mxu0 %v863
    %1026 = vmatprep.subr.mxu0 0.0
    %1027 = vmatpush2.msra.mxu0 %v862
    %1028 = vmatprep.subr.mxu0 0.0
    %1029 = vmatpush2.msra.mxu0 %v861
    %1030 = vmatprep.subr.mxu0 0.0
    %1031 = vmatpush2.msra.mxu0 %v860
    %1032 = vmatprep.mubr.f32.mxu0 %v116
    %1033 = vmatmul.mubr.f32.gmra.mxu0 %v115
    %v1034 = vpop.f32.mrf.mxu0
    %v1035 = vadd.f32 %v950, %v1034
    %v1036 = vpop.f32.mrf.mxu0
    %1037 = vmatprep.mubr.f32.mxu0 %v120
    %1038 = vmatmul.mubr.f32.gmra.mxu0 %v119
    %v1039 = vpop.f32.mrf.mxu0
    %v1040 = vadd.f32 %v955, %v1039
    %v1041 = vpop.f32.mrf.mxu0
    %1042 = vmatprep.mubr.f32.mxu0 %v124
    %1043 = vmatmul.mubr.f32.gmra.mxu0 %v123
    %v1044 = vpop.f32.mrf.mxu0
    %v1045 = vadd.f32 %v960, %v1044
    %v1046 = vpop.f32.mrf.mxu0
    %1047 = vmatprep.mubr.f32.mxu0 %v128
    %1048 = vmatmul.mubr.f32.gmra.mxu0 %v127
    %v1049 = vpop.f32.mrf.mxu0
    %v1050 = vadd.f32 %v965, %v1049
    %v1051 = vpop.f32.mrf.mxu0
    %1052 = vdwg.mxu0
    %v1053 = vmax.f32 %v1035, 0.0
    %v1054 = vmax.f32 %v1040, 0.0
    %v1055 = vmax.f32 %v1045, 0.0
    %v1056 = vmax.f32 %v1050, 0.0
    %vm1057 = vcmask 457728
    %1058 = vst.msk [vmem:[#allocation2] sm:$0xff] %vm1057, 0.0
    %1059 = vst.msk [vmem:[#allocation2 + $0x8] sm:$0xff] %vm1057, 0.0
    %1060 = vst.msk [vmem:[#allocation2 + $0x10] sm:$0xff] %vm1057, 0.0
    %1061 = vst.msk [vmem:[#allocation2 + $0x18] sm:$0xff] %vm1057, 0.0
    %1062 = vst.msk [vmem:[#allocation2 + $0x20] sm:$0xff] %vm1057, 0.0
    %1063 = vst.msk [vmem:[#allocation2 + $0x28] sm:$0xff] %vm1057, 0.0
    %1066 = vrot.lane.b32.xlu0 %v1053, 4
    %v1067 = vpop.permute.xlu0 %1066
    %1068 = vrot.lane.b32.xlu0 %v1054, 4
    %v1069 = vpop.permute.xlu0 %1068
    %vm1072 = vcmask 162848
    %1073 = vst.msk [vmem:[#allocation2 + $0x4] sm:$0xff] %vm1072, %v1067
    %1074 = vst.msk [vmem:[#allocation2 + $0xc] sm:$0xff] %vm1072, %v1069
    %1075 = vrot.lane.b32.xlu0 %v1053, 116
    %v1076 = vpop.permute.xlu0 %1075
    %1077 = vrot.lane.b32.xlu0 %v1054, 116
    %v1078 = vpop.permute.xlu0 %1077
    %s1081 = scalar_lea.vmem [#allocation2], 24
    %1082 = vst.msk [vmem:[%s1081 + $0x4] sm:$0xff] %vm1072, %v1076
    %1083 = vst.msk [vmem:[%s1081 + $0xc] sm:$0xff] %vm1072, %v1078
    %1086 = vrot.lane.b32.xlu0 %v1055, 28
    %v1087 = vpop.permute.xlu0 %1086
    %1088 = vrot.lane.b32.xlu0 %v1056, 28
    %v1089 = vpop.permute.xlu0 %1088
    %vm1092 = vcmask 359648
    %1093 = vst.msk [vmem:[#allocation2 + $0x4] sm:$0xff] %vm1092, %v1087
    %1094 = vst.msk [vmem:[#allocation2 + $0xc] sm:$0xff] %vm1092, %v1089
    %1095 = vrot.lane.b32.xlu0 %v1055, 12
    %v1096 = vpop.permute.xlu0 %1095
    %1097 = vrot.lane.b32.xlu0 %v1056, 12
    %v1098 = vpop.permute.xlu0 %1097
    %1101 = vst.msk [vmem:[%s1081 + $0x4] sm:$0xff] %vm1092, %v1096
    %1102 = vst.msk [vmem:[%s1081 + $0xc] sm:$0xff] %vm1092, %v1098
    %v1103 = vld [vmem:[#allocation2] sm:$0xff]
    %v1104 = vld [vmem:[#allocation2 + $0x8] sm:$0xff]
    %s1105 = sld [smem:[#allocation3]]
    %v1106 = vstv %s1105
    %v1107 = vmul.f32 %v1106, %v1103
    %v1108 = vmul.f32 %v1106, %v1104
    %v1109 = vadd.f32 %v1107, 0.0
    %v1110 = vadd.f32 %v1108, 0.0
    %s1111 = sld [smem:[#allocation3 + $0x1]]
    %v1112 = vstv %s1111
    %v1113 = vmul.f32 %v1112, %v1103
    %v1114 = vmul.f32 %v1112, %v1104
    %v1115 = vadd.f32 %v1113, 0.0
    %v1116 = vadd.f32 %v1114, 0.0
    %s1117 = sld [smem:[#allocation3 + $0x4]]
    %v1118 = vstv %s1117
    %v1119 = vmul.f32 %v1118, %v1103
    %v1120 = vmul.f32 %v1118, %v1104
    %1123 = vrot.lane.b32.xlu0 %v1119, 124
    %v1124 = vpop.permute.xlu0 %1123
    %1125 = vrot.lane.b32.xlu0 %v1120, 124
    %v1126 = vpop.permute.xlu0 %1125
    %v1129 = vadd.f32 %v1109, %v1124
    %v1130 = vadd.f32 %v1110, %v1126
    %s1131 = sld [smem:[#allocation3 + $0x5]]
    %v1132 = vstv %s1131
    %v1133 = vmul.f32 %v1132, %v1103
    %v1134 = vmul.f32 %v1132, %v1104
    %1137 = vrot.lane.b32.xlu0 %v1133, 124
    %v1138 = vpop.permute.xlu0 %1137
    %1139 = vrot.lane.b32.xlu0 %v1134, 124
    %v1140 = vpop.permute.xlu0 %1139
    %v1143 = vadd.f32 %v1115, %v1138
    %v1144 = vadd.f32 %v1116, %v1140
    %s1145 = sld [smem:[#allocation3 + $0x8]]
    %v1146 = vstv %s1145
    %v1147 = vmul.f32 %v1146, %v1103
    %v1148 = vmul.f32 %v1146, %v1104
    %1151 = vrot.lane.b32.xlu0 %v1147, 120
    %v1152 = vpop.permute.xlu0 %1151
    %1153 = vrot.lane.b32.xlu0 %v1148, 120
    %v1154 = vpop.permute.xlu0 %1153
    %v1157 = vadd.f32 %v1129, %v1152
    %v1158 = vadd.f32 %v1130, %v1154
    %s1159 = sld [smem:[#allocation3 + $0x9]]
    %v1160 = vstv %s1159
    %v1161 = vmul.f32 %v1160, %v1103
    %v1162 = vmul.f32 %v1160, %v1104
    %1165 = vrot.lane.b32.xlu0 %v1161, 120
    %v1166 = vpop.permute.xlu0 %1165
    %1167 = vrot.lane.b32.xlu0 %v1162, 120
    %v1168 = vpop.permute.xlu0 %1167
    %v1171 = vadd.f32 %v1143, %v1166
    %v1172 = vadd.f32 %v1144, %v1168
    %v1173 = vld [vmem:[#allocation2 + $0x4] sm:$0xff]
    %v1174 = vld [vmem:[#allocation2 + $0xc] sm:$0xff]
    %s1175 = sld [smem:[#allocation3 + $0xc]]
    %v1176 = vstv %s1175
    %v1177 = vmul.f32 %v1176, %v1173
    %v1178 = vmul.f32 %v1176, %v1174
    %v1179 = vadd.f32 %v1157, %v1177
    %v1180 = vadd.f32 %v1158, %v1178
    %s1181 = sld [smem:[#allocation3 + $0xd]]
    %v1182 = vstv %s1181
    %v1183 = vmul.f32 %v1182, %v1173
    %v1184 = vmul.f32 %v1182, %v1174
    %v1185 = vadd.f32 %v1171, %v1183
    %v1186 = vadd.f32 %v1172, %v1184
    %s1187 = sld [smem:[#allocation3 + $0x10]]
    %v1188 = vstv %s1187
    %v1189 = vmul.f32 %v1188, %v1173
    %v1190 = vmul.f32 %v1188, %v1174
    %1193 = vrot.lane.b32.xlu0 %v1189, 124
    %v1194 = vpop.permute.xlu0 %1193
    %1195 = vrot.lane.b32.xlu0 %v1190, 124
    %v1196 = vpop.permute.xlu0 %1195
    %v1199 = vadd.f32 %v1179, %v1194
    %v1200 = vadd.f32 %v1180, %v1196
    %s1201 = sld [smem:[#allocation3 + $0x11]]
    %v1202 = vstv %s1201
    %v1203 = vmul.f32 %v1202, %v1173
    %v1204 = vmul.f32 %v1202, %v1174
    %1207 = vrot.lane.b32.xlu0 %v1203, 124
    %v1208 = vpop.permute.xlu0 %1207
    %1209 = vrot.lane.b32.xlu0 %v1204, 124
    %v1210 = vpop.permute.xlu0 %1209
    %v1213 = vadd.f32 %v1185, %v1208
    %v1214 = vadd.f32 %v1186, %v1210
    %s1215 = sld [smem:[#allocation3 + $0x14]]
    %v1216 = vstv %s1215
    %v1217 = vmul.f32 %v1216, %v1173
    %v1218 = vmul.f32 %v1216, %v1174
    %1221 = vrot.lane.b32.xlu0 %v1217, 120
    %v1222 = vpop.permute.xlu0 %1221
    %1223 = vrot.lane.b32.xlu0 %v1218, 120
    %v1224 = vpop.permute.xlu0 %1223
    %v1227 = vadd.f32 %v1199, %v1222
    %v1228 = vadd.f32 %v1200, %v1224
    %s1229 = sld [smem:[#allocation3 + $0x15]]
    %v1230 = vstv %s1229
    %v1231 = vmul.f32 %v1230, %v1173
    %v1232 = vmul.f32 %v1230, %v1174
    %1235 = vrot.lane.b32.xlu0 %v1231, 120
    %v1236 = vpop.permute.xlu0 %1235
    %1237 = vrot.lane.b32.xlu0 %v1232, 120
    %v1238 = vpop.permute.xlu0 %1237
    %v1241 = vadd.f32 %v1213, %v1236
    %v1242 = vadd.f32 %v1214, %v1238
    %v1243 = vld [vmem:[#allocation2 + $0x8] sm:$0xff]
    %v1244 = vld [vmem:[#allocation2 + $0x10] sm:$0xff]
    %s1245 = sld [smem:[#allocation3 + $0x18]]
    %v1246 = vstv %s1245
    %v1247 = vmul.f32 %v1246, %v1243
    %v1248 = vmul.f32 %v1246, %v1244
    %v1249 = vadd.f32 %v1227, %v1247
    %v1250 = vadd.f32 %v1228, %v1248
    %s1251 = sld [smem:[#allocation3 + $0x19]]
    %v1252 = vstv %s1251
    %v1253 = vmul.f32 %v1252, %v1243
    %v1254 = vmul.f32 %v1252, %v1244
    %v1255 = vadd.f32 %v1241, %v1253
    %v1256 = vadd.f32 %v1242, %v1254
    %s1257 = sld [smem:[#allocation3 + $0x1c]]
    %v1258 = vstv %s1257
    %v1259 = vmul.f32 %v1258, %v1243
    %v1260 = vmul.f32 %v1258, %v1244
    %1263 = vrot.lane.b32.xlu0 %v1259, 124
    %v1264 = vpop.permute.xlu0 %1263
    %1265 = vrot.lane.b32.xlu0 %v1260, 124
    %v1266 = vpop.permute.xlu0 %1265
    %v1269 = vadd.f32 %v1249, %v1264
    %v1270 = vadd.f32 %v1250, %v1266
    %s1271 = sld [smem:[#allocation3 + $0x1d]]
    %v1272 = vstv %s1271
    %v1273 = vmul.f32 %v1272, %v1243
    %v1274 = vmul.f32 %v1272, %v1244
    %1277 = vrot.lane.b32.xlu0 %v1273, 124
    %v1278 = vpop.permute.xlu0 %1277
    %1279 = vrot.lane.b32.xlu0 %v1274, 124
    %v1280 = vpop.permute.xlu0 %1279
    %v1283 = vadd.f32 %v1255, %v1278
    %v1284 = vadd.f32 %v1256, %v1280
    %s1285 = sld [smem:[#allocation3 + $0x20]]
    %v1286 = vstv %s1285
    %v1287 = vmul.f32 %v1286, %v1243
    %v1288 = vmul.f32 %v1286, %v1244
    %1291 = vrot.lane.b32.xlu0 %v1287, 120
    %v1292 = vpop.permute.xlu0 %1291
    %1293 = vrot.lane.b32.xlu0 %v1288, 120
    %v1294 = vpop.permute.xlu0 %1293
    %v1297 = vadd.f32 %v1269, %v1292
    %v1298 = vadd.f32 %v1270, %v1294
    %s1299 = sld [smem:[#allocation3 + $0x21]]
    %v1300 = vstv %s1299
    %v1301 = vmul.f32 %v1300, %v1243
    %v1302 = vmul.f32 %v1300, %v1244
    %1305 = vrot.lane.b32.xlu0 %v1301, 120
    %v1306 = vpop.permute.xlu0 %1305
    %1307 = vrot.lane.b32.xlu0 %v1302, 120
    %v1308 = vpop.permute.xlu0 %1307
    %v1311 = vadd.f32 %v1283, %v1306
    %v1312 = vadd.f32 %v1284, %v1308
    %v1313 = vld [vmem:[%s1081] sm:$0xff]
    %v1314 = vld [vmem:[%s1081 + $0x8] sm:$0xff]
    %s1315 = sld [smem:[#allocation3 + $0x2]]
    %v1316 = vstv %s1315
    %v1317 = vmul.f32 %v1316, %v1313
    %v1318 = vmul.f32 %v1316, %v1314
    %v1319 = vadd.f32 %v1297, %v1317
    %v1320 = vadd.f32 %v1298, %v1318
    %s1321 = sld [smem:[#allocation3 + $0x3]]
    %v1322 = vstv %s1321
    %v1323 = vmul.f32 %v1322, %v1313
    %v1324 = vmul.f32 %v1322, %v1314
    %v1325 = vadd.f32 %v1311, %v1323
    %v1326 = vadd.f32 %v1312, %v1324
    %s1327 = sld [smem:[#allocation3 + $0x6]]
    %v1328 = vstv %s1327
    %v1329 = vmul.f32 %v1328, %v1313
    %v1330 = vmul.f32 %v1328, %v1314
    %1333 = vrot.lane.b32.xlu0 %v1329, 124
    %v1334 = vpop.permute.xlu0 %1333
    %1335 = vrot.lane.b32.xlu0 %v1330, 124
    %v1336 = vpop.permute.xlu0 %1335
    %v1339 = vadd.f32 %v1319, %v1334
    %v1340 = vadd.f32 %v1320, %v1336
    %s1341 = sld [smem:[#allocation3 + $0x7]]
    %v1342 = vstv %s1341
    %v1343 = vmul.f32 %v1342, %v1313
    %v1344 = vmul.f32 %v1342, %v1314
    %1347 = vrot.lane.b32.xlu0 %v1343, 124
    %v1348 = vpop.permute.xlu0 %1347
    %1349 = vrot.lane.b32.xlu0 %v1344, 124
    %v1350 = vpop.permute.xlu0 %1349
    %v1353 = vadd.f32 %v1325, %v1348
    %v1354 = vadd.f32 %v1326, %v1350
    %s1355 = sld [smem:[#allocation3 + $0xa]]
    %v1356 = vstv %s1355
    %v1357 = vmul.f32 %v1356, %v1313
    %v1358 = vmul.f32 %v1356, %v1314
    %1361 = vrot.lane.b32.xlu0 %v1357, 120
    %v1362 = vpop.permute.xlu0 %1361
    %1363 = vrot.lane.b32.xlu0 %v1358, 120
    %v1364 = vpop.permute.xlu0 %1363
    %v1367 = vadd.f32 %v1339, %v1362
    %v1368 = vadd.f32 %v1340, %v1364
    %s1369 = sld [smem:[#allocation3 + $0xb]]
    %v1370 = vstv %s1369
    %v1371 = vmul.f32 %v1370, %v1313
    %v1372 = vmul.f32 %v1370, %v1314
    %1375 = vrot.lane.b32.xlu0 %v1371, 120
    %v1376 = vpop.permute.xlu0 %1375
    %1377 = vrot.lane.b32.xlu0 %v1372, 120
    %v1378 = vpop.permute.xlu0 %1377
    %v1381 = vadd.f32 %v1353, %v1376
    %v1382 = vadd.f32 %v1354, %v1378
    %v1383 = vld [vmem:[%s1081 + $0x4] sm:$0xff]
    %v1384 = vld [vmem:[%s1081 + $0xc] sm:$0xff]
    %s1385 = sld [smem:[#allocation3 + $0xe]]
    %v1386 = vstv %s1385
    %v1387 = vmul.f32 %v1386, %v1383
    %v1388 = vmul.f32 %v1386, %v1384
    %v1389 = vadd.f32 %v1367, %v1387
    %v1390 = vadd.f32 %v1368, %v1388
    %s1391 = sld [smem:[#allocation3 + $0xf]]
    %v1392 = vstv %s1391
    %v1393 = vmul.f32 %v1392, %v1383
    %v1394 = vmul.f32 %v1392, %v1384
    %v1395 = vadd.f32 %v1381, %v1393
    %v1396 = vadd.f32 %v1382, %v1394
    %s1397 = sld [smem:[#allocation3 + $0x12]]
    %v1398 = vstv %s1397
    %v1399 = vmul.f32 %v1398, %v1383
    %v1400 = vmul.f32 %v1398, %v1384
    %1403 = vrot.lane.b32.xlu0 %v1399, 124
    %v1404 = vpop.permute.xlu0 %1403
    %1405 = vrot.lane.b32.xlu0 %v1400, 124
    %v1406 = vpop.permute.xlu0 %1405
    %v1409 = vadd.f32 %v1389, %v1404
    %v1410 = vadd.f32 %v1390, %v1406
    %s1411 = sld [smem:[#allocation3 + $0x13]]
    %v1412 = vstv %s1411
    %v1413 = vmul.f32 %v1412, %v1383
    %v1414 = vmul.f32 %v1412, %v1384
    %1417 = vrot.lane.b32.xlu0 %v1413, 124
    %v1418 = vpop.permute.xlu0 %1417
    %1419 = vrot.lane.b32.xlu0 %v1414, 124
    %v1420 = vpop.permute.xlu0 %1419
    %v1423 = vadd.f32 %v1395, %v1418
    %v1424 = vadd.f32 %v1396, %v1420
    %s1425 = sld [smem:[#allocation3 + $0x16]]
    %v1426 = vstv %s1425
    %v1427 = vmul.f32 %v1426, %v1383
    %v1428 = vmul.f32 %v1426, %v1384
    %1431 = vrot.lane.b32.xlu0 %v1427, 120
    %v1432 = vpop.permute.xlu0 %1431
    %1433 = vrot.lane.b32.xlu0 %v1428, 120
    %v1434 = vpop.permute.xlu0 %1433
    %v1437 = vadd.f32 %v1409, %v1432
    %v1438 = vadd.f32 %v1410, %v1434
    %s1439 = sld [smem:[#allocation3 + $0x17]]
    %v1440 = vstv %s1439
    %v1441 = vmul.f32 %v1440, %v1383
    %v1442 = vmul.f32 %v1440, %v1384
    %1445 = vrot.lane.b32.xlu0 %v1441, 120
    %v1446 = vpop.permute.xlu0 %1445
    %1447 = vrot.lane.b32.xlu0 %v1442, 120
    %v1448 = vpop.permute.xlu0 %1447
    %v1451 = vadd.f32 %v1423, %v1446
    %v1452 = vadd.f32 %v1424, %v1448
    %v1453 = vld [vmem:[%s1081 + $0x8] sm:$0xff]
    %v1454 = vld [vmem:[%s1081 + $0x10] sm:$0xff]
    %s1455 = sld [smem:[#allocation3 + $0x1a]]
    %v1456 = vstv %s1455
    %v1457 = vmul.f32 %v1456, %v1453
    %v1458 = vmul.f32 %v1456, %v1454
    %v1459 = vadd.f32 %v1437, %v1457
    %v1460 = vadd.f32 %v1438, %v1458
    %s1461 = sld [smem:[#allocation3 + $0x1b]]
    %v1462 = vstv %s1461
    %v1463 = vmul.f32 %v1462, %v1453
    %v1464 = vmul.f32 %v1462, %v1454
    %v1465 = vadd.f32 %v1451, %v1463
    %v1466 = vadd.f32 %v1452, %v1464
    %s1467 = sld [smem:[#allocation3 + $0x1e]]
    %v1468 = vstv %s1467
    %v1469 = vmul.f32 %v1468, %v1453
    %v1470 = vmul.f32 %v1468, %v1454
    %1473 = vrot.lane.b32.xlu0 %v1469, 124
    %v1474 = vpop.permute.xlu0 %1473
    %1475 = vrot.lane.b32.xlu0 %v1470, 124
    %v1476 = vpop.permute.xlu0 %1475
    %v1479 = vadd.f32 %v1459, %v1474
    %v1480 = vadd.f32 %v1460, %v1476
    %s1481 = sld [smem:[#allocation3 + $0x1f]]
    %v1482 = vstv %s1481
    %v1483 = vmul.f32 %v1482, %v1453
    %v1484 = vmul.f32 %v1482, %v1454
    %1487 = vrot.lane.b32.xlu0 %v1483, 124
    %v1488 = vpop.permute.xlu0 %1487
    %1489 = vrot.lane.b32.xlu0 %v1484, 124
    %v1490 = vpop.permute.xlu0 %1489
    %v1493 = vadd.f32 %v1465, %v1488
    %v1494 = vadd.f32 %v1466, %v1490
    %s1495 = sld [smem:[#allocation3 + $0x22]]
    %v1496 = vstv %s1495
    %v1497 = vmul.f32 %v1496, %v1453
    %v1498 = vmul.f32 %v1496, %v1454
    %1501 = vrot.lane.b32.xlu0 %v1497, 120
    %v1502 = vpop.permute.xlu0 %1501
    %1503 = vrot.lane.b32.xlu0 %v1498, 120
    %v1504 = vpop.permute.xlu0 %1503
    %v1507 = vadd.f32 %v1479, %v1502
    %v1508 = vadd.f32 %v1480, %v1504
    %s1509 = sld [smem:[#allocation3 + $0x23]]
    %v1510 = vstv %s1509
    %v1511 = vmul.f32 %v1510, %v1453
    %v1512 = vmul.f32 %v1510, %v1454
    %1515 = vrot.lane.b32.xlu0 %v1511, 120
    %v1516 = vpop.permute.xlu0 %1515
    %1517 = vrot.lane.b32.xlu0 %v1512, 120
    %v1518 = vpop.permute.xlu0 %1517
    %v1521 = vadd.f32 %v1493, %v1516
    %v1522 = vadd.f32 %v1494, %v1518
    %s1523 = sld [smem:[#allocation6]]
    %v1524 = vstv %s1523
    %v1525 = vadd.f32 %v1507, %v1524
    %v1526 = vadd.f32 %v1508, %v1524
    %v1527 = vmax.f32 %v1525, 0.0
    %v1528 = vmax.f32 %v1526, 0.0
    %s1529 = sld [smem:[#allocation6 + $0x1]]
    %v1530 = vstv %s1529
    %v1531 = vadd.f32 %v1521, %v1530
    %v1532 = vadd.f32 %v1522, %v1530
    %v1533 = vmax.f32 %v1531, 0.0
    %v1534 = vmax.f32 %v1532, 0.0
    %1537 = vrot.lane.b32.xlu0 %v1527, 4
    %v1538 = vpop.permute.xlu0 %1537
    %1539 = vrot.lane.b32.xlu0 %v1528, 4
    %v1540 = vpop.permute.xlu0 %1539
    %1543 = vst.msk [vmem:[#allocation2 + $0x4] sm:$0xff] %vm1072, %v1538
    %1544 = vst.msk [vmem:[#allocation2 + $0xc] sm:$0xff] %vm1072, %v1540
    %1547 = vrot.lane.b32.xlu0 %v1533, 4
    %v1548 = vpop.permute.xlu0 %1547
    %1549 = vrot.lane.b32.xlu0 %v1534, 4
    %v1550 = vpop.permute.xlu0 %1549
    %1553 = vst.msk [vmem:[%s1081 + $0x4] sm:$0xff] %vm1072, %v1548
    %1554 = vst.msk [vmem:[%s1081 + $0xc] sm:$0xff] %vm1072, %v1550
    %1555 = vst.msk [vmem:[#allocation2 + $0x4] sm:$0xff] %vm1092, %v1538
    %1556 = vst.msk [vmem:[#allocation2 + $0xc] sm:$0xff] %vm1092, %v1540
    %1557 = vst.msk [vmem:[%s1081 + $0x4] sm:$0xff] %vm1092, %v1548
    %1558 = vst.msk [vmem:[%s1081 + $0xc] sm:$0xff] %vm1092, %v1550
    %v1559 = vld [vmem:[#allocation2] sm:$0xff]
    %v1560 = vld [vmem:[#allocation2 + $0x8] sm:$0xff]
    %s1561 = sld [smem:[#allocation8]]
    %v1562 = vstv %s1561
    %v1563 = vmul.f32 %v1562, %v1559
    %v1564 = vmul.f32 %v1562, %v1560
    %v1565 = vadd.f32 %v1563, 0.0
    %v1566 = vadd.f32 %v1564, 0.0
    %s1567 = sld [smem:[#allocation8 + $0x1]]
    %v1568 = vstv %s1567
    %v1569 = vmul.f32 %v1568, %v1559
    %v1570 = vmul.f32 %v1568, %v1560
    %v1571 = vadd.f32 %v1569, 0.0
    %v1572 = vadd.f32 %v1570, 0.0
    %s1573 = sld [smem:[#allocation8 + $0x4]]
    %v1574 = vstv %s1573
    %v1575 = vmul.f32 %v1574, %v1559
    %v1576 = vmul.f32 %v1574, %v1560
    %1579 = vrot.lane.b32.xlu0 %v1575, 124
    %v1580 = vpop.permute.xlu0 %1579
    %1581 = vrot.lane.b32.xlu0 %v1576, 124
    %v1582 = vpop.permute.xlu0 %1581
    %v1585 = vadd.f32 %v1565, %v1580
    %v1586 = vadd.f32 %v1566, %v1582
    %s1587 = sld [smem:[#allocation8 + $0x5]]
    %v1588 = vstv %s1587
    %v1589 = vmul.f32 %v1588, %v1559
    %v1590 = vmul.f32 %v1588, %v1560
    %1593 = vrot.lane.b32.xlu0 %v1589, 124
    %v1594 = vpop.permute.xlu0 %1593
    %1595 = vrot.lane.b32.xlu0 %v1590, 124
    %v1596 = vpop.permute.xlu0 %1595
    %v1599 = vadd.f32 %v1571, %v1594
    %v1600 = vadd.f32 %v1572, %v1596
    %s1601 = sld [smem:[#allocation8 + $0x8]]
    %v1602 = vstv %s1601
    %v1603 = vmul.f32 %v1602, %v1559
    %v1604 = vmul.f32 %v1602, %v1560
    %1607 = vrot.lane.b32.xlu0 %v1603, 120
    %v1608 = vpop.permute.xlu0 %1607
    %1609 = vrot.lane.b32.xlu0 %v1604, 120
    %v1610 = vpop.permute.xlu0 %1609
    %v1613 = vadd.f32 %v1585, %v1608
    %v1614 = vadd.f32 %v1586, %v1610
    %s1615 = sld [smem:[#allocation8 + $0x9]]
    %v1616 = vstv %s1615
    %v1617 = vmul.f32 %v1616, %v1559
    %v1618 = vmul.f32 %v1616, %v1560
    %1621 = vrot.lane.b32.xlu0 %v1617, 120
    %v1622 = vpop.permute.xlu0 %1621
    %1623 = vrot.lane.b32.xlu0 %v1618, 120
    %v1624 = vpop.permute.xlu0 %1623
    %v1627 = vadd.f32 %v1599, %v1622
    %v1628 = vadd.f32 %v1600, %v1624
    %v1629 = vld [vmem:[#allocation2 + $0x4] sm:$0xff]
    %v1630 = vld [vmem:[#allocation2 + $0xc] sm:$0xff]
    %s1631 = sld [smem:[#allocation8 + $0xc]]
    %v1632 = vstv %s1631
    %v1633 = vmul.f32 %v1632, %v1629
    %v1634 = vmul.f32 %v1632, %v1630
    %v1635 = vadd.f32 %v1613, %v1633
    %v1636 = vadd.f32 %v1614, %v1634
    %s1637 = sld [smem:[#allocation8 + $0xd]]
    %v1638 = vstv %s1637
    %v1639 = vmul.f32 %v1638, %v1629
    %v1640 = vmul.f32 %v1638, %v1630
    %v1641 = vadd.f32 %v1627, %v1639
    %v1642 = vadd.f32 %v1628, %v1640
    %s1643 = sld [smem:[#allocation8 + $0x10]]
    %v1644 = vstv %s1643
    %v1645 = vmul.f32 %v1644, %v1629
    %v1646 = vmul.f32 %v1644, %v1630
    %1649 = vrot.lane.b32.xlu0 %v1645, 124
    %v1650 = vpop.permute.xlu0 %1649
    %1651 = vrot.lane.b32.xlu0 %v1646, 124
    %v1652 = vpop.permute.xlu0 %1651
    %v1655 = vadd.f32 %v1635, %v1650
    %v1656 = vadd.f32 %v1636, %v1652
    %s1657 = sld [smem:[#allocation8 + $0x11]]
    %v1658 = vstv %s1657
    %v1659 = vmul.f32 %v1658, %v1629
    %v1660 = vmul.f32 %v1658, %v1630
    %1663 = vrot.lane.b32.xlu0 %v1659, 124
    %v1664 = vpop.permute.xlu0 %1663
    %1665 = vrot.lane.b32.xlu0 %v1660, 124
    %v1666 = vpop.permute.xlu0 %1665
    %v1669 = vadd.f32 %v1641, %v1664
    %v1670 = vadd.f32 %v1642, %v1666
    %s1671 = sld [smem:[#allocation8 + $0x14]]
    %v1672 = vstv %s1671
    %v1673 = vmul.f32 %v1672, %v1629
    %v1674 = vmul.f32 %v1672, %v1630
    %1677 = vrot.lane.b32.xlu0 %v1673, 120
    %v1678 = vpop.permute.xlu0 %1677
    %1679 = vrot.lane.b32.xlu0 %v1674, 120
    %v1680 = vpop.permute.xlu0 %1679
    %v1683 = vadd.f32 %v1655, %v1678
    %v1684 = vadd.f32 %v1656, %v1680
    %s1685 = sld [smem:[#allocation8 + $0x15]]
    %v1686 = vstv %s1685
    %v1687 = vmul.f32 %v1686, %v1629
    %v1688 = vmul.f32 %v1686, %v1630
    %1691 = vrot.lane.b32.xlu0 %v1687, 120
    %v1692 = vpop.permute.xlu0 %1691
    %1693 = vrot.lane.b32.xlu0 %v1688, 120
    %v1694 = vpop.permute.xlu0 %1693
    %v1697 = vadd.f32 %v1669, %v1692
    %v1698 = vadd.f32 %v1670, %v1694
    %v1699 = vld [vmem:[#allocation2 + $0x8] sm:$0xff]
    %v1700 = vld [vmem:[#allocation2 + $0x10] sm:$0xff]
    %s1701 = sld [smem:[#allocation8 + $0x18]]
    %v1702 = vstv %s1701
    %v1703 = vmul.f32 %v1702, %v1699
    %v1704 = vmul.f32 %v1702, %v1700
    %v1705 = vadd.f32 %v1683, %v1703
    %v1706 = vadd.f32 %v1684, %v1704
    %s1707 = sld [smem:[#allocation8 + $0x19]]
    %v1708 = vstv %s1707
    %v1709 = vmul.f32 %v1708, %v1699
    %v1710 = vmul.f32 %v1708, %v1700
    %v1711 = vadd.f32 %v1697, %v1709
    %v1712 = vadd.f32 %v1698, %v1710
    %s1713 = sld [smem:[#allocation8 + $0x1c]]
    %v1714 = vstv %s1713
    %v1715 = vmul.f32 %v1714, %v1699
    %v1716 = vmul.f32 %v1714, %v1700
    %1719 = vrot.lane.b32.xlu0 %v1715, 124
    %v1720 = vpop.permute.xlu0 %1719
    %1721 = vrot.lane.b32.xlu0 %v1716, 124
    %v1722 = vpop.permute.xlu0 %1721
    %v1725 = vadd.f32 %v1705, %v1720
    %v1726 = vadd.f32 %v1706, %v1722
    %s1727 = sld [smem:[#allocation8 + $0x1d]]
    %v1728 = vstv %s1727
    %v1729 = vmul.f32 %v1728, %v1699
    %v1730 = vmul.f32 %v1728, %v1700
    %1733 = vrot.lane.b32.xlu0 %v1729, 124
    %v1734 = vpop.permute.xlu0 %1733
    %1735 = vrot.lane.b32.xlu0 %v1730, 124
    %v1736 = vpop.permute.xlu0 %1735
    %v1739 = vadd.f32 %v1711, %v1734
    %v1740 = vadd.f32 %v1712, %v1736
    %s1741 = sld [smem:[#allocation8 + $0x20]]
    %v1742 = vstv %s1741
    %v1743 = vmul.f32 %v1742, %v1699
    %v1744 = vmul.f32 %v1742, %v1700
    %1747 = vrot.lane.b32.xlu0 %v1743, 120
    %v1748 = vpop.permute.xlu0 %1747
    %1749 = vrot.lane.b32.xlu0 %v1744, 120
    %v1750 = vpop.permute.xlu0 %1749
    %v1753 = vadd.f32 %v1725, %v1748
    %v1754 = vadd.f32 %v1726, %v1750
    %s1755 = sld [smem:[#allocation8 + $0x21]]
    %v1756 = vstv %s1755
    %v1757 = vmul.f32 %v1756, %v1699
    %v1758 = vmul.f32 %v1756, %v1700
    %1761 = vrot.lane.b32.xlu0 %v1757, 120
    %v1762 = vpop.permute.xlu0 %1761
    %1763 = vrot.lane.b32.xlu0 %v1758, 120
    %v1764 = vpop.permute.xlu0 %1763
    %v1767 = vadd.f32 %v1739, %v1762
    %v1768 = vadd.f32 %v1740, %v1764
    %v1769 = vld [vmem:[%s1081] sm:$0xff]
    %v1770 = vld [vmem:[%s1081 + $0x8] sm:$0xff]
    %s1771 = sld [smem:[#allocation8 + $0x2]]
    %v1772 = vstv %s1771
    %v1773 = vmul.f32 %v1772, %v1769
    %v1774 = vmul.f32 %v1772, %v1770
    %v1775 = vadd.f32 %v1753, %v1773
    %v1776 = vadd.f32 %v1754, %v1774
    %s1777 = sld [smem:[#allocation8 + $0x3]]
    %v1778 = vstv %s1777
    %v1779 = vmul.f32 %v1778, %v1769
    %v1780 = vmul.f32 %v1778, %v1770
    %v1781 = vadd.f32 %v1767, %v1779
    %v1782 = vadd.f32 %v1768, %v1780
    %s1783 = sld [smem:[#allocation8 + $0x6]]
    %v1784 = vstv %s1783
    %v1785 = vmul.f32 %v1784, %v1769
    %v1786 = vmul.f32 %v1784, %v1770
    %1789 = vrot.lane.b32.xlu0 %v1785, 124
    %v1790 = vpop.permute.xlu0 %1789
    %1791 = vrot.lane.b32.xlu0 %v1786, 124
    %v1792 = vpop.permute.xlu0 %1791
    %v1795 = vadd.f32 %v1775, %v1790
    %v1796 = vadd.f32 %v1776, %v1792
    %s1797 = sld [smem:[#allocation8 + $0x7]]
    %v1798 = vstv %s1797
    %v1799 = vmul.f32 %v1798, %v1769
    %v1800 = vmul.f32 %v1798, %v1770
    %1803 = vrot.lane.b32.xlu0 %v1799, 124
    %v1804 = vpop.permute.xlu0 %1803
    %1805 = vrot.lane.b32.xlu0 %v1800, 124
    %v1806 = vpop.permute.xlu0 %1805
    %v1809 = vadd.f32 %v1781, %v1804
    %v1810 = vadd.f32 %v1782, %v1806
    %s1811 = sld [smem:[#allocation8 + $0xa]]
    %v1812 = vstv %s1811
    %v1813 = vmul.f32 %v1812, %v1769
    %v1814 = vmul.f32 %v1812, %v1770
    %1817 = vrot.lane.b32.xlu0 %v1813, 120
    %v1818 = vpop.permute.xlu0 %1817
    %1819 = vrot.lane.b32.xlu0 %v1814, 120
    %v1820 = vpop.permute.xlu0 %1819
    %v1823 = vadd.f32 %v1795, %v1818
    %v1824 = vadd.f32 %v1796, %v1820
    %s1825 = sld [smem:[#allocation8 + $0xb]]
    %v1826 = vstv %s1825
    %v1827 = vmul.f32 %v1826, %v1769
    %v1828 = vmul.f32 %v1826, %v1770
    %1831 = vrot.lane.b32.xlu0 %v1827, 120
    %v1832 = vpop.permute.xlu0 %1831
    %1833 = vrot.lane.b32.xlu0 %v1828, 120
    %v1834 = vpop.permute.xlu0 %1833
    %v1837 = vadd.f32 %v1809, %v1832
    %v1838 = vadd.f32 %v1810, %v1834
    %v1839 = vld [vmem:[%s1081 + $0x4] sm:$0xff]
    %v1840 = vld [vmem:[%s1081 + $0xc] sm:$0xff]
    %s1841 = sld [smem:[#allocation8 + $0xe]]
    %v1842 = vstv %s1841
    %v1843 = vmul.f32 %v1842, %v1839
    %v1844 = vmul.f32 %v1842, %v1840
    %v1845 = vadd.f32 %v1823, %v1843
    %v1846 = vadd.f32 %v1824, %v1844
    %s1847 = sld [smem:[#allocation8 + $0xf]]
    %v1848 = vstv %s1847
    %v1849 = vmul.f32 %v1848, %v1839
    %v1850 = vmul.f32 %v1848, %v1840
    %v1851 = vadd.f32 %v1837, %v1849
    %v1852 = vadd.f32 %v1838, %v1850
    %s1853 = sld [smem:[#allocation8 + $0x12]]
    %v1854 = vstv %s1853
    %v1855 = vmul.f32 %v1854, %v1839
    %v1856 = vmul.f32 %v1854, %v1840
    %1859 = vrot.lane.b32.xlu0 %v1855, 124
    %v1860 = vpop.permute.xlu0 %1859
    %1861 = vrot.lane.b32.xlu0 %v1856, 124
    %v1862 = vpop.permute.xlu0 %1861
    %v1865 = vadd.f32 %v1845, %v1860
    %v1866 = vadd.f32 %v1846, %v1862
    %s1867 = sld [smem:[#allocation8 + $0x13]]
    %v1868 = vstv %s1867
    %v1869 = vmul.f32 %v1868, %v1839
    %v1870 = vmul.f32 %v1868, %v1840
    %1873 = vrot.lane.b32.xlu0 %v1869, 124
    %v1874 = vpop.permute.xlu0 %1873
    %1875 = vrot.lane.b32.xlu0 %v1870, 124
    %v1876 = vpop.permute.xlu0 %1875
    %v1879 = vadd.f32 %v1851, %v1874
    %v1880 = vadd.f32 %v1852, %v1876
    %s1881 = sld [smem:[#allocation8 + $0x16]]
    %v1882 = vstv %s1881
    %v1883 = vmul.f32 %v1882, %v1839
    %v1884 = vmul.f32 %v1882, %v1840
    %1887 = vrot.lane.b32.xlu0 %v1883, 120
    %v1888 = vpop.permute.xlu0 %1887
    %1889 = vrot.lane.b32.xlu0 %v1884, 120
    %v1890 = vpop.permute.xlu0 %1889
    %v1893 = vadd.f32 %v1865, %v1888
    %v1894 = vadd.f32 %v1866, %v1890
    %s1895 = sld [smem:[#allocation8 + $0x17]]
    %v1896 = vstv %s1895
    %v1897 = vmul.f32 %v1896, %v1839
    %v1898 = vmul.f32 %v1896, %v1840
    %1901 = vrot.lane.b32.xlu0 %v1897, 120
    %v1902 = vpop.permute.xlu0 %1901
    %1903 = vrot.lane.b32.xlu0 %v1898, 120
    %v1904 = vpop.permute.xlu0 %1903
    %v1907 = vadd.f32 %v1879, %v1902
    %v1908 = vadd.f32 %v1880, %v1904
    %v1909 = vld [vmem:[%s1081 + $0x8] sm:$0xff]
    %v1910 = vld [vmem:[%s1081 + $0x10] sm:$0xff]
    %s1911 = sld [smem:[#allocation8 + $0x1a]]
    %v1912 = vstv %s1911
    %v1913 = vmul.f32 %v1912, %v1909
    %v1914 = vmul.f32 %v1912, %v1910
    %v1915 = vadd.f32 %v1893, %v1913
    %v1916 = vadd.f32 %v1894, %v1914
    %s1917 = sld [smem:[#allocation8 + $0x1b]]
    %v1918 = vstv %s1917
    %v1919 = vmul.f32 %v1918, %v1909
    %v1920 = vmul.f32 %v1918, %v1910
    %v1921 = vadd.f32 %v1907, %v1919
    %v1922 = vadd.f32 %v1908, %v1920
    %s1923 = sld [smem:[#allocation8 + $0x1e]]
    %v1924 = vstv %s1923
    %v1925 = vmul.f32 %v1924, %v1909
    %v1926 = vmul.f32 %v1924, %v1910
    %1929 = vrot.lane.b32.xlu0 %v1925, 124
    %v1930 = vpop.permute.xlu0 %1929
    %1931 = vrot.lane.b32.xlu0 %v1926, 124
    %v1932 = vpop.permute.xlu0 %1931
    %v1935 = vadd.f32 %v1915, %v1930
    %v1936 = vadd.f32 %v1916, %v1932
    %s1937 = sld [smem:[#allocation8 + $0x1f]]
    %v1938 = vstv %s1937
    %v1939 = vmul.f32 %v1938, %v1909
    %v1940 = vmul.f32 %v1938, %v1910
    %1943 = vrot.lane.b32.xlu0 %v1939, 124
    %v1944 = vpop.permute.xlu0 %1943
    %1945 = vrot.lane.b32.xlu0 %v1940, 124
    %v1946 = vpop.permute.xlu0 %1945
    %v1949 = vadd.f32 %v1921, %v1944
    %v1950 = vadd.f32 %v1922, %v1946
    %s1951 = sld [smem:[#allocation8 + $0x22]]
    %v1952 = vstv %s1951
    %v1953 = vmul.f32 %v1952, %v1909
    %v1954 = vmul.f32 %v1952, %v1910
    %1957 = vrot.lane.b32.xlu0 %v1953, 120
    %v1958 = vpop.permute.xlu0 %1957
    %1959 = vrot.lane.b32.xlu0 %v1954, 120
    %v1960 = vpop.permute.xlu0 %1959
    %v1963 = vadd.f32 %v1935, %v1958
    %v1964 = vadd.f32 %v1936, %v1960
    %s1965 = sld [smem:[#allocation8 + $0x23]]
    %v1966 = vstv %s1965
    %v1967 = vmul.f32 %v1966, %v1909
    %v1968 = vmul.f32 %v1966, %v1910
    %1971 = vrot.lane.b32.xlu0 %v1967, 120
    %v1972 = vpop.permute.xlu0 %1971
    %1973 = vrot.lane.b32.xlu0 %v1968, 120
    %v1974 = vpop.permute.xlu0 %1973
    %v1977 = vadd.f32 %v1949, %v1972
    %v1978 = vadd.f32 %v1950, %v1974
    %s1979 = sld [smem:[#allocation9]]
    %v1980 = vstv %s1979
    %v1981 = vadd.f32 %v1963, %v1980
    %v1982 = vadd.f32 %v1964, %v1980
    %v1983 = vmax.f32 %v1981, 0.0
    %v1984 = vmax.f32 %v1982, 0.0
    %s1985 = sld [smem:[#allocation9 + $0x1]]
    %v1986 = vstv %s1985
    %v1987 = vadd.f32 %v1977, %v1986
    %v1988 = vadd.f32 %v1978, %v1986
    %v1989 = vmax.f32 %v1987, 0.0
    %v1990 = vmax.f32 %v1988, 0.0
    %s1991 = sld [smem:[#allocation11]]
    %v1992 = vstv %s1991
    %v1993 = vmul.f32 %v1992, %v1983
    %v1994 = vmul.f32 %v1992, %v1984
    %s1995 = sld [smem:[#allocation11 + $0x1]]
    %v1996 = vstv %s1995
    %v1997 = vmul.f32 %v1996, %v1989
    %v1998 = vmul.f32 %v1996, %v1990
    %v1999 = vadd.f32 %v1993, %v1997
    %v2000 = vadd.f32 %v1994, %v1998
    %s2001 = sld [smem:[#allocation11 + $0x2]]
    %v2002 = vstv %s2001
    %v2003 = vadd.f32 %v1999, %v2002
    %v2004 = vadd.f32 %v2000, %v2002
    %v2005 = vld [vmem:[%s10] sm:$0xff]
    %v2006 = vld [vmem:[%s10 + $0x8] sm:$0xff]
    %v2007 = vld [vmem:[%s10 + $0x10] sm:$0xff]
    %v2008 = vld [vmem:[%s10 + $0x18] sm:$0xff]
    %v2009 = vld [vmem:[%s10 + $0x20] sm:$0xff]
    %v2010 = vld [vmem:[%s10 + $0x28] sm:$0xff]
    %v2011 = vld [vmem:[%s10 + $0x30] sm:$0xff]
    %v2012 = vld [vmem:[%s10 + $0x38] sm:$0xff]
    %vm2013 = vcmask 130048
    %v2015 = vsel %vm2013, %v2003, 0
    %v2018 = vsel %vm2013, %v2004, 0
    %2020 = vmatprep.subr.mxu0 0.0
    %2021 = vmatpush1.msra.mxu0 0.0
    %2022 = vmatprep.subr.mxu0 0.0
    %2023 = vmatpush1.msra.mxu0 0.0
    %2024 = vmatprep.subr.mxu0 0.0
    %2025 = vmatpush1.msra.mxu0 0.0
    %2026 = vmatprep.subr.mxu0 0.0
    %2027 = vmatpush1.msra.mxu0 0.0
    %2028 = vmatprep.subr.mxu0 0.0
    %2029 = vmatpush1.msra.mxu0 0.0
    %2030 = vmatprep.subr.mxu0 0.0
    %2031 = vmatpush1.msra.mxu0 0.0
    %2032 = vmatprep.subr.mxu0 0.0
    %2033 = vmatpush1.msra.mxu0 0.0
    %2034 = vmatprep.subr.mxu0 0.0
    %2035 = vmatpush1.msra.mxu0 0.0
    %2036 = vmatprep.subr.mxu0 0.0
    %2037 = vmatpush1.msra.mxu0 0.0
    %2038 = vmatprep.subr.mxu0 0.0
    %2039 = vmatpush1.msra.mxu0 0.0
    %2040 = vmatprep.subr.mxu0 0.0
    %2041 = vmatpush1.msra.mxu0 0.0
    %2042 = vmatprep.subr.mxu0 0.0
    %2043 = vmatpush1.msra.mxu0 0.0
    %2044 = vmatprep.subr.mxu0 0.0
    %2045 = vmatpush1.msra.mxu0 0.0
    %2046 = vmatprep.subr.mxu0 0.0
    %2047 = vmatpush1.msra.mxu0 0.0
    %2048 = vmatprep.subr.mxu0 %v2010
    %2049 = vmatpush1.msra.mxu0 %v2009
    %2050 = vmatprep.subr.mxu0 %v2006
    %2051 = vmatpush1.msra.mxu0 %v2005
    %2052 = vmatprep.subr.mxu0 0.0
    %2053 = vmatpush2.msra.mxu0 0.0
    %2054 = vmatprep.subr.mxu0 0.0
    %2055 = vmatpush2.msra.mxu0 0.0
    %2056 = vmatprep.subr.mxu0 0.0
    %2057 = vmatpush2.msra.mxu0 0.0
    %2058 = vmatprep.subr.mxu0 0.0
    %2059 = vmatpush2.msra.mxu0 0.0
    %2060 = vmatprep.subr.mxu0 0.0
    %2061 = vmatpush2.msra.mxu0 0.0
    %2062 = vmatprep.subr.mxu0 0.0
    %2063 = vmatpush2.msra.mxu0 0.0
    %2064 = vmatprep.subr.mxu0 0.0
    %2065 = vmatpush2.msra.mxu0 0.0
    %2066 = vmatprep.subr.mxu0 0.0
    %2067 = vmatpush2.msra.mxu0 0.0
    %2068 = vmatprep.subr.mxu0 0.0
    %2069 = vmatpush2.msra.mxu0 0.0
    %2070 = vmatprep.subr.mxu0 0.0
    %2071 = vmatpush2.msra.mxu0 0.0
    %2072 = vmatprep.subr.mxu0 0.0
    %2073 = vmatpush2.msra.mxu0 0.0
    %2074 = vmatprep.subr.mxu0 0.0
    %2075 = vmatpush2.msra.mxu0 0.0
    %2076 = vmatprep.subr.mxu0 0.0
    %2077 = vmatpush2.msra.mxu0 0.0
    %2078 = vmatprep.subr.mxu0 0.0
    %2079 = vmatpush2.msra.mxu0 0.0
    %2080 = vmatprep.subr.mxu0 0.0
    %2081 = vmatpush2.msra.mxu0 0.0
    %2082 = vmatprep.subr.mxu0 0.0
    %2083 = vmatpush2.msra.mxu0 0.0
    %2084 = vmatprep.mubr.f32.mxu0 0.0
    %2085 = vmatmul.mubr.f32.gmra.mxu0 %v2015
    %v2086 = vpop.f32.mrf.mxu0
    %v2087 = vadd.f32 0.0, %v2086
    %v2088 = vpop.f32.mrf.mxu0
    %v2089 = vadd.f32 0.0, %v2088
    %2090 = vmatprep.mubr.f32.mxu0 0.0
    %2091 = vmatmul.mubr.f32.gmra.mxu0 %v2018
    %v2092 = vpop.f32.mrf.mxu0
    %v2093 = vadd.f32 0.0, %v2092
    %v2094 = vpop.f32.mrf.mxu0
    %v2095 = vadd.f32 0.0, %v2094
    %2096 = vdwg.mxu0
    %2097 = vmatprep.subr.mxu0 0.0
    %2098 = vmatpush1.msra.mxu0 0.0
    %2099 = vmatprep.subr.mxu0 0.0
    %2100 = vmatpush1.msra.mxu0 0.0
    %2101 = vmatprep.subr.mxu0 0.0
    %2102 = vmatpush1.msra.mxu0 0.0
    %2103 = vmatprep.subr.mxu0 0.0
    %2104 = vmatpush1.msra.mxu0 0.0
    %2105 = vmatprep.subr.mxu0 0.0
    %2106 = vmatpush1.msra.mxu0 0.0
    %2107 = vmatprep.subr.mxu0 0.0
    %2108 = vmatpush1.msra.mxu0 0.0
    %2109 = vmatprep.subr.mxu0 0.0
    %2110 = vmatpush1.msra.mxu0 0.0
    %2111 = vmatprep.subr.mxu0 0.0
    %2112 = vmatpush1.msra.mxu0 0.0
    %2113 = vmatprep.subr.mxu0 0.0
    %2114 = vmatpush1.msra.mxu0 0.0
    %2115 = vmatprep.subr.mxu0 0.0
    %2116 = vmatpush1.msra.mxu0 0.0
    %2117 = vmatprep.subr.mxu0 0.0
    %2118 = vmatpush1.msra.mxu0 0.0
    %2119 = vmatprep.subr.mxu0 0.0
    %2120 = vmatpush1.msra.mxu0 0.0
    %2121 = vmatprep.subr.mxu0 0.0
    %2122 = vmatpush1.msra.mxu0 0.0
    %2123 = vmatprep.subr.mxu0 0.0
    %2124 = vmatpush1.msra.mxu0 0.0
    %2125 = vmatprep.subr.mxu0 %v2012
    %2126 = vmatpush1.msra.mxu0 %v2011
    %2127 = vmatprep.subr.mxu0 %v2008
    %2128 = vmatpush1.msra.mxu0 %v2007
    %2129 = vmatprep.subr.mxu0 0.0
    %2130 = vmatpush2.msra.mxu0 0.0
    %2131 = vmatprep.subr.mxu0 0.0
    %2132 = vmatpush2.msra.mxu0 0.0
    %2133 = vmatprep.subr.mxu0 0.0
    %2134 = vmatpush2.msra.mxu0 0.0
    %2135 = vmatprep.subr.mxu0 0.0
    %2136 = vmatpush2.msra.mxu0 0.0
    %2137 = vmatprep.subr.mxu0 0.0
    %2138 = vmatpush2.msra.mxu0 0.0
    %2139 = vmatprep.subr.mxu0 0.0
    %2140 = vmatpush2.msra.mxu0 0.0
    %2141 = vmatprep.subr.mxu0 0.0
    %2142 = vmatpush2.msra.mxu0 0.0
    %2143 = vmatprep.subr.mxu0 0.0
    %2144 = vmatpush2.msra.mxu0 0.0
    %2145 = vmatprep.subr.mxu0 0.0
    %2146 = vmatpush2.msra.mxu0 0.0
    %2147 = vmatprep.subr.mxu0 0.0
    %2148 = vmatpush2.msra.mxu0 0.0
    %2149 = vmatprep.subr.mxu0 0.0
    %2150 = vmatpush2.msra.mxu0 0.0
    %2151 = vmatprep.subr.mxu0 0.0
    %2152 = vmatpush2.msra.mxu0 0.0
    %2153 = vmatprep.subr.mxu0 0.0
    %2154 = vmatpush2.msra.mxu0 0.0
    %2155 = vmatprep.subr.mxu0 0.0
    %2156 = vmatpush2.msra.mxu0 0.0
    %2157 = vmatprep.subr.mxu0 0.0
    %2158 = vmatpush2.msra.mxu0 0.0
    %2159 = vmatprep.subr.mxu0 0.0
    %2160 = vmatpush2.msra.mxu0 0.0
    %2161 = vmatprep.mubr.f32.mxu0 0.0
    %2162 = vmatmul.mubr.f32.gmra.mxu0 %v2015
    %v2163 = vpop.f32.mrf.mxu0
    %v2164 = vadd.f32 0.0, %v2163
    %v2165 = vpop.f32.mrf.mxu0
    %v2166 = vadd.f32 0.0, %v2165
    %2167 = vmatprep.mubr.f32.mxu0 0.0
    %2168 = vmatmul.mubr.f32.gmra.mxu0 %v2018
    %v2169 = vpop.f32.mrf.mxu0
    %v2170 = vadd.f32 0.0, %v2169
    %v2171 = vpop.f32.mrf.mxu0
    %v2172 = vadd.f32 0.0, %v2171
    %2173 = vdwg.mxu0
    %v2174 = vlaneseq
    %v2175 = vshrl.u32 %v2174, 7
    %v2176 = vsub.s32 0, %v2175
    %v2177 = vrot.slane %v737, %v2176
    %v2178 = vlaneseq
    %v2179 = vshrl.u32 %v2178, 7
    %v2180 = vsub.s32 0, %v2179
    %v2181 = vrot.slane %v739, %v2180
    %v2182 = vlaneseq
    %v2183 = vshrl.u32 %v2182, 7
    %v2184 = vsub.s32 0, %v2183
    %v2185 = vrot.slane %v808, %v2184
    %v2186 = vlaneseq
    %v2187 = vshrl.u32 %v2186, 7
    %v2188 = vsub.s32 0, %v2187
    %v2189 = vrot.slane %v810, %v2188
    %v2190 = vmul.f32 %v2087, %v2177
    %v2191 = vmul.f32 %v2089, %v2181
    %v2192 = vmul.f32 %v2164, %v2185
    %v2193 = vmul.f32 %v2166, %v2189
    %v2194 = vmul.f32 %v2093, %v2177
    %v2195 = vmul.f32 %v2095, %v2181
    %v2196 = vmul.f32 %v2170, %v2185
    %v2197 = vmul.f32 %v2172, %v2189
    %v2198 = vmul.f32 %v2190, 0.5
    %v2199 = vmul.f32 %v2191, 0.5
    %v2200 = vmul.f32 %v2192, 0.5
    %v2201 = vmul.f32 %v2193, 0.5
    %v2202 = vmul.f32 %v2194, 0.5
    %v2203 = vmul.f32 %v2195, 0.5
    %v2204 = vmul.f32 %v2196, 0.5
    %v2205 = vmul.f32 %v2197, 0.5
    %v2206 = vtanh.pop %v2198
    %v2207 = vtanh.pop %v2199
    %v2208 = vtanh.pop %v2200
    %v2209 = vtanh.pop %v2201
    %v2210 = vtanh.pop %v2202
    %v2211 = vtanh.pop %v2203
    %v2212 = vtanh.pop %v2204
    %v2213 = vtanh.pop %v2205
    %v2214 = vmul.f32 %v2206, 0.5
    %v2215 = vmul.f32 %v2207, 0.5
    %v2216 = vmul.f32 %v2208, 0.5
    %v2217 = vmul.f32 %v2209, 0.5
    %v2218 = vmul.f32 %v2210, 0.5
    %v2219 = vmul.f32 %v2211, 0.5
    %v2220 = vmul.f32 %v2212, 0.5
    %v2221 = vmul.f32 %v2213, 0.5
    %v2222 = vadd.f32 %v2214, 1.5
    %v2223 = vadd.f32 %v2215, 1.5
    %v2224 = vadd.f32 %v2216, 1.5
    %v2225 = vadd.f32 %v2217, 1.5
    %v2226 = vadd.f32 %v2218, 1.5
    %v2227 = vadd.f32 %v2219, 1.5
    %v2228 = vadd.f32 %v2220, 1.5
    %v2229 = vadd.f32 %v2221, 1.5
    %v2230 = vmul.f32 %v113, %v2222
    %v2231 = vmul.f32 %v114, %v2223
    %v2232 = vmul.f32 %v115, %v2224
    %v2233 = vmul.f32 %v116, %v2225
    %v2234 = vmul.f32 %v117, %v2226
    %v2235 = vmul.f32 %v118, %v2227
    %v2236 = vmul.f32 %v119, %v2228
    %v2237 = vmul.f32 %v120, %v2229
    %2238 = vst [vmem:[#allocation12] sm:$0xff] %v2230
    %2239 = vst [vmem:[#allocation12 + $0x8] sm:$0xff] %v2231
    %2240 = vst [vmem:[#allocation12 + $0x10] sm:$0xff] %v2232
    %2241 = vst [vmem:[#allocation12 + $0x18] sm:$0xff] %v2233
    %2242 = vst [vmem:[#allocation12 + $0x20] sm:$0xff] %v2234
    %2243 = vst [vmem:[#allocation12 + $0x28] sm:$0xff] %v2235
    %2244 = vst [vmem:[#allocation12 + $0x30] sm:$0xff] %v2236
    %2245 = vst [vmem:[#allocation12 + $0x38] sm:$0xff] %v2237
    %v2246 = vld [vmem:[%s10] sm:$0xff]
    %v2247 = vld [vmem:[%s10 + $0x8] sm:$0xff]
    %v2248 = vld [vmem:[%s10 + $0x10] sm:$0xff]
    %v2249 = vld [vmem:[%s10 + $0x18] sm:$0xff]
    %v2250 = vld [vmem:[%s10 + $0x20] sm:$0xff]
    %v2251 = vld [vmem:[%s10 + $0x28] sm:$0xff]
    %v2252 = vld [vmem:[%s10 + $0x30] sm:$0xff]
    %v2253 = vld [vmem:[%s10 + $0x38] sm:$0xff]
    %2254 = vrot.lane.b32.xlu0 %v2003, 104
    %v2255 = vpop.permute.xlu0 %2254
    %2256 = vrot.lane.b32.xlu0 %v2004, 104
    %v2257 = vpop.permute.xlu0 %2256
    %v2258 = vsel %vm2013, %v2255, 0
    %v2260 = vsel %vm2013, %v2257, 0
    %2262 = vmatprep.subr.mxu0 0.0
    %2263 = vmatpush1.msra.mxu0 0.0
    %2264 = vmatprep.subr.mxu0 0.0
    %2265 = vmatpush1.msra.mxu0 0.0
    %2266 = vmatprep.subr.mxu0 0.0
    %2267 = vmatpush1.msra.mxu0 0.0
    %2268 = vmatprep.subr.mxu0 0.0
    %2269 = vmatpush1.msra.mxu0 0.0
    %2270 = vmatprep.subr.mxu0 0.0
    %2271 = vmatpush1.msra.mxu0 0.0
    %2272 = vmatprep.subr.mxu0 0.0
    %2273 = vmatpush1.msra.mxu0 0.0
    %2274 = vmatprep.subr.mxu0 0.0
    %2275 = vmatpush1.msra.mxu0 0.0
    %2276 = vmatprep.subr.mxu0 0.0
    %2277 = vmatpush1.msra.mxu0 0.0
    %2278 = vmatprep.subr.mxu0 0.0
    %2279 = vmatpush1.msra.mxu0 0.0
    %2280 = vmatprep.subr.mxu0 0.0
    %2281 = vmatpush1.msra.mxu0 0.0
    %2282 = vmatprep.subr.mxu0 0.0
    %2283 = vmatpush1.msra.mxu0 0.0
    %2284 = vmatprep.subr.mxu0 0.0
    %2285 = vmatpush1.msra.mxu0 0.0
    %2286 = vmatprep.subr.mxu0 0.0
    %2287 = vmatpush1.msra.mxu0 0.0
    %2288 = vmatprep.subr.mxu0 0.0
    %2289 = vmatpush1.msra.mxu0 0.0
    %2290 = vmatprep.subr.mxu0 %v2251
    %2291 = vmatpush1.msra.mxu0 %v2250
    %2292 = vmatprep.subr.mxu0 %v2247
    %2293 = vmatpush1.msra.mxu0 %v2246
    %2294 = vmatprep.subr.mxu0 0.0
    %2295 = vmatpush2.msra.mxu0 0.0
    %2296 = vmatprep.subr.mxu0 0.0
    %2297 = vmatpush2.msra.mxu0 0.0
    %2298 = vmatprep.subr.mxu0 0.0
    %2299 = vmatpush2.msra.mxu0 0.0
    %2300 = vmatprep.subr.mxu0 0.0
    %2301 = vmatpush2.msra.mxu0 0.0
    %2302 = vmatprep.subr.mxu0 0.0
    %2303 = vmatpush2.msra.mxu0 0.0
    %2304 = vmatprep.subr.mxu0 0.0
    %2305 = vmatpush2.msra.mxu0 0.0
    %2306 = vmatprep.subr.mxu0 0.0
    %2307 = vmatpush2.msra.mxu0 0.0
    %2308 = vmatprep.subr.mxu0 0.0
    %2309 = vmatpush2.msra.mxu0 0.0
    %2310 = vmatprep.subr.mxu0 0.0
    %2311 = vmatpush2.msra.mxu0 0.0
    %2312 = vmatprep.subr.mxu0 0.0
    %2313 = vmatpush2.msra.mxu0 0.0
    %2314 = vmatprep.subr.mxu0 0.0
    %2315 = vmatpush2.msra.mxu0 0.0
    %2316 = vmatprep.subr.mxu0 0.0
    %2317 = vmatpush2.msra.mxu0 0.0
    %2318 = vmatprep.subr.mxu0 0.0
    %2319 = vmatpush2.msra.mxu0 0.0
    %2320 = vmatprep.subr.mxu0 0.0
    %2321 = vmatpush2.msra.mxu0 0.0
    %2322 = vmatprep.subr.mxu0 0.0
    %2323 = vmatpush2.msra.mxu0 0.0
    %2324 = vmatprep.subr.mxu0 0.0
    %2325 = vmatpush2.msra.mxu0 0.0
    %2326 = vmatprep.mubr.f32.mxu0 0.0
    %2327 = vmatmul.mubr.f32.gmra.mxu0 %v2258
    %v2328 = vpop.f32.mrf.mxu0
    %v2329 = vadd.f32 0.0, %v2328
    %v2330 = vpop.f32.mrf.mxu0
    %v2331 = vadd.f32 0.0, %v2330
    %2332 = vmatprep.mubr.f32.mxu0 0.0
    %2333 = vmatmul.mubr.f32.gmra.mxu0 %v2260
    %v2334 = vpop.f32.mrf.mxu0
    %v2335 = vadd.f32 0.0, %v2334
    %v2336 = vpop.f32.mrf.mxu0
    %v2337 = vadd.f32 0.0, %v2336
    %2338 = vdwg.mxu0
    %2339 = vmatprep.subr.mxu0 0.0
    %2340 = vmatpush1.msra.mxu0 0.0
    %2341 = vmatprep.subr.mxu0 0.0
    %2342 = vmatpush1.msra.mxu0 0.0
    %2343 = vmatprep.subr.mxu0 0.0
    %2344 = vmatpush1.msra.mxu0 0.0
    %2345 = vmatprep.subr.mxu0 0.0
    %2346 = vmatpush1.msra.mxu0 0.0
    %2347 = vmatprep.subr.mxu0 0.0
    %2348 = vmatpush1.msra.mxu0 0.0
    %2349 = vmatprep.subr.mxu0 0.0
    %2350 = vmatpush1.msra.mxu0 0.0
    %2351 = vmatprep.subr.mxu0 0.0
    %2352 = vmatpush1.msra.mxu0 0.0
    %2353 = vmatprep.subr.mxu0 0.0
    %2354 = vmatpush1.msra.mxu0 0.0
    %2355 = vmatprep.subr.mxu0 0.0
    %2356 = vmatpush1.msra.mxu0 0.0
    %2357 = vmatprep.subr.mxu0 0.0
    %2358 = vmatpush1.msra.mxu0 0.0
    %2359 = vmatprep.subr.mxu0 0.0
    %2360 = vmatpush1.msra.mxu0 0.0
    %2361 = vmatprep.subr.mxu0 0.0
    %2362 = vmatpush1.msra.mxu0 0.0
    %2363 = vmatprep.subr.mxu0 0.0
    %2364 = vmatpush1.msra.mxu0 0.0
    %2365 = vmatprep.subr.mxu0 0.0
    %2366 = vmatpush1.msra.mxu0 0.0
    %2367 = vmatprep.subr.mxu0 %v2253
    %2368 = vmatpush1.msra.mxu0 %v2252
    %2369 = vmatprep.subr.mxu0 %v2249
    %2370 = vmatpush1.msra.mxu0 %v2248
    %2371 = vmatprep.subr.mxu0 0.0
    %2372 = vmatpush2.msra.mxu0 0.0
    %2373 = vmatprep.subr.mxu0 0.0
    %2374 = vmatpush2.msra.mxu0 0.0
    %2375 = vmatprep.subr.mxu0 0.0
    %2376 = vmatpush2.msra.mxu0 0.0
    %2377 = vmatprep.subr.mxu0 0.0
    %2378 = vmatpush2.msra.mxu0 0.0
    %2379 = vmatprep.subr.mxu0 0.0
    %2380 = vmatpush2.msra.mxu0 0.0
    %2381 = vmatprep.subr.mxu0 0.0
    %2382 = vmatpush2.msra.mxu0 0.0
    %2383 = vmatprep.subr.mxu0 0.0
    %2384 = vmatpush2.msra.mxu0 0.0
    %2385 = vmatprep.subr.mxu0 0.0
    %2386 = vmatpush2.msra.mxu0 0.0
    %2387 = vmatprep.subr.mxu0 0.0
    %2388 = vmatpush2.msra.mxu0 0.0
    %2389 = vmatprep.subr.mxu0 0.0
    %2390 = vmatpush2.msra.mxu0 0.0
    %2391 = vmatprep.subr.mxu0 0.0
    %2392 = vmatpush2.msra.mxu0 0.0
    %2393 = vmatprep.subr.mxu0 0.0
    %2394 = vmatpush2.msra.mxu0 0.0
    %2395 = vmatprep.subr.mxu0 0.0
    %2396 = vmatpush2.msra.mxu0 0.0
    %2397 = vmatprep.subr.mxu0 0.0
    %2398 = vmatpush2.msra.mxu0 0.0
    %2399 = vmatprep.subr.mxu0 0.0
    %2400 = vmatpush2.msra.mxu0 0.0
    %2401 = vmatprep.subr.mxu0 0.0
    %2402 = vmatpush2.msra.mxu0 0.0
    %2403 = vmatprep.mubr.f32.mxu0 0.0
    %2404 = vmatmul.mubr.f32.gmra.mxu0 %v2258
    %v2405 = vpop.f32.mrf.mxu0
    %v2406 = vadd.f32 0.0, %v2405
    %v2407 = vpop.f32.mrf.mxu0
    %v2408 = vadd.f32 0.0, %v2407
    %2409 = vmatprep.mubr.f32.mxu0 0.0
    %2410 = vmatmul.mubr.f32.gmra.mxu0 %v2260
    %v2411 = vpop.f32.mrf.mxu0
    %v2412 = vadd.f32 0.0, %v2411
    %v2413 = vpop.f32.mrf.mxu0
    %v2414 = vadd.f32 0.0, %v2413
    %2415 = vdwg.mxu0
    %v2416 = vlaneseq
    %v2417 = vshrl.u32 %v2416, 7
    %v2418 = vsub.s32 1, %v2417
    %v2419 = vrot.slane %v737, %v2418
    %v2420 = vlaneseq
    %v2421 = vshrl.u32 %v2420, 7
    %v2422 = vsub.s32 1, %v2421
    %v2423 = vrot.slane %v739, %v2422
    %v2424 = vlaneseq
    %v2425 = vshrl.u32 %v2424, 7
    %v2426 = vsub.s32 1, %v2425
    %v2427 = vrot.slane %v808, %v2426
    %v2428 = vlaneseq
    %v2429 = vshrl.u32 %v2428, 7
    %v2430 = vsub.s32 1, %v2429
    %v2431 = vrot.slane %v810, %v2430
    %v2432 = vmul.f32 %v2329, %v2419
    %v2433 = vmul.f32 %v2331, %v2423
    %v2434 = vmul.f32 %v2406, %v2427
    %v2435 = vmul.f32 %v2408, %v2431
    %v2436 = vmul.f32 %v2335, %v2419
    %v2437 = vmul.f32 %v2337, %v2423
    %v2438 = vmul.f32 %v2412, %v2427
    %v2439 = vmul.f32 %v2414, %v2431
    %v2440 = vmul.f32 %v2432, 0.5
    %v2441 = vmul.f32 %v2433, 0.5
    %v2442 = vmul.f32 %v2434, 0.5
    %v2443 = vmul.f32 %v2435, 0.5
    %v2444 = vmul.f32 %v2436, 0.5
    %v2445 = vmul.f32 %v2437, 0.5
    %v2446 = vmul.f32 %v2438, 0.5
    %v2447 = vmul.f32 %v2439, 0.5
    %v2448 = vtanh.pop %v2440
    %v2449 = vtanh.pop %v2441
    %v2450 = vtanh.pop %v2442
    %v2451 = vtanh.pop %v2443
    %v2452 = vtanh.pop %v2444
    %v2453 = vtanh.pop %v2445
    %v2454 = vtanh.pop %v2446
    %v2455 = vtanh.pop %v2447
    %v2456 = vmul.f32 %v2448, 0.5
    %v2457 = vmul.f32 %v2449, 0.5
    %v2458 = vmul.f32 %v2450, 0.5
    %v2459 = vmul.f32 %v2451, 0.5
    %v2460 = vmul.f32 %v2452, 0.5
    %v2461 = vmul.f32 %v2453, 0.5
    %v2462 = vmul.f32 %v2454, 0.5
    %v2463 = vmul.f32 %v2455, 0.5
    %v2464 = vadd.f32 %v2456, 1.5
    %v2465 = vadd.f32 %v2457, 1.5
    %v2466 = vadd.f32 %v2458, 1.5
    %v2467 = vadd.f32 %v2459, 1.5
    %v2468 = vadd.f32 %v2460, 1.5
    %v2469 = vadd.f32 %v2461, 1.5
    %v2470 = vadd.f32 %v2462, 1.5
    %v2471 = vadd.f32 %v2463, 1.5
    %v2472 = vmul.f32 %v121, %v2464
    %v2473 = vmul.f32 %v122, %v2465
    %v2474 = vmul.f32 %v123, %v2466
    %v2475 = vmul.f32 %v124, %v2467
    %v2476 = vmul.f32 %v125, %v2468
    %v2477 = vmul.f32 %v126, %v2469
    %v2478 = vmul.f32 %v127, %v2470
    %v2479 = vmul.f32 %v128, %v2471
    %s2480 = scalar_lea.vmem [#allocation12], 64
    %2481 = vst [vmem:[%s2480] sm:$0xff] %v2472
    %2482 = vst [vmem:[%s2480 + $0x8] sm:$0xff] %v2473
    %2483 = vst [vmem:[%s2480 + $0x10] sm:$0xff] %v2474
    %2484 = vst [vmem:[%s2480 + $0x18] sm:$0xff] %v2475
    %2485 = vst [vmem:[%s2480 + $0x20] sm:$0xff] %v2476
    %2486 = vst [vmem:[%s2480 + $0x28] sm:$0xff] %v2477
    %2487 = vst [vmem:[%s2480 + $0x30] sm:$0xff] %v2478
    %2488 = vst [vmem:[%s2480 + $0x38] sm:$0xff] %v2479
    // Predicated region
    $region86: #{tpu_custom_call.1} parent=1 // pred_check
      _
    $region87: #{tpu_custom_call.1} parent=1 // pred_check_branch
      %2490 = sbr.rel (0) target = $region89
    $region88: #{tpu_custom_call.1} parent=1 // pred_region
      %s2492 = ssub.s32 2048, 2048
      %2493 = vsyncadd [#allocation4], %s2492
      %s2494 = sshll.u32 [#allocation12], 4
      %s2495 = int_to_ptr.vmem [resolvable:$true] %s2494
      %2500 = dma.vmem_to_hbm [thread:$0]  %s2495, 2048, %s16, [#allocation4], 512, 512, 32
    $region89: #{tpu_custom_call.1} parent=1 // pred_fallthru
      _
    // Predicated region
    $region90: #{tpu_custom_call.1} parent=1 // pred_check
      _
    $region91: #{tpu_custom_call.1} parent=1 // pred_check_branch
      %2502 = sbr.rel (0) target = $region93
    $region92: #{tpu_custom_call.1} parent=1 // pred_region
      %2503 = dma.done [#allocation4], 2048
    $region93: #{tpu_custom_call.1} parent=1 // pred_fallthru
      _
    %2504 = vsyncpa [#allocation4], 1
    %2505 = vsyncpa [#allocation5], 1
    %2506 = vsyncpa [#allocation7], 1
    %2507 = vsyncpa [#allocation10], 1

</llo_original>
